<compile_context>
chip_gen: v6e
topology: v6e:2x2x1
jax: 0.10.0
libtpu: 0.0.40
codegen_flags: <defaults>
</compile_context>

<pallas_src>
import jax
import jax.numpy as jnp
from jax.experimental import pallas as pl
from jax.experimental.pallas import tpu as pltpu


def _round_up(n, m):
    return ((n + m - 1) // m) * m


def _autoencoder_kernel(x_ref,
                        w1_ref, b1_ref,
                        w2_ref, b2_ref,
                        w3_ref, b3_ref,
                        w4_ref, b4_ref,
                        out_ref):
    # Single well-placed cast: bf16 into the MXU, f32 accumulation + elementwise.
    x = x_ref[...].astype(jnp.bfloat16)

    # ---- encoder ----
    h1 = jnp.dot(x, w1_ref[...], preferred_element_type=jnp.float32) + b1_ref[...]
    h1 = jnp.maximum(h1, 0.0).astype(jnp.bfloat16)             # ReLU (f32) -> bf16 for next dot

    h2 = jnp.dot(h1, w2_ref[...], preferred_element_type=jnp.float32) + b2_ref[...]
    h2 = jnp.maximum(h2, 0.0).astype(jnp.bfloat16)             # ReLU

    # ---- decoder ----
    h3 = jnp.dot(h2, w3_ref[...], preferred_element_type=jnp.float32) + b3_ref[...]
    h3 = jnp.maximum(h3, 0.0).astype(jnp.bfloat16)             # ReLU

    h4 = jnp.dot(h3, w4_ref[...], preferred_element_type=jnp.float32) + b4_ref[...]
    # Sigmoid: exp on EUP, division replaced by approx reciprocal (also EUP slot).
    out = pl.reciprocal(1.0 + jnp.exp(-h4), approx=True)

    out_ref[...] = out.astype(out_ref.dtype)


def autoencoder_forward(x, params, *, block_m=256):
    """x: (B, input_dim) float32. params: dict of f32 (in,out) weights and (1,out) biases."""
    B, d_in = x.shape
    d_out = params["w4"].shape[1]

    # Lane-dense output: pad final dim to a multiple of 128 (784 -> 896).
    d_out_pad = _round_up(d_out, 128)

    # Batch tile: multiple of 8 sublanes, capped at block_m; pad batch to a whole tile count.
    tm = min(block_m, _round_up(B, 8))
    b_pad = _round_up(B, tm)

    x_p = x if b_pad == B else jnp.pad(x, ((0, b_pad - B), (0, 0)))

    # bf16 weights: halves weight DMA and feeds the bf16 MXU at full rate. Biases stay f32.
    w1 = params["w1"].astype(jnp.bfloat16)
    w2 = params["w2"].astype(jnp.bfloat16)
    w3 = params["w3"].astype(jnp.bfloat16)
    w4 = params["w4"].astype(jnp.bfloat16)
    b1, b2, b3, b4 = params["b1"], params["b2"], params["b3"], params["b4"]
    if d_out_pad != d_out:
        w4 = jnp.pad(w4, ((0, 0), (0, d_out_pad - d_out)))
        b4 = jnp.pad(b4, ((0, 0), (0, d_out_pad - d_out)))

    # Weights/biases resident across the whole grid (constant block index).
    resident = lambda shape: pl.BlockSpec(shape, lambda i: (0, 0))

    out = pl.pallas_call(
        _autoencoder_kernel,
        out_shape=jax.ShapeDtypeStruct((b_pad, d_out_pad), jnp.float32),
        grid=(b_pad // tm,),
        in_specs=[
            pl.BlockSpec((tm, d_in), lambda i: (i, 0)),      # x: batch-tiled
            resident(w1.shape), resident(b1.shape),
            resident(w2.shape), resident(b2.shape),
            resident(w3.shape), resident(b3.shape),
            resident(w4.shape), resident(b4.shape),
        ],
        out_specs=pl.BlockSpec((tm, d_out_pad), lambda i: (i, 0)),
        compiler_params=pltpu.CompilerParams(
            dimension_semantics=("parallel",),               # megacore split on v7x
            vmem_limit_bytes=16 << 20,
        ),
    )(x_p, w1, b1, w2, b2, w3, b3, w4, b4)

    # Slice off batch padding and the lane padding of the final layer.
    return out[:B, :d_out]


def init_params(key, input_dim=784, hidden_dim=128):
    """Deterministic synthetic parameters (PyTorch Linear shapes, pre-transposed to (in,out))."""
    dims = [
        (input_dim, hidden_dim * 2),   # encoder.0
        (hidden_dim * 2, hidden_dim),  # encoder.2
        (hidden_dim, hidden_dim * 2),  # decoder.0
        (hidden_dim * 2, input_dim),   # decoder.2
    ]
    params = {}
    for i, (fan_in, fan_out) in enumerate(dims, start=1):
        key, kw, kb = jax.random.split(key, 3)
        bound = 1.0 / (fan_in ** 0.5)  # matches nn.Linear default init range
        params[f"w{i}"] = jax.random.uniform(
            kw, (fan_in, fan_out), jnp.float32, minval=-bound, maxval=bound)
        params[f"b{i}"] = jax.random.uniform(
            kb, (1, fan_out), jnp.float32, minval=-bound, maxval=bound)
    return params


def _reference_forward(x, params):
    h = jnp.maximum(x @ params["w1"] + params["b1"], 0.0)
    h = jnp.maximum(h @ params["w2"] + params["b2"], 0.0)
    h = jnp.maximum(h @ params["w3"] + params["b3"], 0.0)
    return jax.nn.sigmoid(h @ params["w4"] + params["b4"])


if __name__ == "__main__":
    key = jax.random.PRNGKey(0)
    key, kx = jax.random.split(key)

    batch, input_dim, hidden_dim = 200, 784, 128  # exercises multi-tile grid + batch padding
    x = jax.random.uniform(kx, (batch, input_dim), jnp.float32)  # e.g. flattened 28x28 images
    params = init_params(key, input_dim=input_dim, hidden_dim=hidden_dim)

    out = autoencoder_forward(x, params, block_m=128)
    out = jax.block_until_ready(out)

    ref = _reference_forward(x, params)
    assert out.shape == (batch, input_dim)
    # bf16 matmul inputs + approx reciprocal -> loosened tolerance vs the f32 reference.
    assert jnp.allclose(out, ref, atol=2e-2, rtol=2e-2), "mismatch vs JAX reference"

    print("KERNEL_OK")
</pallas_src>

<mosaic_0001>
module attributes {stable_mosaic.version = 11 : i64} {
  func.func @_autoencoder_kernel(%arg0: i32, %arg1: memref<128x784xf32, #tpu.memory_space<vmem>>, %arg2: memref<784x256xbf16, #tpu.memory_space<vmem>>, %arg3: memref<1x256xf32, #tpu.memory_space<vmem>>, %arg4: memref<256x128xbf16, #tpu.memory_space<vmem>>, %arg5: memref<1x128xf32, #tpu.memory_space<vmem>>, %arg6: memref<128x256xbf16, #tpu.memory_space<vmem>>, %arg7: memref<1x256xf32, #tpu.memory_space<vmem>>, %arg8: memref<256x896xbf16, #tpu.memory_space<vmem>>, %arg9: memref<1x896xf32, #tpu.memory_space<vmem>>, %arg10: memref<128x896xf32, #tpu.memory_space<vmem>>) attributes {dimension_semantics = [#tpu.dimension_semantics<parallel>], iteration_bounds = array<i64: 2>, scalar_prefetch = 0 : i64, scratch_operands = 0 : i64, tpu.core_type = #tpu.core_type<tc>, window_params = [{transform_indices = @transform_0, window_bounds = array<i64: 128, 784>}, {pipeline_mode = #tpu.pipeline_mode<synchronous>, transform_indices = @transform_1, window_bounds = array<i64: 784, 256>}, {pipeline_mode = #tpu.pipeline_mode<synchronous>, transform_indices = @transform_2, window_bounds = array<i64: 1, 256>}, {pipeline_mode = #tpu.pipeline_mode<synchronous>, transform_indices = @transform_3, window_bounds = array<i64: 256, 128>}, {pipeline_mode = #tpu.pipeline_mode<synchronous>, transform_indices = @transform_4, window_bounds = array<i64: 1, 128>}, {pipeline_mode = #tpu.pipeline_mode<synchronous>, transform_indices = @transform_5, window_bounds = array<i64: 128, 256>}, {pipeline_mode = #tpu.pipeline_mode<synchronous>, transform_indices = @transform_6, window_bounds = array<i64: 1, 256>}, {pipeline_mode = #tpu.pipeline_mode<synchronous>, transform_indices = @transform_7, window_bounds = array<i64: 256, 896>}, {pipeline_mode = #tpu.pipeline_mode<synchronous>, transform_indices = @transform_8, window_bounds = array<i64: 1, 896>}, {transform_indices = @transform_9, window_bounds = array<i64: 128, 896>}]} {
    %c0 = arith.constant 0 : index
    %c0_0 = arith.constant 0 : index
    %0 = vector.load %arg1[%c0, %c0_0] : memref<128x784xf32, #tpu.memory_space<vmem>>, vector<128x784xf32>
    %1 = arith.truncf %0 : vector<128x784xf32> to vector<128x784xbf16>
    %c0_1 = arith.constant 0 : index
    %c0_2 = arith.constant 0 : index
    %2 = vector.load %arg2[%c0_1, %c0_2] : memref<784x256xbf16, #tpu.memory_space<vmem>>, vector<784x256xbf16>
    %cst = arith.constant dense<0.000000e+00> : vector<128x256xf32>
    %3 = tpu.matmul %1, %2, %cst {dimension_numbers = #tpu.dot_dimension_numbers<[1], [0], [0], [1], [0, 0, 1, 1], [], []>} : vector<128x784xbf16>, vector<784x256xbf16>, vector<128x256xf32> -> vector<128x256xf32>
    %c0_3 = arith.constant 0 : index
    %c0_4 = arith.constant 0 : index
    %4 = vector.load %arg3[%c0_3, %c0_4] : memref<1x256xf32, #tpu.memory_space<vmem>>, vector<1x256xf32>
    %5 = vector.broadcast %4 : vector<1x256xf32> to vector<128x256xf32>
    %6 = arith.addf %3, %5 : vector<128x256xf32>
    %cst_5 = arith.constant 0.000000e+00 : f32
    %7 = vector.broadcast %cst_5 : f32 to vector<128x256xf32>
    %8 = arith.maximumf %6, %7 : vector<128x256xf32>
    %9 = arith.truncf %8 : vector<128x256xf32> to vector<128x256xbf16>
    %c0_6 = arith.constant 0 : index
    %c0_7 = arith.constant 0 : index
    %10 = vector.load %arg4[%c0_6, %c0_7] : memref<256x128xbf16, #tpu.memory_space<vmem>>, vector<256x128xbf16>
    %cst_8 = arith.constant dense<0.000000e+00> : vector<128x128xf32>
    %11 = tpu.matmul %9, %10, %cst_8 {dimension_numbers = #tpu.dot_dimension_numbers<[1], [0], [0], [1], [0, 0, 1, 1], [], []>} : vector<128x256xbf16>, vector<256x128xbf16>, vector<128x128xf32> -> vector<128x128xf32>
    %c0_9 = arith.constant 0 : index
    %c0_10 = arith.constant 0 : index
    %12 = vector.load %arg5[%c0_9, %c0_10] : memref<1x128xf32, #tpu.memory_space<vmem>>, vector<1x128xf32>
    %13 = vector.broadcast %12 : vector<1x128xf32> to vector<128x128xf32>
    %14 = arith.addf %11, %13 : vector<128x128xf32>
    %cst_11 = arith.constant 0.000000e+00 : f32
    %15 = vector.broadcast %cst_11 : f32 to vector<128x128xf32>
    %16 = arith.maximumf %14, %15 : vector<128x128xf32>
    %17 = arith.truncf %16 : vector<128x128xf32> to vector<128x128xbf16>
    %c0_12 = arith.constant 0 : index
    %c0_13 = arith.constant 0 : index
    %18 = vector.load %arg6[%c0_12, %c0_13] : memref<128x256xbf16, #tpu.memory_space<vmem>>, vector<128x256xbf16>
    %cst_14 = arith.constant dense<0.000000e+00> : vector<128x256xf32>
    %19 = tpu.matmul %17, %18, %cst_14 {dimension_numbers = #tpu.dot_dimension_numbers<[1], [0], [0], [1], [0, 0, 1, 1], [], []>} : vector<128x128xbf16>, vector<128x256xbf16>, vector<128x256xf32> -> vector<128x256xf32>
    %c0_15 = arith.constant 0 : index
    %c0_16 = arith.constant 0 : index
    %20 = vector.load %arg7[%c0_15, %c0_16] : memref<1x256xf32, #tpu.memory_space<vmem>>, vector<1x256xf32>
    %21 = vector.broadcast %20 : vector<1x256xf32> to vector<128x256xf32>
    %22 = arith.addf %19, %21 : vector<128x256xf32>
    %cst_17 = arith.constant 0.000000e+00 : f32
    %23 = vector.broadcast %cst_17 : f32 to vector<128x256xf32>
    %24 = arith.maximumf %22, %23 : vector<128x256xf32>
    %25 = arith.truncf %24 : vector<128x256xf32> to vector<128x256xbf16>
    %c0_18 = arith.constant 0 : index
    %c0_19 = arith.constant 0 : index
    %26 = vector.load %arg8[%c0_18, %c0_19] : memref<256x896xbf16, #tpu.memory_space<vmem>>, vector<256x896xbf16>
    %cst_20 = arith.constant dense<0.000000e+00> : vector<128x896xf32>
    %27 = tpu.matmul %25, %26, %cst_20 {dimension_numbers = #tpu.dot_dimension_numbers<[1], [0], [0], [1], [0, 0, 1, 1], [], []>} : vector<128x256xbf16>, vector<256x896xbf16>, vector<128x896xf32> -> vector<128x896xf32>
    %c0_21 = arith.constant 0 : index
    %c0_22 = arith.constant 0 : index
    %28 = vector.load %arg9[%c0_21, %c0_22] : memref<1x896xf32, #tpu.memory_space<vmem>>, vector<1x896xf32>
    %29 = vector.broadcast %28 : vector<1x896xf32> to vector<128x896xf32>
    %30 = arith.addf %27, %29 : vector<128x896xf32>
    %cst_23 = arith.constant 0.000000e+00 : f32
    %31 = vector.broadcast %cst_23 : f32 to vector<128x896xf32>
    %32 = arith.subf %31, %30 : vector<128x896xf32>
    %33 = math.exp %32 : vector<128x896xf32>
    %cst_24 = arith.constant 1.000000e+00 : f32
    %34 = vector.broadcast %cst_24 : f32 to vector<128x896xf32>
    %35 = arith.addf %34, %33 : vector<128x896xf32>
    %36 = tpu.reciprocal %35 {approx = true} : vector<128x896xf32> -> vector<128x896xf32>
    %c0_25 = arith.constant 0 : index
    %c0_26 = arith.constant 0 : index
    %37 = vector.load %arg10[%c0_25, %c0_26] : memref<128x896xf32, #tpu.memory_space<vmem>>, vector<128x896xf32>
    tpu.vector_store %arg10[%c0_25, %c0_26], %36 {strides = array<i32>} : memref<128x896xf32, #tpu.memory_space<vmem>>, vector<128x896xf32>,
    return
  }
  func.func @transform_0(%arg0: i32) -> (i32, i32) {
    %c0_i32 = arith.constant 0 : i32
    %c0_i32_0 = arith.constant 0 : i32
    return %arg0, %c0_i32 : i32, i32
  }
  func.func @transform_1(%arg0: i32) -> (i32, i32) {
    %c0_i32 = arith.constant 0 : i32
    %c0_i32_0 = arith.constant 0 : i32
    %c0_i32_1 = arith.constant 0 : i32
    return %c0_i32, %c0_i32_0 : i32, i32
  }
  func.func @transform_2(%arg0: i32) -> (i32, i32) {
    %c0_i32 = arith.constant 0 : i32
    %c0_i32_0 = arith.constant 0 : i32
    %c0_i32_1 = arith.constant 0 : i32
    return %c0_i32, %c0_i32_0 : i32, i32
  }
  func.func @transform_3(%arg0: i32) -> (i32, i32) {
    %c0_i32 = arith.constant 0 : i32
    %c0_i32_0 = arith.constant 0 : i32
    %c0_i32_1 = arith.constant 0 : i32
    return %c0_i32, %c0_i32_0 : i32, i32
  }
  func.func @transform_4(%arg0: i32) -> (i32, i32) {
    %c0_i32 = arith.constant 0 : i32
    %c0_i32_0 = arith.constant 0 : i32
    %c0_i32_1 = arith.constant 0 : i32
    return %c0_i32, %c0_i32_0 : i32, i32
  }
  func.func @transform_5(%arg0: i32) -> (i32, i32) {
    %c0_i32 = arith.constant 0 : i32
    %c0_i32_0 = arith.constant 0 : i32
    %c0_i32_1 = arith.constant 0 : i32
    return %c0_i32, %c0_i32_0 : i32, i32
  }
  func.func @transform_6(%arg0: i32) -> (i32, i32) {
    %c0_i32 = arith.constant 0 : i32
    %c0_i32_0 = arith.constant 0 : i32
    %c0_i32_1 = arith.constant 0 : i32
    return %c0_i32, %c0_i32_0 : i32, i32
  }
  func.func @transform_7(%arg0: i32) -> (i32, i32) {
    %c0_i32 = arith.constant 0 : i32
    %c0_i32_0 = arith.constant 0 : i32
    %c0_i32_1 = arith.constant 0 : i32
    return %c0_i32, %c0_i32_0 : i32, i32
  }
  func.func @transform_8(%arg0: i32) -> (i32, i32) {
    %c0_i32 = arith.constant 0 : i32
    %c0_i32_0 = arith.constant 0 : i32
    %c0_i32_1 = arith.constant 0 : i32
    return %c0_i32, %c0_i32_0 : i32, i32
  }
  func.func @transform_9(%arg0: i32) -> (i32, i32) {
    %c0_i32 = arith.constant 0 : i32
    %c0_i32_0 = arith.constant 0 : i32
    return %arg0, %c0_i32 : i32, i32
  }
}

</mosaic_0001>

<llo_original>
// kernel: tpu_custom_call.1
$region0: #{tpu_custom_call.1}
  #allocation0 [shape = 'u32[]', space=smem, size = 0x4, offset = 0x4, fixed_abs, tag = 'smem constant byte address 0x4 - core index']
  #allocation1 [shape = 'u32[144,128]{1,0:T(1,128)}', space=vmem, size = 0x12000, scoped, tag = 'internal scratch']
  %s0 = inlined_call_operand.vmem [shape: f32[256,784], index: 0, kind: input, shape index: {}]
  %s1 = inlined_call_operand.vmem [shape: bf16[784,256], index: 1, kind: input, shape index: {}]
  %s2 = inlined_call_operand.vmem [shape: f32[1,256], index: 2, kind: input, shape index: {}]
  %s3 = inlined_call_operand.vmem [shape: bf16[256,128], index: 3, kind: input, shape index: {}]
  %s4 = inlined_call_operand.vmem [shape: f32[1,128], index: 4, kind: input, shape index: {}]
  %s5 = inlined_call_operand.vmem [shape: bf16[128,256], index: 5, kind: input, shape index: {}]
  %s6 = inlined_call_operand.vmem [shape: f32[1,256], index: 6, kind: input, shape index: {}]
  %s7 = inlined_call_operand.vmem [shape: bf16[256,896], index: 7, kind: input, shape index: {}]
  %s8 = inlined_call_operand.vmem [shape: f32[1,896], index: 8, kind: input, shape index: {}]
  %s9 = inlined_call_operand.hbm [shape: f32[256,896], index: 9, kind: output, shape index: {}]
  %s10 = sld [smem:[#allocation0]]
  $region69: #{tpu_custom_call.1} parent=0
    _
  %s12 = ssub.s32 1, %s10
  %s13 = scalar_select 0, %s12, %s10
  $region1: #{tpu_custom_call.1} parent=0
    #allocation2 [shape = 'u8[917504]{0}', space=vmem, size = 0xe0000, scoped, tag = 'output window, operand 0']
    #allocation3 [shape = 's32[2]{0}', space=sflag, size = 0x8, scoped, tag = 'scoped memory for tpu_custom_call.1']
    %14 = vsyncpa [#allocation3], 0
    %s15 = scalar_lea.sflag [#allocation3], 1
    %16 = vsyncpa %s15, 0
    loop: start=0, step=1, limit=4
    $region2: #{tpu_custom_call.1} parent=1 // loop_pre_header
      _
    $region3: #{tpu_custom_call.1} parent=1 // loop_header
      %s18 = sphi 0, %s22
      %p19 = scmp.ge.s32.totalorder %s18, 4
      %s28 = sphi 0, %s30
      %s31 = sphi 0, %s28
      %s32 = sphi 0, %s31
      %s48 = sphi 0, %s32
      %s52 = sphi 0, %s52
      %s54 = sphi 0, %s52
      %s55 = sphi 0, %s54
      %s69 = sphi 0, %s55
      %s73 = sphi 0, %s73
      %s75 = sphi 0, %s73
      %s76 = sphi 0, %s75
      %s90 = sphi 0, %s76
      %s94 = sphi 0, %s94
      %s96 = sphi 0, %s94
      %s97 = sphi 0, %s96
      %s111 = sphi 0, %s97
      %s115 = sphi 0, %s115
      %s117 = sphi 0, %s115
      %s118 = sphi 0, %s117
      %s132 = sphi 0, %s118
      %s136 = sphi 0, %s136
      %s138 = sphi 0, %s136
      %s139 = sphi 0, %s138
      %s153 = sphi 0, %s139
      %s157 = sphi 0, %s157
      %s159 = sphi 0, %s157
      %s160 = sphi 0, %s159
      %s174 = sphi 0, %s160
      %s178 = sphi 0, %s178
      %s180 = sphi 0, %s178
      %s181 = sphi 0, %s180
      %s195 = sphi 0, %s181
      %s199 = sphi 0, %s199
      %s201 = sphi 0, %s199
      %s202 = sphi 0, %s201
      %s216 = sphi 0, %s202
      %s222 = sphi 0, %s224
      %s225 = sphi 0, %s222
      %s226 = sphi 0, %s225
      %s242 = sphi 0, %s226
    $region4: #{tpu_custom_call.1} parent=1 // loop_header_branch
      %21 = sbr.rel (%p19) target = $region8
    $region5: #{tpu_custom_call.1} parent=1 // loop_body
      %s23 = ssub.s32 %s18, 1
      %s24 = ssub.s32 %s18, 2
      %s25 = sadd.s32 %s18, 1
      %s26 = ssub.s32 %s18, %s25
      %p27 = scmp.eq.s32.totalorder %s26, 0
      %s29 = sadd.s32 %s28, 1
      %s30 = scalar_select %p27, %s28, %s29
      %p33 = pneg %p27
      %p34 = scmp.eq.s32.totalorder %s18, 1
      %p35 = por %p33, %p34
      %p36 = scmp.ne.s32.totalorder %s28, %s31
      %p37 = scmp.eq.s32.totalorder %s18, 0
      %p38 = por %p36, %p37
      %p39 = scmp.ne.s32.totalorder %s28, %s31
      %p40 = scmp.eq.s32.totalorder %s23, 1
      %p41 = por %p39, %p40
      %p42 = scmp.ne.s32.totalorder %s31, %s32
      %p43 = scmp.eq.s32.totalorder %s23, 0
      %p44 = por %p42, %p43
      %p45 = scmp.ne.s32.totalorder %s31, %s32
      %p46 = scmp.eq.s32.totalorder %s24, 1
      %p47 = por %p45, %p46
      %p49 = scmp.ne.s32.totalorder %s32, %s48
      %p50 = scmp.eq.s32.totalorder %s24, 0
      %p51 = por %p49, %p50
      %s53 = sadd.s32 %s52, 1
      %p56 = scmp.eq.s32.totalorder %s18, 1
      %p57 = scmp.ne.s32.totalorder %s52, %s54
      %p58 = scmp.eq.s32.totalorder %s18, 0
      %p59 = por %p57, %p58
      %p60 = scmp.ne.s32.totalorder %s52, %s54
      %p61 = scmp.eq.s32.totalorder %s23, 1
      %p62 = por %p60, %p61
      %p63 = scmp.ne.s32.totalorder %s54, %s55
      %p64 = scmp.eq.s32.totalorder %s23, 0
      %p65 = por %p63, %p64
      %p66 = scmp.ne.s32.totalorder %s54, %s55
      %p67 = scmp.eq.s32.totalorder %s24, 1
      %p68 = por %p66, %p67
      %p70 = scmp.ne.s32.totalorder %s55, %s69
      %p71 = scmp.eq.s32.totalorder %s24, 0
      %p72 = por %p70, %p71
      %s74 = sadd.s32 %s73, 1
      %p77 = scmp.eq.s32.totalorder %s18, 1
      %p78 = scmp.ne.s32.totalorder %s73, %s75
      %p79 = scmp.eq.s32.totalorder %s18, 0
      %p80 = por %p78, %p79
      %p81 = scmp.ne.s32.totalorder %s73, %s75
      %p82 = scmp.eq.s32.totalorder %s23, 1
      %p83 = por %p81, %p82
      %p84 = scmp.ne.s32.totalorder %s75, %s76
      %p85 = scmp.eq.s32.totalorder %s23, 0
      %p86 = por %p84, %p85
      %p87 = scmp.ne.s32.totalorder %s75, %s76
      %p88 = scmp.eq.s32.totalorder %s24, 1
      %p89 = por %p87, %p88
      %p91 = scmp.ne.s32.totalorder %s76, %s90
      %p92 = scmp.eq.s32.totalorder %s24, 0
      %p93 = por %p91, %p92
      %s95 = sadd.s32 %s94, 1
      %p98 = scmp.eq.s32.totalorder %s18, 1
      %p99 = scmp.ne.s32.totalorder %s94, %s96
      %p100 = scmp.eq.s32.totalorder %s18, 0
      %p101 = por %p99, %p100
      %p102 = scmp.ne.s32.totalorder %s94, %s96
      %p103 = scmp.eq.s32.totalorder %s23, 1
      %p104 = por %p102, %p103
      %p105 = scmp.ne.s32.totalorder %s96, %s97
      %p106 = scmp.eq.s32.totalorder %s23, 0
      %p107 = por %p105, %p106
      %p108 = scmp.ne.s32.totalorder %s96, %s97
      %p109 = scmp.eq.s32.totalorder %s24, 1
      %p110 = por %p108, %p109
      %p112 = scmp.ne.s32.totalorder %s97, %s111
      %p113 = scmp.eq.s32.totalorder %s24, 0
      %p114 = por %p112, %p113
      %s116 = sadd.s32 %s115, 1
      %p119 = scmp.eq.s32.totalorder %s18, 1
      %p120 = scmp.ne.s32.totalorder %s115, %s117
      %p121 = scmp.eq.s32.totalorder %s18, 0
      %p122 = por %p120, %p121
      %p123 = scmp.ne.s32.totalorder %s115, %s117
      %p124 = scmp.eq.s32.totalorder %s23, 1
      %p125 = por %p123, %p124
      %p126 = scmp.ne.s32.totalorder %s117, %s118
      %p127 = scmp.eq.s32.totalorder %s23, 0
      %p128 = por %p126, %p127
      %p129 = scmp.ne.s32.totalorder %s117, %s118
      %p130 = scmp.eq.s32.totalorder %s24, 1
      %p131 = por %p129, %p130
      %p133 = scmp.ne.s32.totalorder %s118, %s132
      %p134 = scmp.eq.s32.totalorder %s24, 0
      %p135 = por %p133, %p134
      %s137 = sadd.s32 %s136, 1
      %p140 = scmp.eq.s32.totalorder %s18, 1
      %p141 = scmp.ne.s32.totalorder %s136, %s138
      %p142 = scmp.eq.s32.totalorder %s18, 0
      %p143 = por %p141, %p142
      %p144 = scmp.ne.s32.totalorder %s136, %s138
      %p145 = scmp.eq.s32.totalorder %s23, 1
      %p146 = por %p144, %p145
      %p147 = scmp.ne.s32.totalorder %s138, %s139
      %p148 = scmp.eq.s32.totalorder %s23, 0
      %p149 = por %p147, %p148
      %p150 = scmp.ne.s32.totalorder %s138, %s139
      %p151 = scmp.eq.s32.totalorder %s24, 1
      %p152 = por %p150, %p151
      %p154 = scmp.ne.s32.totalorder %s139, %s153
      %p155 = scmp.eq.s32.totalorder %s24, 0
      %p156 = por %p154, %p155
      %s158 = sadd.s32 %s157, 1
      %p161 = scmp.eq.s32.totalorder %s18, 1
      %p162 = scmp.ne.s32.totalorder %s157, %s159
      %p163 = scmp.eq.s32.totalorder %s18, 0
      %p164 = por %p162, %p163
      %p165 = scmp.ne.s32.totalorder %s157, %s159
      %p166 = scmp.eq.s32.totalorder %s23, 1
      %p167 = por %p165, %p166
      %p168 = scmp.ne.s32.totalorder %s159, %s160
      %p169 = scmp.eq.s32.totalorder %s23, 0
      %p170 = por %p168, %p169
      %p171 = scmp.ne.s32.totalorder %s159, %s160
      %p172 = scmp.eq.s32.totalorder %s24, 1
      %p173 = por %p171, %p172
      %p175 = scmp.ne.s32.totalorder %s160, %s174
      %p176 = scmp.eq.s32.totalorder %s24, 0
      %p177 = por %p175, %p176
      %s179 = sadd.s32 %s178, 1
      %p182 = scmp.eq.s32.totalorder %s18, 1
      %p183 = scmp.ne.s32.totalorder %s178, %s180
      %p184 = scmp.eq.s32.totalorder %s18, 0
      %p185 = por %p183, %p184
      %p186 = scmp.ne.s32.totalorder %s178, %s180
      %p187 = scmp.eq.s32.totalorder %s23, 1
      %p188 = por %p186, %p187
      %p189 = scmp.ne.s32.totalorder %s180, %s181
      %p190 = scmp.eq.s32.totalorder %s23, 0
      %p191 = por %p189, %p190
      %p192 = scmp.ne.s32.totalorder %s180, %s181
      %p193 = scmp.eq.s32.totalorder %s24, 1
      %p194 = por %p192, %p193
      %p196 = scmp.ne.s32.totalorder %s181, %s195
      %p197 = scmp.eq.s32.totalorder %s24, 0
      %p198 = por %p196, %p197
      %s200 = sadd.s32 %s199, 1
      %p203 = scmp.eq.s32.totalorder %s18, 1
      %p204 = scmp.ne.s32.totalorder %s199, %s201
      %p205 = scmp.eq.s32.totalorder %s18, 0
      %p206 = por %p204, %p205
      %p207 = scmp.ne.s32.totalorder %s199, %s201
      %p208 = scmp.eq.s32.totalorder %s23, 1
      %p209 = por %p207, %p208
      %p210 = scmp.ne.s32.totalorder %s201, %s202
      %p211 = scmp.eq.s32.totalorder %s23, 0
      %p212 = por %p210, %p211
      %p213 = scmp.ne.s32.totalorder %s201, %s202
      %p214 = scmp.eq.s32.totalorder %s24, 1
      %p215 = por %p213, %p214
      %p217 = scmp.ne.s32.totalorder %s202, %s216
      %p218 = scmp.eq.s32.totalorder %s24, 0
      %p219 = por %p217, %p218
      %s220 = ssub.s32 %s18, %s25
      %p221 = scmp.eq.s32.totalorder %s220, 0
      %s223 = sadd.s32 %s222, 1
      %s224 = scalar_select %p221, %s222, %s223
      %p227 = pneg %p221
      %p228 = scmp.eq.s32.totalorder %s18, 1
      %p229 = por %p227, %p228
      %p230 = scmp.ne.s32.totalorder %s222, %s225
      %p231 = scmp.eq.s32.totalorder %s18, 0
      %p232 = por %p230, %p231
      %p233 = scmp.ne.s32.totalorder %s222, %s225
      %p234 = scmp.eq.s32.totalorder %s23, 1
      %p235 = por %p233, %p234
      %p236 = scmp.ne.s32.totalorder %s225, %s226
      %p237 = scmp.eq.s32.totalorder %s23, 0
      %p238 = por %p236, %p237
      %p239 = scmp.ne.s32.totalorder %s225, %s226
      %p240 = scmp.eq.s32.totalorder %s24, 1
      %p241 = por %p239, %p240
      %p243 = scmp.ne.s32.totalorder %s226, %s242
      %p244 = scmp.eq.s32.totalorder %s24, 0
      %p245 = por %p243, %p244
      %p246 = scmp.le.s32.totalorder 1, %s18
      %p247 = scmp.lt.s32.totalorder %s18, 3
      %p248 = pnand %p246, %p247
      %p249 = pneg %p248
      // Predicated region
      $region9: #{tpu_custom_call.1} parent=5 // pred_check
        _
      $region10: #{tpu_custom_call.1} parent=5 // pred_check_branch
        %251 = sbr.rel (%p248) target = $region12
      $region11: #{tpu_custom_call.1} parent=5 // pred_region
        %s252 = ssub.s32 %s18, 1
        // Predicated region
        $region13: #{tpu_custom_call.1} parent=11 // pred_check
          %p253 = pneg %p65
        $region14: #{tpu_custom_call.1} parent=11 // pred_check_branch
          %255 = sbr.rel (%p253) target = $region16
        $region15: #{tpu_custom_call.1} parent=11 // pred_region
          _
        $region16: #{tpu_custom_call.1} parent=11 // pred_fallthru
          _
        // Predicated region
        $region17: #{tpu_custom_call.1} parent=11 // pred_check
          %p256 = pneg %p86
        $region18: #{tpu_custom_call.1} parent=11 // pred_check_branch
          %258 = sbr.rel (%p256) target = $region20
        $region19: #{tpu_custom_call.1} parent=11 // pred_region
          _
        $region20: #{tpu_custom_call.1} parent=11 // pred_fallthru
          _
        // Predicated region
        $region21: #{tpu_custom_call.1} parent=11 // pred_check
          %p259 = pneg %p107
        $region22: #{tpu_custom_call.1} parent=11 // pred_check_branch
          %261 = sbr.rel (%p259) target = $region24
        $region23: #{tpu_custom_call.1} parent=11 // pred_region
          _
        $region24: #{tpu_custom_call.1} parent=11 // pred_fallthru
          _
        // Predicated region
        $region25: #{tpu_custom_call.1} parent=11 // pred_check
          %p262 = pneg %p128
        $region26: #{tpu_custom_call.1} parent=11 // pred_check_branch
          %264 = sbr.rel (%p262) target = $region28
        $region27: #{tpu_custom_call.1} parent=11 // pred_region
          _
        $region28: #{tpu_custom_call.1} parent=11 // pred_fallthru
          _
        // Predicated region
        $region29: #{tpu_custom_call.1} parent=11 // pred_check
          %p265 = pneg %p149
        $region30: #{tpu_custom_call.1} parent=11 // pred_check_branch
          %267 = sbr.rel (%p265) target = $region32
        $region31: #{tpu_custom_call.1} parent=11 // pred_region
          _
        $region32: #{tpu_custom_call.1} parent=11 // pred_fallthru
          _
        // Predicated region
        $region33: #{tpu_custom_call.1} parent=11 // pred_check
          %p268 = pneg %p170
        $region34: #{tpu_custom_call.1} parent=11 // pred_check_branch
          %270 = sbr.rel (%p268) target = $region36
        $region35: #{tpu_custom_call.1} parent=11 // pred_region
          _
        $region36: #{tpu_custom_call.1} parent=11 // pred_fallthru
          _
        // Predicated region
        $region37: #{tpu_custom_call.1} parent=11 // pred_check
          %p271 = pneg %p191
        $region38: #{tpu_custom_call.1} parent=11 // pred_check_branch
          %273 = sbr.rel (%p271) target = $region40
        $region39: #{tpu_custom_call.1} parent=11 // pred_region
          _
        $region40: #{tpu_custom_call.1} parent=11 // pred_fallthru
          _
        // Predicated region
        $region41: #{tpu_custom_call.1} parent=11 // pred_check
          %p274 = pneg %p212
        $region42: #{tpu_custom_call.1} parent=11 // pred_check_branch
          %276 = sbr.rel (%p274) target = $region44
        $region43: #{tpu_custom_call.1} parent=11 // pred_region
          _
        $region44: #{tpu_custom_call.1} parent=11 // pred_fallthru
          _
      $region12: #{tpu_custom_call.1} parent=5 // pred_fallthru
        _
      %p277 = scmp.lt.s32.totalorder %s18, 2
      // Predicated region
      $region45: #{tpu_custom_call.1} parent=5 // pred_check
        %p278 = pneg %p277
      $region46: #{tpu_custom_call.1} parent=5 // pred_check_branch
        %280 = sbr.rel (%p278) target = $region48
      $region47: #{tpu_custom_call.1} parent=5 // pred_region
        // Predicated region
        $region49: #{tpu_custom_call.1} parent=47 // pred_check
          %p281 = pneg %p38
        $region50: #{tpu_custom_call.1} parent=47 // pred_check_branch
          %283 = sbr.rel (%p281) target = $region52
        $region51: #{tpu_custom_call.1} parent=47 // pred_region
          %s284 = smul.u32 16, %s18
          %p285 = scmp.lt.s32.totalorder %s284, 31
          %s286 = scalar_select %p285, %s284, 31
          %s287 = smul.addr %s286, 7
          %s288 = smul.addr %s287, 8
          %s289 = scalar_lea.vmem %s0, %s288
          %s290 = smul.u32 16, %s18
        $region52: #{tpu_custom_call.1} parent=47 // pred_fallthru
          _
      $region48: #{tpu_custom_call.1} parent=5 // pred_fallthru
        _
      %p291 = scmp.le.s32.totalorder 1, %s18
      %p292 = scmp.lt.s32.totalorder %s18, 3
      %p293 = pnand %p291, %p292
      %p294 = pneg %p293
      // Predicated region
      $region53: #{tpu_custom_call.1} parent=5 // pred_check
        _
      $region54: #{tpu_custom_call.1} parent=5 // pred_check_branch
        %296 = sbr.rel (%p293) target = $region56
      $region55: #{tpu_custom_call.1} parent=5 // pred_region
        %s297 = ssub.s32 %s18, 1
        %s298 = smul.u32 16, %s23
        %p299 = scmp.lt.s32.totalorder %s298, 31
        %s300 = scalar_select %p299, %s298, 31
        %s301 = smul.addr %s300, 7
        %s302 = smul.addr %s301, 8
        %s303 = scalar_lea.vmem %s0, %s302
        %p304 = pneg %p44
        %p305 = pneg %p41
        %p306 = pneg %p65
        %p307 = pneg %p62
        %p308 = pneg %p86
        %p309 = pneg %p83
        %p310 = pneg %p107
        %p311 = pneg %p104
        %p312 = pneg %p128
        %p313 = pneg %p125
        %p314 = pneg %p149
        %p315 = pneg %p146
        %p316 = pneg %p170
        %p317 = pneg %p167
        %p318 = pneg %p191
        %p319 = pneg %p188
        %p320 = pneg %p212
        %p321 = pneg %p209
        %p322 = pneg %p238
        %p323 = pneg %p235
        %s324 = sand.u32 %s225, 1
        %s325 = scalar_lea.sflag [#allocation3], %s324
        %s326 = sand.u32 %s225, 1
        %s327 = smul.addr %s326, 896
        %s328 = scalar_lea.vmem [#allocation2], %s327
        %s329 = smul.u32 16, %s23
        %p330 = scmp.lt.s32.totalorder %s329, 31
        %s331 = scalar_select %p330, %s329, 31
        %s332 = smul.addr %s331, 7
        %s333 = smul.addr %s332, 8
        %s334 = scalar_lea.vmem %s0, %s333
        %s335 = smul.u32 16, %s23
        %s336 = smul.u32 16, %s23
        %v338 = vld [vmem:[%s334] sm:$0xff]
        %v339 = vld [vmem:[%s334 + $0x8] sm:$0xff]
        %v340 = vld [vmem:[%s334 + $0x10] sm:$0xff]
        %v341 = vld [vmem:[%s334 + $0x18] sm:$0xff]
        %v342 = vld [vmem:[%s334 + $0x20] sm:$0xff]
        %v343 = vld [vmem:[%s334 + $0x28] sm:$0xff]
        %v344 = vld [vmem:[%s334 + $0x30] sm:$0xff]
        %v345 = vld [vmem:[%s334 + $0x38] sm:$0xff]
        %v346 = vld [vmem:[%s334 + $0x40] sm:$0xff]
        %v347 = vld [vmem:[%s334 + $0x48] sm:$0xff]
        %v348 = vld [vmem:[%s334 + $0x50] sm:$0xff]
        %v349 = vld [vmem:[%s334 + $0x58] sm:$0xff]
        %v350 = vld [vmem:[%s334 + $0x60] sm:$0xff]
        %v351 = vld [vmem:[%s334 + $0x68] sm:$0xff]
        %v352 = vld [vmem:[%s334 + $0x70] sm:$0xff]
        %v353 = vld [vmem:[%s334 + $0x78] sm:$0xff]
        %v354 = vld [vmem:[%s334 + $0x80] sm:$0xff]
        %v355 = vld [vmem:[%s334 + $0x88] sm:$0xff]
        %v356 = vld [vmem:[%s334 + $0x90] sm:$0xff]
        %v357 = vld [vmem:[%s334 + $0x98] sm:$0xff]
        %v358 = vld [vmem:[%s334 + $0xa0] sm:$0xff]
        %v359 = vld [vmem:[%s334 + $0xa8] sm:$0xff]
        %v360 = vld [vmem:[%s334 + $0xb0] sm:$0xff]
        %v361 = vld [vmem:[%s334 + $0xb8] sm:$0xff]
        %v362 = vld [vmem:[%s334 + $0xc0] sm:$0xff]
        %v363 = vld [vmem:[%s334 + $0xc8] sm:$0xff]
        %v364 = vld [vmem:[%s334 + $0xd0] sm:$0xff]
        %v365 = vld [vmem:[%s334 + $0xd8] sm:$0xff]
        %v366 = vld [vmem:[%s334 + $0xe0] sm:$0xff]
        %v367 = vld [vmem:[%s334 + $0xe8] sm:$0xff]
        %v368 = vld [vmem:[%s334 + $0xf0] sm:$0xff]
        %v369 = vld [vmem:[%s334 + $0xf8] sm:$0xff]
        %v370 = vld [vmem:[%s334 + $0x100] sm:$0xff]
        %v371 = vld [vmem:[%s334 + $0x108] sm:$0xff]
        %v372 = vld [vmem:[%s334 + $0x110] sm:$0xff]
        %v373 = vld [vmem:[%s334 + $0x118] sm:$0xff]
        %v374 = vld [vmem:[%s334 + $0x120] sm:$0xff]
        %v375 = vld [vmem:[%s334 + $0x128] sm:$0xff]
        %v376 = vld [vmem:[%s334 + $0x130] sm:$0xff]
        %v377 = vld [vmem:[%s334 + $0x138] sm:$0xff]
        %v378 = vld [vmem:[%s334 + $0x140] sm:$0xff]
        %v379 = vld [vmem:[%s334 + $0x148] sm:$0xff]
        %v380 = vld [vmem:[%s334 + $0x150] sm:$0xff]
        %v381 = vld [vmem:[%s334 + $0x158] sm:$0xff]
        %v382 = vld [vmem:[%s334 + $0x160] sm:$0xff]
        %v383 = vld [vmem:[%s334 + $0x168] sm:$0xff]
        %v384 = vld [vmem:[%s334 + $0x170] sm:$0xff]
        %v385 = vld [vmem:[%s334 + $0x178] sm:$0xff]
        %v386 = vld [vmem:[%s334 + $0x180] sm:$0xff]
        %v387 = vld [vmem:[%s334 + $0x188] sm:$0xff]
        %v388 = vld [vmem:[%s334 + $0x190] sm:$0xff]
        %v389 = vld [vmem:[%s334 + $0x198] sm:$0xff]
        %v390 = vld [vmem:[%s334 + $0x1a0] sm:$0xff]
        %v391 = vld [vmem:[%s334 + $0x1a8] sm:$0xff]
        %v392 = vld [vmem:[%s334 + $0x1b0] sm:$0xff]
        %v393 = vld [vmem:[%s334 + $0x1b8] sm:$0xff]
        %v394 = vld [vmem:[%s334 + $0x1c0] sm:$0xff]
        %v395 = vld [vmem:[%s334 + $0x1c8] sm:$0xff]
        %v396 = vld [vmem:[%s334 + $0x1d0] sm:$0xff]
        %v397 = vld [vmem:[%s334 + $0x1d8] sm:$0xff]
        %v398 = vld [vmem:[%s334 + $0x1e0] sm:$0xff]
        %v399 = vld [vmem:[%s334 + $0x1e8] sm:$0xff]
        %v400 = vld [vmem:[%s334 + $0x1f0] sm:$0xff]
        %v401 = vld [vmem:[%s334 + $0x1f8] sm:$0xff]
        %v402 = vld [vmem:[%s334 + $0x200] sm:$0xff]
        %v403 = vld [vmem:[%s334 + $0x208] sm:$0xff]
        %v404 = vld [vmem:[%s334 + $0x210] sm:$0xff]
        %v405 = vld [vmem:[%s334 + $0x218] sm:$0xff]
        %v406 = vld [vmem:[%s334 + $0x220] sm:$0xff]
        %v407 = vld [vmem:[%s334 + $0x228] sm:$0xff]
        %v408 = vld [vmem:[%s334 + $0x230] sm:$0xff]
        %v409 = vld [vmem:[%s334 + $0x238] sm:$0xff]
        %v410 = vld [vmem:[%s334 + $0x240] sm:$0xff]
        %v411 = vld [vmem:[%s334 + $0x248] sm:$0xff]
        %v412 = vld [vmem:[%s334 + $0x250] sm:$0xff]
        %v413 = vld [vmem:[%s334 + $0x258] sm:$0xff]
        %v414 = vld [vmem:[%s334 + $0x260] sm:$0xff]
        %v415 = vld [vmem:[%s334 + $0x268] sm:$0xff]
        %v416 = vld [vmem:[%s334 + $0x270] sm:$0xff]
        %v417 = vld [vmem:[%s334 + $0x278] sm:$0xff]
        %v418 = vld [vmem:[%s334 + $0x280] sm:$0xff]
        %v419 = vld [vmem:[%s334 + $0x288] sm:$0xff]
        %v420 = vld [vmem:[%s334 + $0x290] sm:$0xff]
        %v421 = vld [vmem:[%s334 + $0x298] sm:$0xff]
        %v422 = vld [vmem:[%s334 + $0x2a0] sm:$0xff]
        %v423 = vld [vmem:[%s334 + $0x2a8] sm:$0xff]
        %v424 = vld [vmem:[%s334 + $0x2b0] sm:$0xff]
        %v425 = vld [vmem:[%s334 + $0x2b8] sm:$0xff]
        %v426 = vld [vmem:[%s334 + $0x2c0] sm:$0xff]
        %v427 = vld [vmem:[%s334 + $0x2c8] sm:$0xff]
        %v428 = vld [vmem:[%s334 + $0x2d0] sm:$0xff]
        %v429 = vld [vmem:[%s334 + $0x2d8] sm:$0xff]
        %v430 = vld [vmem:[%s334 + $0x2e0] sm:$0xff]
        %v431 = vld [vmem:[%s334 + $0x2e8] sm:$0xff]
        %v432 = vld [vmem:[%s334 + $0x2f0] sm:$0xff]
        %v433 = vld [vmem:[%s334 + $0x2f8] sm:$0xff]
        %v434 = vld [vmem:[%s334 + $0x300] sm:$0xff]
        %v435 = vld [vmem:[%s334 + $0x308] sm:$0xff]
        %v436 = vld [vmem:[%s334 + $0x310] sm:$0xff]
        %v437 = vld [vmem:[%s334 + $0x318] sm:$0xff]
        %v438 = vld [vmem:[%s334 + $0x320] sm:$0xff]
        %v439 = vld [vmem:[%s334 + $0x328] sm:$0xff]
        %v440 = vld [vmem:[%s334 + $0x330] sm:$0xff]
        %v441 = vld [vmem:[%s334 + $0x338] sm:$0xff]
        %v442 = vld [vmem:[%s334 + $0x340] sm:$0xff]
        %v443 = vld [vmem:[%s334 + $0x348] sm:$0xff]
        %v444 = vld [vmem:[%s334 + $0x350] sm:$0xff]
        %v445 = vld [vmem:[%s334 + $0x358] sm:$0xff]
        %v446 = vld [vmem:[%s334 + $0x360] sm:$0xff]
        %v447 = vld [vmem:[%s334 + $0x368] sm:$0xff]
        %v448 = vld [vmem:[%s334 + $0x370] sm:$0xff]
        %v449 = vld [vmem:[%s334 + $0x378] sm:$0xff]
        %v450 = vpack.c.bf16 %v345, %v338
        %v451 = vpack.c.bf16 %v346, %v339
        %v452 = vpack.c.bf16 %v347, %v340
        %v453 = vpack.c.bf16 %v348, %v341
        %v454 = vpack.c.bf16 %v349, %v342
        %v455 = vpack.c.bf16 %v350, %v343
        %v456 = vpack.c.bf16 %v351, %v344
        %v457 = vpack.c.bf16 %v359, %v352
        %v458 = vpack.c.bf16 %v360, %v353
        %v459 = vpack.c.bf16 %v361, %v354
        %v460 = vpack.c.bf16 %v362, %v355
        %v461 = vpack.c.bf16 %v363, %v356
        %v462 = vpack.c.bf16 %v364, %v357
        %v463 = vpack.c.bf16 %v365, %v358
        %v464 = vpack.c.bf16 %v373, %v366
        %v465 = vpack.c.bf16 %v374, %v367
        %v466 = vpack.c.bf16 %v375, %v368
        %v467 = vpack.c.bf16 %v376, %v369
        %v468 = vpack.c.bf16 %v377, %v370
        %v469 = vpack.c.bf16 %v378, %v371
        %v470 = vpack.c.bf16 %v379, %v372
        %v471 = vpack.c.bf16 %v387, %v380
        %v472 = vpack.c.bf16 %v388, %v381
        %v473 = vpack.c.bf16 %v389, %v382
        %v474 = vpack.c.bf16 %v390, %v383
        %v475 = vpack.c.bf16 %v391, %v384
        %v476 = vpack.c.bf16 %v392, %v385
        %v477 = vpack.c.bf16 %v393, %v386
        %v478 = vpack.c.bf16 %v401, %v394
        %v479 = vpack.c.bf16 %v402, %v395
        %v480 = vpack.c.bf16 %v403, %v396
        %v481 = vpack.c.bf16 %v404, %v397
        %v482 = vpack.c.bf16 %v405, %v398
        %v483 = vpack.c.bf16 %v406, %v399
        %v484 = vpack.c.bf16 %v407, %v400
        %v485 = vpack.c.bf16 %v415, %v408
        %v486 = vpack.c.bf16 %v416, %v409
        %v487 = vpack.c.bf16 %v417, %v410
        %v488 = vpack.c.bf16 %v418, %v411
        %v489 = vpack.c.bf16 %v419, %v412
        %v490 = vpack.c.bf16 %v420, %v413
        %v491 = vpack.c.bf16 %v421, %v414
        %v492 = vpack.c.bf16 %v429, %v422
        %v493 = vpack.c.bf16 %v430, %v423
        %v494 = vpack.c.bf16 %v431, %v424
        %v495 = vpack.c.bf16 %v432, %v425
        %v496 = vpack.c.bf16 %v433, %v426
        %v497 = vpack.c.bf16 %v434, %v427
        %v498 = vpack.c.bf16 %v435, %v428
        %v499 = vpack.c.bf16 %v443, %v436
        %v500 = vpack.c.bf16 %v444, %v437
        %v501 = vpack.c.bf16 %v445, %v438
        %v502 = vpack.c.bf16 %v446, %v439
        %v503 = vpack.c.bf16 %v447, %v440
        %v504 = vpack.c.bf16 %v448, %v441
        %v505 = vpack.c.bf16 %v449, %v442
        %v506 = vld [vmem:[%s1] sm:$0xff]
        %v507 = vld [vmem:[%s1 + $0x8] sm:$0xff]
        %v508 = vld [vmem:[%s1 + $0x10] sm:$0xff]
        %v509 = vld [vmem:[%s1 + $0x18] sm:$0xff]
        %v510 = vld [vmem:[%s1 + $0x20] sm:$0xff]
        %v511 = vld [vmem:[%s1 + $0x28] sm:$0xff]
        %v512 = vld [vmem:[%s1 + $0x30] sm:$0xff]
        %v513 = vld [vmem:[%s1 + $0x38] sm:$0xff]
        %v514 = vld [vmem:[%s1 + $0x40] sm:$0xff]
        %v515 = vld [vmem:[%s1 + $0x48] sm:$0xff]
        %v516 = vld [vmem:[%s1 + $0x50] sm:$0xff]
        %v517 = vld [vmem:[%s1 + $0x58] sm:$0xff]
        %v518 = vld [vmem:[%s1 + $0x60] sm:$0xff]
        %v519 = vld [vmem:[%s1 + $0x68] sm:$0xff]
        %v520 = vld [vmem:[%s1 + $0x70] sm:$0xff]
        %v521 = vld [vmem:[%s1 + $0x78] sm:$0xff]
        %v522 = vld [vmem:[%s1 + $0x80] sm:$0xff]
        %v523 = vld [vmem:[%s1 + $0x88] sm:$0xff]
        %v524 = vld [vmem:[%s1 + $0x90] sm:$0xff]
        %v525 = vld [vmem:[%s1 + $0x98] sm:$0xff]
        %v526 = vld [vmem:[%s1 + $0xa0] sm:$0xff]
        %v527 = vld [vmem:[%s1 + $0xa8] sm:$0xff]
        %v528 = vld [vmem:[%s1 + $0xb0] sm:$0xff]
        %v529 = vld [vmem:[%s1 + $0xb8] sm:$0xff]
        %v530 = vld [vmem:[%s1 + $0xc0] sm:$0xff]
        %v531 = vld [vmem:[%s1 + $0xc8] sm:$0xff]
        %v532 = vld [vmem:[%s1 + $0xd0] sm:$0xff]
        %v533 = vld [vmem:[%s1 + $0xd8] sm:$0xff]
        %v534 = vld [vmem:[%s1 + $0xe0] sm:$0xff]
        %v535 = vld [vmem:[%s1 + $0xe8] sm:$0xff]
        %v536 = vld [vmem:[%s1 + $0xf0] sm:$0xff]
        %v537 = vld [vmem:[%s1 + $0xf8] sm:$0xff]
        %v538 = vld [vmem:[%s1 + $0x100] sm:$0xff]
        %v539 = vld [vmem:[%s1 + $0x108] sm:$0xff]
        %v540 = vld [vmem:[%s1 + $0x110] sm:$0xff]
        %v541 = vld [vmem:[%s1 + $0x118] sm:$0xff]
        %v542 = vld [vmem:[%s1 + $0x120] sm:$0xff]
        %v543 = vld [vmem:[%s1 + $0x128] sm:$0xff]
        %v544 = vld [vmem:[%s1 + $0x130] sm:$0xff]
        %v545 = vld [vmem:[%s1 + $0x138] sm:$0xff]
        %v546 = vld [vmem:[%s1 + $0x140] sm:$0xff]
        %v547 = vld [vmem:[%s1 + $0x148] sm:$0xff]
        %v548 = vld [vmem:[%s1 + $0x150] sm:$0xff]
        %v549 = vld [vmem:[%s1 + $0x158] sm:$0xff]
        %v550 = vld [vmem:[%s1 + $0x160] sm:$0xff]
        %v551 = vld [vmem:[%s1 + $0x168] sm:$0xff]
        %v552 = vld [vmem:[%s1 + $0x170] sm:$0xff]
        %v553 = vld [vmem:[%s1 + $0x178] sm:$0xff]
        %v554 = vld [vmem:[%s1 + $0x180] sm:$0xff]
        %v555 = vld [vmem:[%s1 + $0x188] sm:$0xff]
        %v556 = vld [vmem:[%s1 + $0x190] sm:$0xff]
        %v557 = vld [vmem:[%s1 + $0x198] sm:$0xff]
        %v558 = vld [vmem:[%s1 + $0x1a0] sm:$0xff]
        %v559 = vld [vmem:[%s1 + $0x1a8] sm:$0xff]
        %v560 = vld [vmem:[%s1 + $0x1b0] sm:$0xff]
        %v561 = vld [vmem:[%s1 + $0x1b8] sm:$0xff]
        %v562 = vld [vmem:[%s1 + $0x1c0] sm:$0xff]
        %v563 = vld [vmem:[%s1 + $0x1c8] sm:$0xff]
        %v564 = vld [vmem:[%s1 + $0x1d0] sm:$0xff]
        %v565 = vld [vmem:[%s1 + $0x1d8] sm:$0xff]
        %v566 = vld [vmem:[%s1 + $0x1e0] sm:$0xff]
        %v567 = vld [vmem:[%s1 + $0x1e8] sm:$0xff]
        %v568 = vld [vmem:[%s1 + $0x1f0] sm:$0xff]
        %v569 = vld [vmem:[%s1 + $0x1f8] sm:$0xff]
        %v570 = vld [vmem:[%s1 + $0x200] sm:$0xff]
        %v571 = vld [vmem:[%s1 + $0x208] sm:$0xff]
        %v572 = vld [vmem:[%s1 + $0x210] sm:$0xff]
        %v573 = vld [vmem:[%s1 + $0x218] sm:$0xff]
        %v574 = vld [vmem:[%s1 + $0x220] sm:$0xff]
        %v575 = vld [vmem:[%s1 + $0x228] sm:$0xff]
        %v576 = vld [vmem:[%s1 + $0x230] sm:$0xff]
        %v577 = vld [vmem:[%s1 + $0x238] sm:$0xff]
        %v578 = vld [vmem:[%s1 + $0x240] sm:$0xff]
        %v579 = vld [vmem:[%s1 + $0x248] sm:$0xff]
        %v580 = vld [vmem:[%s1 + $0x250] sm:$0xff]
        %v581 = vld [vmem:[%s1 + $0x258] sm:$0xff]
        %v582 = vld [vmem:[%s1 + $0x260] sm:$0xff]
        %v583 = vld [vmem:[%s1 + $0x268] sm:$0xff]
        %v584 = vld [vmem:[%s1 + $0x270] sm:$0xff]
        %v585 = vld [vmem:[%s1 + $0x278] sm:$0xff]
        %v586 = vld [vmem:[%s1 + $0x280] sm:$0xff]
        %v587 = vld [vmem:[%s1 + $0x288] sm:$0xff]
        %v588 = vld [vmem:[%s1 + $0x290] sm:$0xff]
        %v589 = vld [vmem:[%s1 + $0x298] sm:$0xff]
        %v590 = vld [vmem:[%s1 + $0x2a0] sm:$0xff]
        %v591 = vld [vmem:[%s1 + $0x2a8] sm:$0xff]
        %v592 = vld [vmem:[%s1 + $0x2b0] sm:$0xff]
        %v593 = vld [vmem:[%s1 + $0x2b8] sm:$0xff]
        %v594 = vld [vmem:[%s1 + $0x2c0] sm:$0xff]
        %v595 = vld [vmem:[%s1 + $0x2c8] sm:$0xff]
        %v596 = vld [vmem:[%s1 + $0x2d0] sm:$0xff]
        %v597 = vld [vmem:[%s1 + $0x2d8] sm:$0xff]
        %v598 = vld [vmem:[%s1 + $0x2e0] sm:$0xff]
        %v599 = vld [vmem:[%s1 + $0x2e8] sm:$0xff]
        %v600 = vld [vmem:[%s1 + $0x2f0] sm:$0xff]
        %v601 = vld [vmem:[%s1 + $0x2f8] sm:$0xff]
        %v602 = vld [vmem:[%s1 + $0x300] sm:$0xff]
        %v603 = vld [vmem:[%s1 + $0x308] sm:$0xff]
        %v604 = vld [vmem:[%s2] sm:$0x3]
        %v606 = vlaneseq
        %v607 = vshrl.u32 %v606, 7
        %v608 = vsub.s32 0, %v607
        %v609 = vrot.slane %v604, %v608
        %v610 = vlaneseq
        %v611 = vshrl.u32 %v610, 7
        %v612 = vsub.s32 1, %v611
        %v613 = vrot.slane %v604, %v612
        %v714 = vunpack.c.l.b16 %v506
        %v715 = vunpack.c.h.b16 %v506
        %v716 = vunpack.c.l.b16 %v507
        %v717 = vunpack.c.h.b16 %v507
        %v718 = vunpack.c.l.b16 %v508
        %v719 = vunpack.c.h.b16 %v508
        %v720 = vunpack.c.l.b16 %v509
        %v721 = vunpack.c.h.b16 %v509
        %v722 = vunpack.c.l.b16 %v510
        %v723 = vunpack.c.h.b16 %v510
        %v724 = vunpack.c.l.b16 %v511
        %v725 = vunpack.c.h.b16 %v511
        %v726 = vunpack.c.l.b16 %v512
        %v727 = vunpack.c.h.b16 %v512
        %v728 = vunpack.c.l.b16 %v513
        %v729 = vunpack.c.h.b16 %v513
        %v730 = vunpack.c.l.b16 %v514
        %v731 = vunpack.c.h.b16 %v514
        %v732 = vunpack.c.l.b16 %v515
        %v733 = vunpack.c.h.b16 %v515
        %v734 = vunpack.c.l.b16 %v516
        %v735 = vunpack.c.h.b16 %v516
        %v736 = vunpack.c.l.b16 %v517
        %v737 = vunpack.c.h.b16 %v517
        %v738 = vunpack.c.l.b16 %v518
        %v739 = vunpack.c.h.b16 %v518
        %v740 = vunpack.c.l.b16 %v519
        %v741 = vunpack.c.h.b16 %v519
        %v742 = vunpack.c.l.b16 %v520
        %v743 = vunpack.c.h.b16 %v520
        %v744 = vunpack.c.l.b16 %v521
        %v745 = vunpack.c.h.b16 %v521
        %v746 = vunpack.c.l.b16 %v522
        %v747 = vunpack.c.h.b16 %v522
        %v748 = vunpack.c.l.b16 %v523
        %v749 = vunpack.c.h.b16 %v523
        %v750 = vunpack.c.l.b16 %v524
        %v751 = vunpack.c.h.b16 %v524
        %v752 = vunpack.c.l.b16 %v525
        %v753 = vunpack.c.h.b16 %v525
        %v754 = vunpack.c.l.b16 %v526
        %v755 = vunpack.c.h.b16 %v526
        %v756 = vunpack.c.l.b16 %v527
        %v757 = vunpack.c.h.b16 %v527
        %v758 = vunpack.c.l.b16 %v528
        %v759 = vunpack.c.h.b16 %v528
        %v760 = vunpack.c.l.b16 %v529
        %v761 = vunpack.c.h.b16 %v529
        %v762 = vunpack.c.l.b16 %v530
        %v763 = vunpack.c.h.b16 %v530
        %v764 = vunpack.c.l.b16 %v531
        %v765 = vunpack.c.h.b16 %v531
        %v766 = vunpack.c.l.b16 %v532
        %v767 = vunpack.c.h.b16 %v532
        %v768 = vunpack.c.l.b16 %v533
        %v769 = vunpack.c.h.b16 %v533
        %v770 = vunpack.c.l.b16 %v534
        %v771 = vunpack.c.h.b16 %v534
        %v772 = vunpack.c.l.b16 %v535
        %v773 = vunpack.c.h.b16 %v535
        %v774 = vunpack.c.l.b16 %v536
        %v775 = vunpack.c.h.b16 %v536
        %v776 = vunpack.c.l.b16 %v537
        %v777 = vunpack.c.h.b16 %v537
        %v778 = vunpack.c.l.b16 %v538
        %v779 = vunpack.c.h.b16 %v538
        %v780 = vunpack.c.l.b16 %v539
        %v781 = vunpack.c.h.b16 %v539
        %v782 = vunpack.c.l.b16 %v540
        %v783 = vunpack.c.h.b16 %v540
        %v784 = vunpack.c.l.b16 %v541
        %v785 = vunpack.c.h.b16 %v541
        %v786 = vunpack.c.l.b16 %v542
        %v787 = vunpack.c.h.b16 %v542
        %v788 = vunpack.c.l.b16 %v543
        %v789 = vunpack.c.h.b16 %v543
        %v790 = vunpack.c.l.b16 %v544
        %v791 = vunpack.c.h.b16 %v544
        %v792 = vunpack.c.l.b16 %v545
        %v793 = vunpack.c.h.b16 %v545
        %v794 = vunpack.c.l.b16 %v546
        %v795 = vunpack.c.h.b16 %v546
        %v796 = vunpack.c.l.b16 %v547
        %v797 = vunpack.c.h.b16 %v547
        %v798 = vunpack.c.l.b16 %v548
        %v799 = vunpack.c.h.b16 %v548
        %v800 = vunpack.c.l.b16 %v549
        %v801 = vunpack.c.h.b16 %v549
        %v802 = vunpack.c.l.b16 %v550
        %v803 = vunpack.c.h.b16 %v550
        %v804 = vunpack.c.l.b16 %v551
        %v805 = vunpack.c.h.b16 %v551
        %v806 = vunpack.c.l.b16 %v552
        %v807 = vunpack.c.h.b16 %v552
        %v808 = vunpack.c.l.b16 %v553
        %v809 = vunpack.c.h.b16 %v553
        %v810 = vunpack.c.l.b16 %v554
        %v811 = vunpack.c.h.b16 %v554
        %v812 = vunpack.c.l.b16 %v555
        %v813 = vunpack.c.h.b16 %v555
        %v814 = vunpack.c.l.b16 %v556
        %v815 = vunpack.c.h.b16 %v556
        %v816 = vunpack.c.l.b16 %v557
        %v817 = vunpack.c.h.b16 %v557
        %v818 = vunpack.c.l.b16 %v558
        %v819 = vunpack.c.h.b16 %v558
        %v820 = vunpack.c.l.b16 %v559
        %v821 = vunpack.c.h.b16 %v559
        %v822 = vunpack.c.l.b16 %v560
        %v823 = vunpack.c.h.b16 %v560
        %v824 = vunpack.c.l.b16 %v561
        %v825 = vunpack.c.h.b16 %v561
        %v826 = vunpack.c.l.b16 %v562
        %v827 = vunpack.c.h.b16 %v562
        %v828 = vunpack.c.l.b16 %v563
        %v829 = vunpack.c.h.b16 %v563
        %v830 = vunpack.c.l.b16 %v564
        %v831 = vunpack.c.h.b16 %v564
        %v832 = vunpack.c.l.b16 %v565
        %v833 = vunpack.c.h.b16 %v565
        %v834 = vunpack.c.l.b16 %v566
        %v835 = vunpack.c.h.b16 %v566
        %v836 = vunpack.c.l.b16 %v567
        %v837 = vunpack.c.h.b16 %v567
        %v838 = vunpack.c.l.b16 %v568
        %v839 = vunpack.c.h.b16 %v568
        %v840 = vunpack.c.l.b16 %v569
        %v841 = vunpack.c.h.b16 %v569
        %v842 = vunpack.c.l.b16 %v570
        %v843 = vunpack.c.h.b16 %v570
        %v844 = vunpack.c.l.b16 %v571
        %v845 = vunpack.c.h.b16 %v571
        %v846 = vunpack.c.l.b16 %v572
        %v847 = vunpack.c.h.b16 %v572
        %v848 = vunpack.c.l.b16 %v573
        %v849 = vunpack.c.h.b16 %v573
        %v850 = vunpack.c.l.b16 %v574
        %v851 = vunpack.c.h.b16 %v574
        %v852 = vunpack.c.l.b16 %v575
        %v853 = vunpack.c.h.b16 %v575
        %v854 = vunpack.c.l.b16 %v576
        %v855 = vunpack.c.h.b16 %v576
        %v856 = vunpack.c.l.b16 %v577
        %v857 = vunpack.c.h.b16 %v577
        %v858 = vunpack.c.l.b16 %v578
        %v859 = vunpack.c.h.b16 %v578
        %v860 = vunpack.c.l.b16 %v579
        %v861 = vunpack.c.h.b16 %v579
        %v862 = vunpack.c.l.b16 %v580
        %v863 = vunpack.c.h.b16 %v580
        %v864 = vunpack.c.l.b16 %v581
        %v865 = vunpack.c.h.b16 %v581
        %v866 = vunpack.c.l.b16 %v582
        %v867 = vunpack.c.h.b16 %v582
        %v868 = vunpack.c.l.b16 %v583
        %v869 = vunpack.c.h.b16 %v583
        %v870 = vunpack.c.l.b16 %v584
        %v871 = vunpack.c.h.b16 %v584
        %v872 = vunpack.c.l.b16 %v585
        %v873 = vunpack.c.h.b16 %v585
        %v874 = vunpack.c.l.b16 %v586
        %v875 = vunpack.c.h.b16 %v586
        %v876 = vunpack.c.l.b16 %v587
        %v877 = vunpack.c.h.b16 %v587
        %v878 = vunpack.c.l.b16 %v588
        %v879 = vunpack.c.h.b16 %v588
        %v880 = vunpack.c.l.b16 %v589
        %v881 = vunpack.c.h.b16 %v589
        %v882 = vunpack.c.l.b16 %v590
        %v883 = vunpack.c.h.b16 %v590
        %v884 = vunpack.c.l.b16 %v591
        %v885 = vunpack.c.h.b16 %v591
        %v886 = vunpack.c.l.b16 %v592
        %v887 = vunpack.c.h.b16 %v592
        %v888 = vunpack.c.l.b16 %v593
        %v889 = vunpack.c.h.b16 %v593
        %v890 = vunpack.c.l.b16 %v594
        %v891 = vunpack.c.h.b16 %v594
        %v892 = vunpack.c.l.b16 %v595
        %v893 = vunpack.c.h.b16 %v595
        %v894 = vunpack.c.l.b16 %v596
        %v895 = vunpack.c.h.b16 %v596
        %v896 = vunpack.c.l.b16 %v597
        %v897 = vunpack.c.h.b16 %v597
        %v898 = vunpack.c.l.b16 %v598
        %v899 = vunpack.c.h.b16 %v598
        %v900 = vunpack.c.l.b16 %v599
        %v901 = vunpack.c.h.b16 %v599
        %v902 = vunpack.c.l.b16 %v600
        %v903 = vunpack.c.h.b16 %v600
        %v904 = vunpack.c.l.b16 %v601
        %v905 = vunpack.c.h.b16 %v601
        %v906 = vunpack.c.l.b16 %v602
        %v907 = vunpack.c.h.b16 %v602
        %v908 = vunpack.c.l.b16 %v603
        %v909 = vunpack.c.h.b16 %v603
        %v910 = vpack.c.b16 %v716, %v714
        %v911 = vpack.c.b16 %v717, %v715
        %v912 = vpack.c.b16 %v720, %v718
        %v913 = vpack.c.b16 %v721, %v719
        %v914 = vpack.c.b16 %v724, %v722
        %v915 = vpack.c.b16 %v725, %v723
        %v916 = vpack.c.b16 %v728, %v726
        %v917 = vpack.c.b16 %v729, %v727
        %v918 = vpack.c.b16 %v732, %v730
        %v919 = vpack.c.b16 %v733, %v731
        %v920 = vpack.c.b16 %v736, %v734
        %v921 = vpack.c.b16 %v737, %v735
        %v922 = vpack.c.b16 %v740, %v738
        %v923 = vpack.c.b16 %v741, %v739
        %v924 = vpack.c.b16 %v744, %v742
        %v925 = vpack.c.b16 %v745, %v743
        %v926 = vpack.c.b16 %v748, %v746
        %v927 = vpack.c.b16 %v749, %v747
        %v928 = vpack.c.b16 %v752, %v750
        %v929 = vpack.c.b16 %v753, %v751
        %v930 = vpack.c.b16 %v756, %v754
        %v931 = vpack.c.b16 %v757, %v755
        %v932 = vpack.c.b16 %v760, %v758
        %v933 = vpack.c.b16 %v761, %v759
        %v934 = vpack.c.b16 %v764, %v762
        %v935 = vpack.c.b16 %v765, %v763
        %v936 = vpack.c.b16 %v768, %v766
        %v937 = vpack.c.b16 %v769, %v767
        %v938 = vpack.c.b16 %v772, %v770
        %v939 = vpack.c.b16 %v773, %v771
        %v940 = vpack.c.b16 %v776, %v774
        %v941 = vpack.c.b16 %v777, %v775
        %v942 = vpack.c.b16 %v780, %v778
        %v943 = vpack.c.b16 %v781, %v779
        %v944 = vpack.c.b16 %v784, %v782
        %v945 = vpack.c.b16 %v785, %v783
        %v946 = vpack.c.b16 %v788, %v786
        %v947 = vpack.c.b16 %v789, %v787
        %v948 = vpack.c.b16 %v792, %v790
        %v949 = vpack.c.b16 %v793, %v791
        %v950 = vpack.c.b16 %v796, %v794
        %v951 = vpack.c.b16 %v797, %v795
        %v952 = vpack.c.b16 %v800, %v798
        %v953 = vpack.c.b16 %v801, %v799
        %v954 = vpack.c.b16 %v804, %v802
        %v955 = vpack.c.b16 %v805, %v803
        %v956 = vpack.c.b16 %v808, %v806
        %v957 = vpack.c.b16 %v809, %v807
        %v958 = vpack.c.b16 %v812, %v810
        %v959 = vpack.c.b16 %v813, %v811
        %v960 = vpack.c.b16 %v816, %v814
        %v961 = vpack.c.b16 %v817, %v815
        %v962 = vpack.c.b16 %v820, %v818
        %v963 = vpack.c.b16 %v821, %v819
        %v964 = vpack.c.b16 %v824, %v822
        %v965 = vpack.c.b16 %v825, %v823
        %v966 = vpack.c.b16 %v828, %v826
        %v967 = vpack.c.b16 %v829, %v827
        %v968 = vpack.c.b16 %v832, %v830
        %v969 = vpack.c.b16 %v833, %v831
        %v970 = vpack.c.b16 %v836, %v834
        %v971 = vpack.c.b16 %v837, %v835
        %v972 = vpack.c.b16 %v840, %v838
        %v973 = vpack.c.b16 %v841, %v839
        %v974 = vpack.c.b16 %v844, %v842
        %v975 = vpack.c.b16 %v845, %v843
        %v976 = vpack.c.b16 %v848, %v846
        %v977 = vpack.c.b16 %v849, %v847
        %v978 = vpack.c.b16 %v852, %v850
        %v979 = vpack.c.b16 %v853, %v851
        %v980 = vpack.c.b16 %v856, %v854
        %v981 = vpack.c.b16 %v857, %v855
        %v982 = vpack.c.b16 %v860, %v858
        %v983 = vpack.c.b16 %v861, %v859
        %v984 = vpack.c.b16 %v864, %v862
        %v985 = vpack.c.b16 %v865, %v863
        %v986 = vpack.c.b16 %v868, %v866
        %v987 = vpack.c.b16 %v869, %v867
        %v988 = vpack.c.b16 %v872, %v870
        %v989 = vpack.c.b16 %v873, %v871
        %v990 = vpack.c.b16 %v876, %v874
        %v991 = vpack.c.b16 %v877, %v875
        %v992 = vpack.c.b16 %v880, %v878
        %v993 = vpack.c.b16 %v881, %v879
        %v994 = vpack.c.b16 %v884, %v882
        %v995 = vpack.c.b16 %v885, %v883
        %v996 = vpack.c.b16 %v888, %v886
        %v997 = vpack.c.b16 %v889, %v887
        %v998 = vpack.c.b16 %v892, %v890
        %v999 = vpack.c.b16 %v893, %v891
        %v1000 = vpack.c.b16 %v896, %v894
        %v1001 = vpack.c.b16 %v897, %v895
        %v1002 = vpack.c.b16 %v900, %v898
        %v1003 = vpack.c.b16 %v901, %v899
        %v1004 = vpack.c.b16 %v904, %v902
        %v1005 = vpack.c.b16 %v905, %v903
        %v1006 = vpack.c.b16 %v908, %v906
        %v1007 = vpack.c.b16 %v909, %v907
        %vm1106 = vcmask 130048
        %v1108 = vsel %vm1106, %v456, 0
        %v1111 = vsel %vm1106, %v463, 0
        %v1114 = vsel %vm1106, %v470, 0
        %v1117 = vsel %vm1106, %v477, 0
        %v1120 = vsel %vm1106, %v484, 0
        %v1123 = vsel %vm1106, %v491, 0
        %v1126 = vsel %vm1106, %v498, 0
        %v1129 = vsel %vm1106, %v505, 0
        %1131 = vmatprep.subr.bf16.mxu0 %v925
        %1132 = vmatpush1.bf16.msra.mxu0 %v924
        %1133 = vmatprep.subr.bf16.mxu0 %v923
        %1134 = vmatpush1.bf16.msra.mxu0 %v922
        %1135 = vmatprep.subr.bf16.mxu0 %v921
        %1136 = vmatpush1.bf16.msra.mxu0 %v920
        %1137 = vmatprep.subr.bf16.mxu0 %v919
        %1138 = vmatpush1.bf16.msra.mxu0 %v918
        %1139 = vmatprep.subr.bf16.mxu0 %v917
        %1140 = vmatpush1.bf16.msra.mxu0 %v916
        %1141 = vmatprep.subr.bf16.mxu0 %v915
        %1142 = vmatpush1.bf16.msra.mxu0 %v914
        %1143 = vmatprep.subr.bf16.mxu0 %v913
        %1144 = vmatpush1.bf16.msra.mxu0 %v912
        %1145 = vmatprep.subr.bf16.mxu0 %v911
        %1146 = vmatpush1.bf16.msra.mxu0 %v910
        %1147 = vmatprep.subr.bf16.mxu0 %v941
        %1148 = vmatpush2.bf16.msra.mxu0 %v940
        %1149 = vmatprep.subr.bf16.mxu0 %v939
        %1150 = vmatpush2.bf16.msra.mxu0 %v938
        %1151 = vmatprep.subr.bf16.mxu0 %v937
        %1152 = vmatpush2.bf16.msra.mxu0 %v936
        %1153 = vmatprep.subr.bf16.mxu0 %v935
        %1154 = vmatpush2.bf16.msra.mxu0 %v934
        %1155 = vmatprep.subr.bf16.mxu0 %v933
        %1156 = vmatpush2.bf16.msra.mxu0 %v932
        %1157 = vmatprep.subr.bf16.mxu0 %v931
        %1158 = vmatpush2.bf16.msra.mxu0 %v930
        %1159 = vmatprep.subr.bf16.mxu0 %v929
        %1160 = vmatpush2.bf16.msra.mxu0 %v928
        %1161 = vmatprep.subr.bf16.mxu0 %v927
        %1162 = vmatpush2.bf16.msra.mxu0 %v926
        %1163 = vmatprep.mubr.bf16.mxu0 %v451
        %1164 = vmatmul.mubr.bf16.gmra.mxu0 %v450
        %v1165 = vpop.f32.mrf.mxu0
        %v1166 = vadd.f32 %v609, %v1165
        %v1167 = vpop.f32.mrf.mxu0
        %v1168 = vadd.f32 %v613, %v1167
        %v1169 = vpop.f32.mrf.mxu0
        %v1170 = vadd.f32 %v609, %v1169
        %v1171 = vpop.f32.mrf.mxu0
        %v1172 = vadd.f32 %v613, %v1171
        %1173 = vmatprep.mubr.bf16.mxu0 %v458
        %1174 = vmatmul.mubr.bf16.gmra.mxu0 %v457
        %v1175 = vpop.f32.mrf.mxu0
        %v1176 = vadd.f32 %v609, %v1175
        %v1177 = vpop.f32.mrf.mxu0
        %v1178 = vadd.f32 %v613, %v1177
        %v1179 = vpop.f32.mrf.mxu0
        %v1180 = vadd.f32 %v609, %v1179
        %v1181 = vpop.f32.mrf.mxu0
        %v1182 = vadd.f32 %v613, %v1181
        %1183 = vmatprep.mubr.bf16.mxu0 %v465
        %1184 = vmatmul.mubr.bf16.gmra.mxu0 %v464
        %v1185 = vpop.f32.mrf.mxu0
        %v1186 = vadd.f32 %v609, %v1185
        %v1187 = vpop.f32.mrf.mxu0
        %v1188 = vadd.f32 %v613, %v1187
        %v1189 = vpop.f32.mrf.mxu0
        %v1190 = vadd.f32 %v609, %v1189
        %v1191 = vpop.f32.mrf.mxu0
        %v1192 = vadd.f32 %v613, %v1191
        %1193 = vmatprep.mubr.bf16.mxu0 %v472
        %1194 = vmatmul.mubr.bf16.gmra.mxu0 %v471
        %v1195 = vpop.f32.mrf.mxu0
        %v1196 = vadd.f32 %v609, %v1195
        %v1197 = vpop.f32.mrf.mxu0
        %v1198 = vadd.f32 %v613, %v1197
        %v1199 = vpop.f32.mrf.mxu0
        %v1200 = vadd.f32 %v609, %v1199
        %v1201 = vpop.f32.mrf.mxu0
        %v1202 = vadd.f32 %v613, %v1201
        %1203 = vmatprep.mubr.bf16.mxu0 %v479
        %1204 = vmatmul.mubr.bf16.gmra.mxu0 %v478
        %v1205 = vpop.f32.mrf.mxu0
        %v1206 = vadd.f32 %v609, %v1205
        %v1207 = vpop.f32.mrf.mxu0
        %v1208 = vadd.f32 %v613, %v1207
        %v1209 = vpop.f32.mrf.mxu0
        %v1210 = vadd.f32 %v609, %v1209
        %v1211 = vpop.f32.mrf.mxu0
        %v1212 = vadd.f32 %v613, %v1211
        %1213 = vmatprep.mubr.bf16.mxu0 %v486
        %1214 = vmatmul.mubr.bf16.gmra.mxu0 %v485
        %v1215 = vpop.f32.mrf.mxu0
        %v1216 = vadd.f32 %v609, %v1215
        %v1217 = vpop.f32.mrf.mxu0
        %v1218 = vadd.f32 %v613, %v1217
        %v1219 = vpop.f32.mrf.mxu0
        %v1220 = vadd.f32 %v609, %v1219
        %v1221 = vpop.f32.mrf.mxu0
        %v1222 = vadd.f32 %v613, %v1221
        %1223 = vmatprep.mubr.bf16.mxu0 %v493
        %1224 = vmatmul.mubr.bf16.gmra.mxu0 %v492
        %v1225 = vpop.f32.mrf.mxu0
        %v1226 = vadd.f32 %v609, %v1225
        %v1227 = vpop.f32.mrf.mxu0
        %v1228 = vadd.f32 %v613, %v1227
        %v1229 = vpop.f32.mrf.mxu0
        %v1230 = vadd.f32 %v609, %v1229
        %v1231 = vpop.f32.mrf.mxu0
        %v1232 = vadd.f32 %v613, %v1231
        %1233 = vmatprep.mubr.bf16.mxu0 %v500
        %1234 = vmatmul.mubr.bf16.gmra.mxu0 %v499
        %v1235 = vpop.f32.mrf.mxu0
        %v1236 = vadd.f32 %v609, %v1235
        %v1237 = vpop.f32.mrf.mxu0
        %v1238 = vadd.f32 %v613, %v1237
        %v1239 = vpop.f32.mrf.mxu0
        %v1240 = vadd.f32 %v609, %v1239
        %v1241 = vpop.f32.mrf.mxu0
        %v1242 = vadd.f32 %v613, %v1241
        %1243 = vdwg.mxu0
        %1244 = vmatprep.subr.bf16.mxu0 %v957
        %1245 = vmatpush1.bf16.msra.mxu0 %v956
        %1246 = vmatprep.subr.bf16.mxu0 %v955
        %1247 = vmatpush1.bf16.msra.mxu0 %v954
        %1248 = vmatprep.subr.bf16.mxu0 %v953
        %1249 = vmatpush1.bf16.msra.mxu0 %v952
        %1250 = vmatprep.subr.bf16.mxu0 %v951
        %1251 = vmatpush1.bf16.msra.mxu0 %v950
        %1252 = vmatprep.subr.bf16.mxu0 %v949
        %1253 = vmatpush1.bf16.msra.mxu0 %v948
        %1254 = vmatprep.subr.bf16.mxu0 %v947
        %1255 = vmatpush1.bf16.msra.mxu0 %v946
        %1256 = vmatprep.subr.bf16.mxu0 %v945
        %1257 = vmatpush1.bf16.msra.mxu0 %v944
        %1258 = vmatprep.subr.bf16.mxu0 %v943
        %1259 = vmatpush1.bf16.msra.mxu0 %v942
        %1260 = vmatprep.subr.bf16.mxu0 %v973
        %1261 = vmatpush2.bf16.msra.mxu0 %v972
        %1262 = vmatprep.subr.bf16.mxu0 %v971
        %1263 = vmatpush2.bf16.msra.mxu0 %v970
        %1264 = vmatprep.subr.bf16.mxu0 %v969
        %1265 = vmatpush2.bf16.msra.mxu0 %v968
        %1266 = vmatprep.subr.bf16.mxu0 %v967
        %1267 = vmatpush2.bf16.msra.mxu0 %v966
        %1268 = vmatprep.subr.bf16.mxu0 %v965
        %1269 = vmatpush2.bf16.msra.mxu0 %v964
        %1270 = vmatprep.subr.bf16.mxu0 %v963
        %1271 = vmatpush2.bf16.msra.mxu0 %v962
        %1272 = vmatprep.subr.bf16.mxu0 %v961
        %1273 = vmatpush2.bf16.msra.mxu0 %v960
        %1274 = vmatprep.subr.bf16.mxu0 %v959
        %1275 = vmatpush2.bf16.msra.mxu0 %v958
        %1276 = vmatprep.mubr.bf16.mxu0 %v453
        %1277 = vmatmul.mubr.bf16.gmra.mxu0 %v452
        %v1278 = vpop.f32.mrf.mxu0
        %v1279 = vadd.f32 %v1166, %v1278
        %v1280 = vpop.f32.mrf.mxu0
        %v1281 = vadd.f32 %v1168, %v1280
        %v1282 = vpop.f32.mrf.mxu0
        %v1283 = vadd.f32 %v1170, %v1282
        %v1284 = vpop.f32.mrf.mxu0
        %v1285 = vadd.f32 %v1172, %v1284
        %1286 = vmatprep.mubr.bf16.mxu0 %v460
        %1287 = vmatmul.mubr.bf16.gmra.mxu0 %v459
        %v1288 = vpop.f32.mrf.mxu0
        %v1289 = vadd.f32 %v1176, %v1288
        %v1290 = vpop.f32.mrf.mxu0
        %v1291 = vadd.f32 %v1178, %v1290
        %v1292 = vpop.f32.mrf.mxu0
        %v1293 = vadd.f32 %v1180, %v1292
        %v1294 = vpop.f32.mrf.mxu0
        %v1295 = vadd.f32 %v1182, %v1294
        %1296 = vmatprep.mubr.bf16.mxu0 %v467
        %1297 = vmatmul.mubr.bf16.gmra.mxu0 %v466
        %v1298 = vpop.f32.mrf.mxu0
        %v1299 = vadd.f32 %v1186, %v1298
        %v1300 = vpop.f32.mrf.mxu0
        %v1301 = vadd.f32 %v1188, %v1300
        %v1302 = vpop.f32.mrf.mxu0
        %v1303 = vadd.f32 %v1190, %v1302
        %v1304 = vpop.f32.mrf.mxu0
        %v1305 = vadd.f32 %v1192, %v1304
        %1306 = vmatprep.mubr.bf16.mxu0 %v474
        %1307 = vmatmul.mubr.bf16.gmra.mxu0 %v473
        %v1308 = vpop.f32.mrf.mxu0
        %v1309 = vadd.f32 %v1196, %v1308
        %v1310 = vpop.f32.mrf.mxu0
        %v1311 = vadd.f32 %v1198, %v1310
        %v1312 = vpop.f32.mrf.mxu0
        %v1313 = vadd.f32 %v1200, %v1312
        %v1314 = vpop.f32.mrf.mxu0
        %v1315 = vadd.f32 %v1202, %v1314
        %1316 = vmatprep.mubr.bf16.mxu0 %v481
        %1317 = vmatmul.mubr.bf16.gmra.mxu0 %v480
        %v1318 = vpop.f32.mrf.mxu0
        %v1319 = vadd.f32 %v1206, %v1318
        %v1320 = vpop.f32.mrf.mxu0
        %v1321 = vadd.f32 %v1208, %v1320
        %v1322 = vpop.f32.mrf.mxu0
        %v1323 = vadd.f32 %v1210, %v1322
        %v1324 = vpop.f32.mrf.mxu0
        %v1325 = vadd.f32 %v1212, %v1324
        %1326 = vmatprep.mubr.bf16.mxu0 %v488
        %1327 = vmatmul.mubr.bf16.gmra.mxu0 %v487
        %v1328 = vpop.f32.mrf.mxu0
        %v1329 = vadd.f32 %v1216, %v1328
        %v1330 = vpop.f32.mrf.mxu0
        %v1331 = vadd.f32 %v1218, %v1330
        %v1332 = vpop.f32.mrf.mxu0
        %v1333 = vadd.f32 %v1220, %v1332
        %v1334 = vpop.f32.mrf.mxu0
        %v1335 = vadd.f32 %v1222, %v1334
        %1336 = vmatprep.mubr.bf16.mxu0 %v495
        %1337 = vmatmul.mubr.bf16.gmra.mxu0 %v494
        %v1338 = vpop.f32.mrf.mxu0
        %v1339 = vadd.f32 %v1226, %v1338
        %v1340 = vpop.f32.mrf.mxu0
        %v1341 = vadd.f32 %v1228, %v1340
        %v1342 = vpop.f32.mrf.mxu0
        %v1343 = vadd.f32 %v1230, %v1342
        %v1344 = vpop.f32.mrf.mxu0
        %v1345 = vadd.f32 %v1232, %v1344
        %1346 = vmatprep.mubr.bf16.mxu0 %v502
        %1347 = vmatmul.mubr.bf16.gmra.mxu0 %v501
        %v1348 = vpop.f32.mrf.mxu0
        %v1349 = vadd.f32 %v1236, %v1348
        %v1350 = vpop.f32.mrf.mxu0
        %v1351 = vadd.f32 %v1238, %v1350
        %v1352 = vpop.f32.mrf.mxu0
        %v1353 = vadd.f32 %v1240, %v1352
        %v1354 = vpop.f32.mrf.mxu0
        %v1355 = vadd.f32 %v1242, %v1354
        %1356 = vdwg.mxu0
        %1357 = vmatprep.subr.bf16.mxu0 %v989
        %1358 = vmatpush1.bf16.msra.mxu0 %v988
        %1359 = vmatprep.subr.bf16.mxu0 %v987
        %1360 = vmatpush1.bf16.msra.mxu0 %v986
        %1361 = vmatprep.subr.bf16.mxu0 %v985
        %1362 = vmatpush1.bf16.msra.mxu0 %v984
        %1363 = vmatprep.subr.bf16.mxu0 %v983
        %1364 = vmatpush1.bf16.msra.mxu0 %v982
        %1365 = vmatprep.subr.bf16.mxu0 %v981
        %1366 = vmatpush1.bf16.msra.mxu0 %v980
        %1367 = vmatprep.subr.bf16.mxu0 %v979
        %1368 = vmatpush1.bf16.msra.mxu0 %v978
        %1369 = vmatprep.subr.bf16.mxu0 %v977
        %1370 = vmatpush1.bf16.msra.mxu0 %v976
        %1371 = vmatprep.subr.bf16.mxu0 %v975
        %1372 = vmatpush1.bf16.msra.mxu0 %v974
        %1373 = vmatprep.subr.bf16.mxu0 %v1005
        %1374 = vmatpush2.bf16.msra.mxu0 %v1004
        %1375 = vmatprep.subr.bf16.mxu0 %v1003
        %1376 = vmatpush2.bf16.msra.mxu0 %v1002
        %1377 = vmatprep.subr.bf16.mxu0 %v1001
        %1378 = vmatpush2.bf16.msra.mxu0 %v1000
        %1379 = vmatprep.subr.bf16.mxu0 %v999
        %1380 = vmatpush2.bf16.msra.mxu0 %v998
        %1381 = vmatprep.subr.bf16.mxu0 %v997
        %1382 = vmatpush2.bf16.msra.mxu0 %v996
        %1383 = vmatprep.subr.bf16.mxu0 %v995
        %1384 = vmatpush2.bf16.msra.mxu0 %v994
        %1385 = vmatprep.subr.bf16.mxu0 %v993
        %1386 = vmatpush2.bf16.msra.mxu0 %v992
        %1387 = vmatprep.subr.bf16.mxu0 %v991
        %1388 = vmatpush2.bf16.msra.mxu0 %v990
        %1389 = vmatprep.mubr.bf16.mxu0 %v455
        %1390 = vmatmul.mubr.bf16.gmra.mxu0 %v454
        %v1391 = vpop.f32.mrf.mxu0
        %v1392 = vadd.f32 %v1279, %v1391
        %v1393 = vpop.f32.mrf.mxu0
        %v1394 = vadd.f32 %v1281, %v1393
        %v1395 = vpop.f32.mrf.mxu0
        %v1396 = vadd.f32 %v1283, %v1395
        %v1397 = vpop.f32.mrf.mxu0
        %v1398 = vadd.f32 %v1285, %v1397
        %1399 = vmatprep.mubr.bf16.mxu0 %v462
        %1400 = vmatmul.mubr.bf16.gmra.mxu0 %v461
        %v1401 = vpop.f32.mrf.mxu0
        %v1402 = vadd.f32 %v1289, %v1401
        %v1403 = vpop.f32.mrf.mxu0
        %v1404 = vadd.f32 %v1291, %v1403
        %v1405 = vpop.f32.mrf.mxu0
        %v1406 = vadd.f32 %v1293, %v1405
        %v1407 = vpop.f32.mrf.mxu0
        %v1408 = vadd.f32 %v1295, %v1407
        %1409 = vmatprep.mubr.bf16.mxu0 %v469
        %1410 = vmatmul.mubr.bf16.gmra.mxu0 %v468
        %v1411 = vpop.f32.mrf.mxu0
        %v1412 = vadd.f32 %v1299, %v1411
        %v1413 = vpop.f32.mrf.mxu0
        %v1414 = vadd.f32 %v1301, %v1413
        %v1415 = vpop.f32.mrf.mxu0
        %v1416 = vadd.f32 %v1303, %v1415
        %v1417 = vpop.f32.mrf.mxu0
        %v1418 = vadd.f32 %v1305, %v1417
        %1419 = vmatprep.mubr.bf16.mxu0 %v476
        %1420 = vmatmul.mubr.bf16.gmra.mxu0 %v475
        %v1421 = vpop.f32.mrf.mxu0
        %v1422 = vadd.f32 %v1309, %v1421
        %v1423 = vpop.f32.mrf.mxu0
        %v1424 = vadd.f32 %v1311, %v1423
        %v1425 = vpop.f32.mrf.mxu0
        %v1426 = vadd.f32 %v1313, %v1425
        %v1427 = vpop.f32.mrf.mxu0
        %v1428 = vadd.f32 %v1315, %v1427
        %1429 = vmatprep.mubr.bf16.mxu0 %v483
        %1430 = vmatmul.mubr.bf16.gmra.mxu0 %v482
        %v1431 = vpop.f32.mrf.mxu0
        %v1432 = vadd.f32 %v1319, %v1431
        %v1433 = vpop.f32.mrf.mxu0
        %v1434 = vadd.f32 %v1321, %v1433
        %v1435 = vpop.f32.mrf.mxu0
        %v1436 = vadd.f32 %v1323, %v1435
        %v1437 = vpop.f32.mrf.mxu0
        %v1438 = vadd.f32 %v1325, %v1437
        %1439 = vmatprep.mubr.bf16.mxu0 %v490
        %1440 = vmatmul.mubr.bf16.gmra.mxu0 %v489
        %v1441 = vpop.f32.mrf.mxu0
        %v1442 = vadd.f32 %v1329, %v1441
        %v1443 = vpop.f32.mrf.mxu0
        %v1444 = vadd.f32 %v1331, %v1443
        %v1445 = vpop.f32.mrf.mxu0
        %v1446 = vadd.f32 %v1333, %v1445
        %v1447 = vpop.f32.mrf.mxu0
        %v1448 = vadd.f32 %v1335, %v1447
        %1449 = vmatprep.mubr.bf16.mxu0 %v497
        %1450 = vmatmul.mubr.bf16.gmra.mxu0 %v496
        %v1451 = vpop.f32.mrf.mxu0
        %v1452 = vadd.f32 %v1339, %v1451
        %v1453 = vpop.f32.mrf.mxu0
        %v1454 = vadd.f32 %v1341, %v1453
        %v1455 = vpop.f32.mrf.mxu0
        %v1456 = vadd.f32 %v1343, %v1455
        %v1457 = vpop.f32.mrf.mxu0
        %v1458 = vadd.f32 %v1345, %v1457
        %1459 = vmatprep.mubr.bf16.mxu0 %v504
        %1460 = vmatmul.mubr.bf16.gmra.mxu0 %v503
        %v1461 = vpop.f32.mrf.mxu0
        %v1462 = vadd.f32 %v1349, %v1461
        %v1463 = vpop.f32.mrf.mxu0
        %v1464 = vadd.f32 %v1351, %v1463
        %v1465 = vpop.f32.mrf.mxu0
        %v1466 = vadd.f32 %v1353, %v1465
        %v1467 = vpop.f32.mrf.mxu0
        %v1468 = vadd.f32 %v1355, %v1467
        %1469 = vdwg.mxu0
        %1470 = vmatprep.subr.bf16.mxu0 0
        %1471 = vmatpush1.bf16.msra.mxu0 0
        %1472 = vmatprep.subr.bf16.mxu0 0
        %1473 = vmatpush1.bf16.msra.mxu0 0
        %1474 = vmatprep.subr.bf16.mxu0 0
        %1475 = vmatpush1.bf16.msra.mxu0 0
        %1476 = vmatprep.subr.bf16.mxu0 0
        %1477 = vmatpush1.bf16.msra.mxu0 0
        %1478 = vmatprep.subr.bf16.mxu0 0
        %1479 = vmatpush1.bf16.msra.mxu0 0
        %1480 = vmatprep.subr.bf16.mxu0 0
        %1481 = vmatpush1.bf16.msra.mxu0 0
        %1482 = vmatprep.subr.bf16.mxu0 0
        %1483 = vmatpush1.bf16.msra.mxu0 0
        %1484 = vmatprep.subr.bf16.mxu0 %v1007
        %1485 = vmatpush1.bf16.msra.mxu0 %v1006
        %1486 = vmatprep.subr.bf16.mxu0 0
        %1487 = vmatpush2.bf16.msra.mxu0 0
        %1488 = vmatprep.subr.bf16.mxu0 0
        %1489 = vmatpush2.bf16.msra.mxu0 0
        %1490 = vmatprep.subr.bf16.mxu0 0
        %1491 = vmatpush2.bf16.msra.mxu0 0
        %1492 = vmatprep.subr.bf16.mxu0 0
        %1493 = vmatpush2.bf16.msra.mxu0 0
        %1494 = vmatprep.subr.bf16.mxu0 0
        %1495 = vmatpush2.bf16.msra.mxu0 0
        %1496 = vmatprep.subr.bf16.mxu0 0
        %1497 = vmatpush2.bf16.msra.mxu0 0
        %1498 = vmatprep.subr.bf16.mxu0 0
        %1499 = vmatpush2.bf16.msra.mxu0 0
        %1500 = vmatprep.subr.bf16.mxu0 0
        %1501 = vmatpush2.bf16.msra.mxu0 0
        %1502 = vmatprep.mubr.bf16.mxu0 0
        %1503 = vmatmul.mubr.bf16.gmra.mxu0 %v1108
        %v1504 = vpop.f32.mrf.mxu0
        %v1505 = vadd.f32 %v1392, %v1504
        %v1506 = vpop.f32.mrf.mxu0
        %v1507 = vadd.f32 %v1394, %v1506
        %v1508 = vpop.f32.mrf.mxu0
        %v1509 = vadd.f32 %v1396, %v1508
        %v1510 = vpop.f32.mrf.mxu0
        %v1511 = vadd.f32 %v1398, %v1510
        %1512 = vmatprep.mubr.bf16.mxu0 0
        %1513 = vmatmul.mubr.bf16.gmra.mxu0 %v1111
        %v1514 = vpop.f32.mrf.mxu0
        %v1515 = vadd.f32 %v1402, %v1514
        %v1516 = vpop.f32.mrf.mxu0
        %v1517 = vadd.f32 %v1404, %v1516
        %v1518 = vpop.f32.mrf.mxu0
        %v1519 = vadd.f32 %v1406, %v1518
        %v1520 = vpop.f32.mrf.mxu0
        %v1521 = vadd.f32 %v1408, %v1520
        %1522 = vmatprep.mubr.bf16.mxu0 0
        %1523 = vmatmul.mubr.bf16.gmra.mxu0 %v1114
        %v1524 = vpop.f32.mrf.mxu0
        %v1525 = vadd.f32 %v1412, %v1524
        %v1526 = vpop.f32.mrf.mxu0
        %v1527 = vadd.f32 %v1414, %v1526
        %v1528 = vpop.f32.mrf.mxu0
        %v1529 = vadd.f32 %v1416, %v1528
        %v1530 = vpop.f32.mrf.mxu0
        %v1531 = vadd.f32 %v1418, %v1530
        %1532 = vmatprep.mubr.bf16.mxu0 0
        %1533 = vmatmul.mubr.bf16.gmra.mxu0 %v1117
        %v1534 = vpop.f32.mrf.mxu0
        %v1535 = vadd.f32 %v1422, %v1534
        %v1536 = vpop.f32.mrf.mxu0
        %v1537 = vadd.f32 %v1424, %v1536
        %v1538 = vpop.f32.mrf.mxu0
        %v1539 = vadd.f32 %v1426, %v1538
        %v1540 = vpop.f32.mrf.mxu0
        %v1541 = vadd.f32 %v1428, %v1540
        %1542 = vmatprep.mubr.bf16.mxu0 0
        %1543 = vmatmul.mubr.bf16.gmra.mxu0 %v1120
        %v1544 = vpop.f32.mrf.mxu0
        %v1545 = vadd.f32 %v1432, %v1544
        %v1546 = vpop.f32.mrf.mxu0
        %v1547 = vadd.f32 %v1434, %v1546
        %v1548 = vpop.f32.mrf.mxu0
        %v1549 = vadd.f32 %v1436, %v1548
        %v1550 = vpop.f32.mrf.mxu0
        %v1551 = vadd.f32 %v1438, %v1550
        %1552 = vmatprep.mubr.bf16.mxu0 0
        %1553 = vmatmul.mubr.bf16.gmra.mxu0 %v1123
        %v1554 = vpop.f32.mrf.mxu0
        %v1555 = vadd.f32 %v1442, %v1554
        %v1556 = vpop.f32.mrf.mxu0
        %v1557 = vadd.f32 %v1444, %v1556
        %v1558 = vpop.f32.mrf.mxu0
        %v1559 = vadd.f32 %v1446, %v1558
        %v1560 = vpop.f32.mrf.mxu0
        %v1561 = vadd.f32 %v1448, %v1560
        %1562 = vmatprep.mubr.bf16.mxu0 0
        %1563 = vmatmul.mubr.bf16.gmra.mxu0 %v1126
        %v1564 = vpop.f32.mrf.mxu0
        %v1565 = vadd.f32 %v1452, %v1564
        %v1566 = vpop.f32.mrf.mxu0
        %v1567 = vadd.f32 %v1454, %v1566
        %v1568 = vpop.f32.mrf.mxu0
        %v1569 = vadd.f32 %v1456, %v1568
        %v1570 = vpop.f32.mrf.mxu0
        %v1571 = vadd.f32 %v1458, %v1570
        %1572 = vmatprep.mubr.bf16.mxu0 0
        %1573 = vmatmul.mubr.bf16.gmra.mxu0 %v1129
        %v1574 = vpop.f32.mrf.mxu0
        %v1575 = vadd.f32 %v1462, %v1574
        %v1576 = vpop.f32.mrf.mxu0
        %v1577 = vadd.f32 %v1464, %v1576
        %v1578 = vpop.f32.mrf.mxu0
        %v1579 = vadd.f32 %v1466, %v1578
        %v1580 = vpop.f32.mrf.mxu0
        %v1581 = vadd.f32 %v1468, %v1580
        %1582 = vdwg.mxu0
        %v1583 = vmax.f32 %v1505, 0.0
        %v1584 = vmax.f32 %v1507, 0.0
        %v1585 = vmax.f32 %v1509, 0.0
        %v1586 = vmax.f32 %v1511, 0.0
        %v1587 = vmax.f32 %v1515, 0.0
        %v1588 = vmax.f32 %v1517, 0.0
        %v1589 = vmax.f32 %v1519, 0.0
        %v1590 = vmax.f32 %v1521, 0.0
        %v1591 = vmax.f32 %v1525, 0.0
        %v1592 = vmax.f32 %v1527, 0.0
        %v1593 = vmax.f32 %v1529, 0.0
        %v1594 = vmax.f32 %v1531, 0.0
        %v1595 = vmax.f32 %v1535, 0.0
        %v1596 = vmax.f32 %v1537, 0.0
        %v1597 = vmax.f32 %v1539, 0.0
        %v1598 = vmax.f32 %v1541, 0.0
        %v1599 = vmax.f32 %v1545, 0.0
        %v1600 = vmax.f32 %v1547, 0.0
        %v1601 = vmax.f32 %v1549, 0.0
        %v1602 = vmax.f32 %v1551, 0.0
        %v1603 = vmax.f32 %v1555, 0.0
        %v1604 = vmax.f32 %v1557, 0.0
        %v1605 = vmax.f32 %v1559, 0.0
        %v1606 = vmax.f32 %v1561, 0.0
        %v1607 = vmax.f32 %v1565, 0.0
        %v1608 = vmax.f32 %v1567, 0.0
        %v1609 = vmax.f32 %v1569, 0.0
        %v1610 = vmax.f32 %v1571, 0.0
        %v1611 = vmax.f32 %v1575, 0.0
        %v1612 = vmax.f32 %v1577, 0.0
        %v1613 = vmax.f32 %v1579, 0.0
        %v1614 = vmax.f32 %v1581, 0.0
        %v1615 = vpack.c.bf16 %v1585, %v1583
        %v1616 = vpack.c.bf16 %v1586, %v1584
        %v1617 = vpack.c.bf16 %v1589, %v1587
        %v1618 = vpack.c.bf16 %v1590, %v1588
        %v1619 = vpack.c.bf16 %v1593, %v1591
        %v1620 = vpack.c.bf16 %v1594, %v1592
        %v1621 = vpack.c.bf16 %v1597, %v1595
        %v1622 = vpack.c.bf16 %v1598, %v1596
        %v1623 = vpack.c.bf16 %v1601, %v1599
        %v1624 = vpack.c.bf16 %v1602, %v1600
        %v1625 = vpack.c.bf16 %v1605, %v1603
        %v1626 = vpack.c.bf16 %v1606, %v1604
        %v1627 = vpack.c.bf16 %v1609, %v1607
        %v1628 = vpack.c.bf16 %v1610, %v1608
        %v1629 = vpack.c.bf16 %v1613, %v1611
        %v1630 = vpack.c.bf16 %v1614, %v1612
        %v1631 = vld [vmem:[%s3] sm:$0xf]
        %v1632 = vld [vmem:[%s3 + $0x4] sm:$0xf]
        %v1633 = vld [vmem:[%s3 + $0x8] sm:$0xf]
        %v1634 = vld [vmem:[%s3 + $0xc] sm:$0xf]
        %v1635 = vld [vmem:[%s3 + $0x10] sm:$0xf]
        %v1636 = vld [vmem:[%s3 + $0x14] sm:$0xf]
        %v1637 = vld [vmem:[%s3 + $0x18] sm:$0xf]
        %v1638 = vld [vmem:[%s3 + $0x1c] sm:$0xf]
        %v1639 = vld [vmem:[%s3 + $0x20] sm:$0xf]
        %v1640 = vld [vmem:[%s3 + $0x24] sm:$0xf]
        %v1641 = vld [vmem:[%s3 + $0x28] sm:$0xf]
        %v1642 = vld [vmem:[%s3 + $0x2c] sm:$0xf]
        %v1643 = vld [vmem:[%s3 + $0x30] sm:$0xf]
        %v1644 = vld [vmem:[%s3 + $0x34] sm:$0xf]
        %v1645 = vld [vmem:[%s3 + $0x38] sm:$0xf]
        %v1646 = vld [vmem:[%s3 + $0x3c] sm:$0xf]
        %v1647 = vld [vmem:[%s3 + $0x40] sm:$0xf]
        %v1648 = vld [vmem:[%s3 + $0x44] sm:$0xf]
        %v1649 = vld [vmem:[%s3 + $0x48] sm:$0xf]
        %v1650 = vld [vmem:[%s3 + $0x4c] sm:$0xf]
        %v1651 = vld [vmem:[%s3 + $0x50] sm:$0xf]
        %v1652 = vld [vmem:[%s3 + $0x54] sm:$0xf]
        %v1653 = vld [vmem:[%s3 + $0x58] sm:$0xf]
        %v1654 = vld [vmem:[%s3 + $0x5c] sm:$0xf]
        %v1655 = vld [vmem:[%s3 + $0x60] sm:$0xf]
        %v1656 = vld [vmem:[%s3 + $0x64] sm:$0xf]
        %v1657 = vld [vmem:[%s3 + $0x68] sm:$0xf]
        %v1658 = vld [vmem:[%s3 + $0x6c] sm:$0xf]
        %v1659 = vld [vmem:[%s3 + $0x70] sm:$0xf]
        %v1660 = vld [vmem:[%s3 + $0x74] sm:$0xf]
        %v1661 = vld [vmem:[%s3 + $0x78] sm:$0xf]
        %v1662 = vld [vmem:[%s3 + $0x7c] sm:$0xf]
        %v1663 = vld [vmem:[%s4] sm:$0x1]
        %v1665 = vlaneseq
        %v1666 = vshrl.u32 %v1665, 7
        %v1667 = vsub.s32 0, %v1666
        %v1668 = vrot.slane %v1663, %v1667
        %v1702 = vunpack.c.l.b16 %v1631
        %v1703 = vunpack.c.l.b16 %v1632
        %v1704 = vunpack.c.l.b16 %v1633
        %v1705 = vunpack.c.l.b16 %v1634
        %v1706 = vunpack.c.l.b16 %v1635
        %v1707 = vunpack.c.l.b16 %v1636
        %v1708 = vunpack.c.l.b16 %v1637
        %v1709 = vunpack.c.l.b16 %v1638
        %v1710 = vunpack.c.l.b16 %v1639
        %v1711 = vunpack.c.l.b16 %v1640
        %v1712 = vunpack.c.l.b16 %v1641
        %v1713 = vunpack.c.l.b16 %v1642
        %v1714 = vunpack.c.l.b16 %v1643
        %v1715 = vunpack.c.l.b16 %v1644
        %v1716 = vunpack.c.l.b16 %v1645
        %v1717 = vunpack.c.l.b16 %v1646
        %v1718 = vunpack.c.l.b16 %v1647
        %v1719 = vunpack.c.l.b16 %v1648
        %v1720 = vunpack.c.l.b16 %v1649
        %v1721 = vunpack.c.l.b16 %v1650
        %v1722 = vunpack.c.l.b16 %v1651
        %v1723 = vunpack.c.l.b16 %v1652
        %v1724 = vunpack.c.l.b16 %v1653
        %v1725 = vunpack.c.l.b16 %v1654
        %v1726 = vunpack.c.l.b16 %v1655
        %v1727 = vunpack.c.l.b16 %v1656
        %v1728 = vunpack.c.l.b16 %v1657
        %v1729 = vunpack.c.l.b16 %v1658
        %v1730 = vunpack.c.l.b16 %v1659
        %v1731 = vunpack.c.l.b16 %v1660
        %v1732 = vunpack.c.l.b16 %v1661
        %v1733 = vunpack.c.l.b16 %v1662
        %v1734 = vpack.c.b16 %v1703, %v1702
        %v1735 = vpack.c.b16 %v1705, %v1704
        %v1736 = vpack.c.b16 %v1707, %v1706
        %v1737 = vpack.c.b16 %v1709, %v1708
        %v1738 = vpack.c.b16 %v1711, %v1710
        %v1739 = vpack.c.b16 %v1713, %v1712
        %v1740 = vpack.c.b16 %v1715, %v1714
        %v1741 = vpack.c.b16 %v1717, %v1716
        %v1742 = vpack.c.b16 %v1719, %v1718
        %v1743 = vpack.c.b16 %v1721, %v1720
        %v1744 = vpack.c.b16 %v1723, %v1722
        %v1745 = vpack.c.b16 %v1725, %v1724
        %v1746 = vpack.c.b16 %v1727, %v1726
        %v1747 = vpack.c.b16 %v1729, %v1728
        %v1748 = vpack.c.b16 %v1731, %v1730
        %v1749 = vpack.c.b16 %v1733, %v1732
        %1766 = vmatprep.subr.bf16.mxu0 0
        %1767 = vmatpush1.bf16.msra.mxu0 %v1741
        %1768 = vmatprep.subr.bf16.mxu0 0
        %1769 = vmatpush1.bf16.msra.mxu0 %v1740
        %1770 = vmatprep.subr.bf16.mxu0 0
        %1771 = vmatpush1.bf16.msra.mxu0 %v1739
        %1772 = vmatprep.subr.bf16.mxu0 0
        %1773 = vmatpush1.bf16.msra.mxu0 %v1738
        %1774 = vmatprep.subr.bf16.mxu0 0
        %1775 = vmatpush1.bf16.msra.mxu0 %v1737
        %1776 = vmatprep.subr.bf16.mxu0 0
        %1777 = vmatpush1.bf16.msra.mxu0 %v1736
        %1778 = vmatprep.subr.bf16.mxu0 0
        %1779 = vmatpush1.bf16.msra.mxu0 %v1735
        %1780 = vmatprep.subr.bf16.mxu0 0
        %1781 = vmatpush1.bf16.msra.mxu0 %v1734
        %1782 = vmatprep.subr.bf16.mxu0 0
        %1783 = vmatpush2.bf16.msra.mxu0 %v1749
        %1784 = vmatprep.subr.bf16.mxu0 0
        %1785 = vmatpush2.bf16.msra.mxu0 %v1748
        %1786 = vmatprep.subr.bf16.mxu0 0
        %1787 = vmatpush2.bf16.msra.mxu0 %v1747
        %1788 = vmatprep.subr.bf16.mxu0 0
        %1789 = vmatpush2.bf16.msra.mxu0 %v1746
        %1790 = vmatprep.subr.bf16.mxu0 0
        %1791 = vmatpush2.bf16.msra.mxu0 %v1745
        %1792 = vmatprep.subr.bf16.mxu0 0
        %1793 = vmatpush2.bf16.msra.mxu0 %v1744
        %1794 = vmatprep.subr.bf16.mxu0 0
        %1795 = vmatpush2.bf16.msra.mxu0 %v1743
        %1796 = vmatprep.subr.bf16.mxu0 0
        %1797 = vmatpush2.bf16.msra.mxu0 %v1742
        %1798 = vmatprep.mubr.bf16.mxu0 %v1616
        %1799 = vmatmul.mubr.bf16.gmra.mxu0 %v1615
        %v1800 = vpop.f32.mrf.mxu0
        %v1801 = vadd.f32 %v1668, %v1800
        %v1802 = vpop.f32.mrf.mxu0
        %v1803 = vpop.f32.mrf.mxu0
        %v1804 = vadd.f32 %v1668, %v1803
        %v1805 = vpop.f32.mrf.mxu0
        %1806 = vmatprep.mubr.bf16.mxu0 %v1618
        %1807 = vmatmul.mubr.bf16.gmra.mxu0 %v1617
        %v1808 = vpop.f32.mrf.mxu0
        %v1809 = vadd.f32 %v1668, %v1808
        %v1810 = vpop.f32.mrf.mxu0
        %v1811 = vpop.f32.mrf.mxu0
        %v1812 = vadd.f32 %v1668, %v1811
        %v1813 = vpop.f32.mrf.mxu0
        %1814 = vmatprep.mubr.bf16.mxu0 %v1620
        %1815 = vmatmul.mubr.bf16.gmra.mxu0 %v1619
        %v1816 = vpop.f32.mrf.mxu0
        %v1817 = vadd.f32 %v1668, %v1816
        %v1818 = vpop.f32.mrf.mxu0
        %v1819 = vpop.f32.mrf.mxu0
        %v1820 = vadd.f32 %v1668, %v1819
        %v1821 = vpop.f32.mrf.mxu0
        %1822 = vmatprep.mubr.bf16.mxu0 %v1622
        %1823 = vmatmul.mubr.bf16.gmra.mxu0 %v1621
        %v1824 = vpop.f32.mrf.mxu0
        %v1825 = vadd.f32 %v1668, %v1824
        %v1826 = vpop.f32.mrf.mxu0
        %v1827 = vpop.f32.mrf.mxu0
        %v1828 = vadd.f32 %v1668, %v1827
        %v1829 = vpop.f32.mrf.mxu0
        %1830 = vmatprep.mubr.bf16.mxu0 %v1624
        %1831 = vmatmul.mubr.bf16.gmra.mxu0 %v1623
        %v1832 = vpop.f32.mrf.mxu0
        %v1833 = vadd.f32 %v1668, %v1832
        %v1834 = vpop.f32.mrf.mxu0
        %v1835 = vpop.f32.mrf.mxu0
        %v1836 = vadd.f32 %v1668, %v1835
        %v1837 = vpop.f32.mrf.mxu0
        %1838 = vmatprep.mubr.bf16.mxu0 %v1626
        %1839 = vmatmul.mubr.bf16.gmra.mxu0 %v1625
        %v1840 = vpop.f32.mrf.mxu0
        %v1841 = vadd.f32 %v1668, %v1840
        %v1842 = vpop.f32.mrf.mxu0
        %v1843 = vpop.f32.mrf.mxu0
        %v1844 = vadd.f32 %v1668, %v1843
        %v1845 = vpop.f32.mrf.mxu0
        %1846 = vmatprep.mubr.bf16.mxu0 %v1628
        %1847 = vmatmul.mubr.bf16.gmra.mxu0 %v1627
        %v1848 = vpop.f32.mrf.mxu0
        %v1849 = vadd.f32 %v1668, %v1848
        %v1850 = vpop.f32.mrf.mxu0
        %v1851 = vpop.f32.mrf.mxu0
        %v1852 = vadd.f32 %v1668, %v1851
        %v1853 = vpop.f32.mrf.mxu0
        %1854 = vmatprep.mubr.bf16.mxu0 %v1630
        %1855 = vmatmul.mubr.bf16.gmra.mxu0 %v1629
        %v1856 = vpop.f32.mrf.mxu0
        %v1857 = vadd.f32 %v1668, %v1856
        %v1858 = vpop.f32.mrf.mxu0
        %v1859 = vpop.f32.mrf.mxu0
        %v1860 = vadd.f32 %v1668, %v1859
        %v1861 = vpop.f32.mrf.mxu0
        %1862 = vdwg.mxu0
        %v1863 = vmax.f32 %v1801, 0.0
        %v1864 = vmax.f32 %v1804, 0.0
        %v1865 = vmax.f32 %v1809, 0.0
        %v1866 = vmax.f32 %v1812, 0.0
        %v1867 = vmax.f32 %v1817, 0.0
        %v1868 = vmax.f32 %v1820, 0.0
        %v1869 = vmax.f32 %v1825, 0.0
        %v1870 = vmax.f32 %v1828, 0.0
        %v1871 = vmax.f32 %v1833, 0.0
        %v1872 = vmax.f32 %v1836, 0.0
        %v1873 = vmax.f32 %v1841, 0.0
        %v1874 = vmax.f32 %v1844, 0.0
        %v1875 = vmax.f32 %v1849, 0.0
        %v1876 = vmax.f32 %v1852, 0.0
        %v1877 = vmax.f32 %v1857, 0.0
        %v1878 = vmax.f32 %v1860, 0.0
        %v1879 = vpack.c.bf16 %v1864, %v1863
        %v1880 = vpack.c.bf16 %v1866, %v1865
        %v1881 = vpack.c.bf16 %v1868, %v1867
        %v1882 = vpack.c.bf16 %v1870, %v1869
        %v1883 = vpack.c.bf16 %v1872, %v1871
        %v1884 = vpack.c.bf16 %v1874, %v1873
        %v1885 = vpack.c.bf16 %v1876, %v1875
        %v1886 = vpack.c.bf16 %v1878, %v1877
        %v1887 = vld [vmem:[%s5] sm:$0xff]
        %v1888 = vld [vmem:[%s5 + $0x8] sm:$0xff]
        %v1889 = vld [vmem:[%s5 + $0x10] sm:$0xff]
        %v1890 = vld [vmem:[%s5 + $0x18] sm:$0xff]
        %v1891 = vld [vmem:[%s5 + $0x20] sm:$0xff]
        %v1892 = vld [vmem:[%s5 + $0x28] sm:$0xff]
        %v1893 = vld [vmem:[%s5 + $0x30] sm:$0xff]
        %v1894 = vld [vmem:[%s5 + $0x38] sm:$0xff]
        %v1895 = vld [vmem:[%s5 + $0x40] sm:$0xff]
        %v1896 = vld [vmem:[%s5 + $0x48] sm:$0xff]
        %v1897 = vld [vmem:[%s5 + $0x50] sm:$0xff]
        %v1898 = vld [vmem:[%s5 + $0x58] sm:$0xff]
        %v1899 = vld [vmem:[%s5 + $0x60] sm:$0xff]
        %v1900 = vld [vmem:[%s5 + $0x68] sm:$0xff]
        %v1901 = vld [vmem:[%s5 + $0x70] sm:$0xff]
        %v1902 = vld [vmem:[%s5 + $0x78] sm:$0xff]
        %v1903 = vld [vmem:[%s6] sm:$0x3]
        %v1905 = vlaneseq
        %v1906 = vshrl.u32 %v1905, 7
        %v1907 = vsub.s32 0, %v1906
        %v1908 = vrot.slane %v1903, %v1907
        %v1909 = vlaneseq
        %v1910 = vshrl.u32 %v1909, 7
        %v1911 = vsub.s32 1, %v1910
        %v1912 = vrot.slane %v1903, %v1911
        %v1931 = vunpack.c.l.b16 %v1887
        %v1932 = vunpack.c.h.b16 %v1887
        %v1933 = vunpack.c.l.b16 %v1888
        %v1934 = vunpack.c.h.b16 %v1888
        %v1935 = vunpack.c.l.b16 %v1889
        %v1936 = vunpack.c.h.b16 %v1889
        %v1937 = vunpack.c.l.b16 %v1890
        %v1938 = vunpack.c.h.b16 %v1890
        %v1939 = vunpack.c.l.b16 %v1891
        %v1940 = vunpack.c.h.b16 %v1891
        %v1941 = vunpack.c.l.b16 %v1892
        %v1942 = vunpack.c.h.b16 %v1892
        %v1943 = vunpack.c.l.b16 %v1893
        %v1944 = vunpack.c.h.b16 %v1893
        %v1945 = vunpack.c.l.b16 %v1894
        %v1946 = vunpack.c.h.b16 %v1894
        %v1947 = vunpack.c.l.b16 %v1895
        %v1948 = vunpack.c.h.b16 %v1895
        %v1949 = vunpack.c.l.b16 %v1896
        %v1950 = vunpack.c.h.b16 %v1896
        %v1951 = vunpack.c.l.b16 %v1897
        %v1952 = vunpack.c.h.b16 %v1897
        %v1953 = vunpack.c.l.b16 %v1898
        %v1954 = vunpack.c.h.b16 %v1898
        %v1955 = vunpack.c.l.b16 %v1899
        %v1956 = vunpack.c.h.b16 %v1899
        %v1957 = vunpack.c.l.b16 %v1900
        %v1958 = vunpack.c.h.b16 %v1900
        %v1959 = vunpack.c.l.b16 %v1901
        %v1960 = vunpack.c.h.b16 %v1901
        %v1961 = vunpack.c.l.b16 %v1902
        %v1962 = vunpack.c.h.b16 %v1902
        %v1963 = vpack.c.b16 %v1933, %v1931
        %v1964 = vpack.c.b16 %v1934, %v1932
        %v1965 = vpack.c.b16 %v1937, %v1935
        %v1966 = vpack.c.b16 %v1938, %v1936
        %v1967 = vpack.c.b16 %v1941, %v1939
        %v1968 = vpack.c.b16 %v1942, %v1940
        %v1969 = vpack.c.b16 %v1945, %v1943
        %v1970 = vpack.c.b16 %v1946, %v1944
        %v1971 = vpack.c.b16 %v1949, %v1947
        %v1972 = vpack.c.b16 %v1950, %v1948
        %v1973 = vpack.c.b16 %v1953, %v1951
        %v1974 = vpack.c.b16 %v1954, %v1952
        %v1975 = vpack.c.b16 %v1957, %v1955
        %v1976 = vpack.c.b16 %v1958, %v1956
        %v1977 = vpack.c.b16 %v1961, %v1959
        %v1978 = vpack.c.b16 %v1962, %v1960
        %1995 = vmatprep.subr.bf16.mxu0 %v1978
        %1996 = vmatpush1.bf16.msra.mxu0 %v1977
        %1997 = vmatprep.subr.bf16.mxu0 %v1976
        %1998 = vmatpush1.bf16.msra.mxu0 %v1975
        %1999 = vmatprep.subr.bf16.mxu0 %v1974
        %2000 = vmatpush1.bf16.msra.mxu0 %v1973
        %2001 = vmatprep.subr.bf16.mxu0 %v1972
        %2002 = vmatpush1.bf16.msra.mxu0 %v1971
        %2003 = vmatprep.subr.bf16.mxu0 %v1970
        %2004 = vmatpush1.bf16.msra.mxu0 %v1969
        %2005 = vmatprep.subr.bf16.mxu0 %v1968
        %2006 = vmatpush1.bf16.msra.mxu0 %v1967
        %2007 = vmatprep.subr.bf16.mxu0 %v1966
        %2008 = vmatpush1.bf16.msra.mxu0 %v1965
        %2009 = vmatprep.subr.bf16.mxu0 %v1964
        %2010 = vmatpush1.bf16.msra.mxu0 %v1963
        %2011 = vmatprep.subr.bf16.mxu0 0
        %2012 = vmatpush2.bf16.msra.mxu0 0
        %2013 = vmatprep.subr.bf16.mxu0 0
        %2014 = vmatpush2.bf16.msra.mxu0 0
        %2015 = vmatprep.subr.bf16.mxu0 0
        %2016 = vmatpush2.bf16.msra.mxu0 0
        %2017 = vmatprep.subr.bf16.mxu0 0
        %2018 = vmatpush2.bf16.msra.mxu0 0
        %2019 = vmatprep.subr.bf16.mxu0 0
        %2020 = vmatpush2.bf16.msra.mxu0 0
        %2021 = vmatprep.subr.bf16.mxu0 0
        %2022 = vmatpush2.bf16.msra.mxu0 0
        %2023 = vmatprep.subr.bf16.mxu0 0
        %2024 = vmatpush2.bf16.msra.mxu0 0
        %2025 = vmatprep.subr.bf16.mxu0 0
        %2026 = vmatpush2.bf16.msra.mxu0 0
        %2027 = vmatprep.mubr.bf16.mxu0 0
        %2028 = vmatmul.mubr.bf16.gmra.mxu0 %v1879
        %v2029 = vpop.f32.mrf.mxu0
        %v2030 = vadd.f32 %v1908, %v2029
        %v2031 = vpop.f32.mrf.mxu0
        %v2032 = vadd.f32 %v1912, %v2031
        %v2033 = vpop.f32.mrf.mxu0
        %v2034 = vadd.f32 %v1908, %v2033
        %v2035 = vpop.f32.mrf.mxu0
        %v2036 = vadd.f32 %v1912, %v2035
        %2037 = vmatprep.mubr.bf16.mxu0 0
        %2038 = vmatmul.mubr.bf16.gmra.mxu0 %v1880
        %v2039 = vpop.f32.mrf.mxu0
        %v2040 = vadd.f32 %v1908, %v2039
        %v2041 = vpop.f32.mrf.mxu0
        %v2042 = vadd.f32 %v1912, %v2041
        %v2043 = vpop.f32.mrf.mxu0
        %v2044 = vadd.f32 %v1908, %v2043
        %v2045 = vpop.f32.mrf.mxu0
        %v2046 = vadd.f32 %v1912, %v2045
        %2047 = vmatprep.mubr.bf16.mxu0 0
        %2048 = vmatmul.mubr.bf16.gmra.mxu0 %v1881
        %v2049 = vpop.f32.mrf.mxu0
        %v2050 = vadd.f32 %v1908, %v2049
        %v2051 = vpop.f32.mrf.mxu0
        %v2052 = vadd.f32 %v1912, %v2051
        %v2053 = vpop.f32.mrf.mxu0
        %v2054 = vadd.f32 %v1908, %v2053
        %v2055 = vpop.f32.mrf.mxu0
        %v2056 = vadd.f32 %v1912, %v2055
        %2057 = vmatprep.mubr.bf16.mxu0 0
        %2058 = vmatmul.mubr.bf16.gmra.mxu0 %v1882
        %v2059 = vpop.f32.mrf.mxu0
        %v2060 = vadd.f32 %v1908, %v2059
        %v2061 = vpop.f32.mrf.mxu0
        %v2062 = vadd.f32 %v1912, %v2061
        %v2063 = vpop.f32.mrf.mxu0
        %v2064 = vadd.f32 %v1908, %v2063
        %v2065 = vpop.f32.mrf.mxu0
        %v2066 = vadd.f32 %v1912, %v2065
        %2067 = vmatprep.mubr.bf16.mxu0 0
        %2068 = vmatmul.mubr.bf16.gmra.mxu0 %v1883
        %v2069 = vpop.f32.mrf.mxu0
        %v2070 = vadd.f32 %v1908, %v2069
        %v2071 = vpop.f32.mrf.mxu0
        %v2072 = vadd.f32 %v1912, %v2071
        %v2073 = vpop.f32.mrf.mxu0
        %v2074 = vadd.f32 %v1908, %v2073
        %v2075 = vpop.f32.mrf.mxu0
        %v2076 = vadd.f32 %v1912, %v2075
        %2077 = vmatprep.mubr.bf16.mxu0 0
        %2078 = vmatmul.mubr.bf16.gmra.mxu0 %v1884
        %v2079 = vpop.f32.mrf.mxu0
        %v2080 = vadd.f32 %v1908, %v2079
        %v2081 = vpop.f32.mrf.mxu0
        %v2082 = vadd.f32 %v1912, %v2081
        %v2083 = vpop.f32.mrf.mxu0
        %v2084 = vadd.f32 %v1908, %v2083
        %v2085 = vpop.f32.mrf.mxu0
        %v2086 = vadd.f32 %v1912, %v2085
        %2087 = vmatprep.mubr.bf16.mxu0 0
        %2088 = vmatmul.mubr.bf16.gmra.mxu0 %v1885
        %v2089 = vpop.f32.mrf.mxu0
        %v2090 = vadd.f32 %v1908, %v2089
        %v2091 = vpop.f32.mrf.mxu0
        %v2092 = vadd.f32 %v1912, %v2091
        %v2093 = vpop.f32.mrf.mxu0
        %v2094 = vadd.f32 %v1908, %v2093
        %v2095 = vpop.f32.mrf.mxu0
        %v2096 = vadd.f32 %v1912, %v2095
        %2097 = vmatprep.mubr.bf16.mxu0 0
        %2098 = vmatmul.mubr.bf16.gmra.mxu0 %v1886
        %v2099 = vpop.f32.mrf.mxu0
        %v2100 = vadd.f32 %v1908, %v2099
        %v2101 = vpop.f32.mrf.mxu0
        %v2102 = vadd.f32 %v1912, %v2101
        %v2103 = vpop.f32.mrf.mxu0
        %v2104 = vadd.f32 %v1908, %v2103
        %v2105 = vpop.f32.mrf.mxu0
        %v2106 = vadd.f32 %v1912, %v2105
        %2107 = vdwg.mxu0
        %v2108 = vmax.f32 %v2030, 0.0
        %v2109 = vmax.f32 %v2032, 0.0
        %v2110 = vmax.f32 %v2034, 0.0
        %v2111 = vmax.f32 %v2036, 0.0
        %v2112 = vmax.f32 %v2040, 0.0
        %v2113 = vmax.f32 %v2042, 0.0
        %v2114 = vmax.f32 %v2044, 0.0
        %v2115 = vmax.f32 %v2046, 0.0
        %v2116 = vmax.f32 %v2050, 0.0
        %v2117 = vmax.f32 %v2052, 0.0
        %v2118 = vmax.f32 %v2054, 0.0
        %v2119 = vmax.f32 %v2056, 0.0
        %v2120 = vmax.f32 %v2060, 0.0
        %v2121 = vmax.f32 %v2062, 0.0
        %v2122 = vmax.f32 %v2064, 0.0
        %v2123 = vmax.f32 %v2066, 0.0
        %v2124 = vmax.f32 %v2070, 0.0
        %v2125 = vmax.f32 %v2072, 0.0
        %v2126 = vmax.f32 %v2074, 0.0
        %v2127 = vmax.f32 %v2076, 0.0
        %v2128 = vmax.f32 %v2080, 0.0
        %v2129 = vmax.f32 %v2082, 0.0
        %v2130 = vmax.f32 %v2084, 0.0
        %v2131 = vmax.f32 %v2086, 0.0
        %v2132 = vmax.f32 %v2090, 0.0
        %v2133 = vmax.f32 %v2092, 0.0
        %v2134 = vmax.f32 %v2094, 0.0
        %v2135 = vmax.f32 %v2096, 0.0
        %v2136 = vmax.f32 %v2100, 0.0
        %v2137 = vmax.f32 %v2102, 0.0
        %v2138 = vmax.f32 %v2104, 0.0
        %v2139 = vmax.f32 %v2106, 0.0
        %v2140 = vpack.c.bf16 %v2110, %v2108
        %v2141 = vpack.c.bf16 %v2111, %v2109
        %v2142 = vpack.c.bf16 %v2114, %v2112
        %v2143 = vpack.c.bf16 %v2115, %v2113
        %v2144 = vpack.c.bf16 %v2118, %v2116
        %v2145 = vpack.c.bf16 %v2119, %v2117
        %v2146 = vpack.c.bf16 %v2122, %v2120
        %v2147 = vpack.c.bf16 %v2123, %v2121
        %v2148 = vpack.c.bf16 %v2126, %v2124
        %v2149 = vpack.c.bf16 %v2127, %v2125
        %v2150 = vpack.c.bf16 %v2130, %v2128
        %v2151 = vpack.c.bf16 %v2131, %v2129
        %v2152 = vpack.c.bf16 %v2134, %v2132
        %v2153 = vpack.c.bf16 %v2135, %v2133
        %v2154 = vpack.c.bf16 %v2138, %v2136
        %v2155 = vpack.c.bf16 %v2139, %v2137
        %v2156 = vld [vmem:[%s7] sm:$0xff]
        %v2157 = vld [vmem:[%s7 + $0x8] sm:$0xff]
        %v2158 = vld [vmem:[%s7 + $0x10] sm:$0xff]
        %v2159 = vld [vmem:[%s7 + $0x18] sm:$0xf]
        %v2160 = vld [vmem:[%s7 + $0x1c] sm:$0xff]
        %v2161 = vld [vmem:[%s7 + $0x24] sm:$0xff]
        %v2162 = vld [vmem:[%s7 + $0x2c] sm:$0xff]
        %v2163 = vld [vmem:[%s7 + $0x34] sm:$0xf]
        %v2164 = vld [vmem:[%s7 + $0x38] sm:$0xff]
        %v2165 = vld [vmem:[%s7 + $0x40] sm:$0xff]
        %v2166 = vld [vmem:[%s7 + $0x48] sm:$0xff]
        %v2167 = vld [vmem:[%s7 + $0x50] sm:$0xf]
        %v2168 = vld [vmem:[%s7 + $0x54] sm:$0xff]
        %v2169 = vld [vmem:[%s7 + $0x5c] sm:$0xff]
        %v2170 = vld [vmem:[%s7 + $0x64] sm:$0xff]
        %v2171 = vld [vmem:[%s7 + $0x6c] sm:$0xf]
        %v2172 = vld [vmem:[%s7 + $0x70] sm:$0xff]
        %v2173 = vld [vmem:[%s7 + $0x78] sm:$0xff]
        %v2174 = vld [vmem:[%s7 + $0x80] sm:$0xff]
        %v2175 = vld [vmem:[%s7 + $0x88] sm:$0xf]
        %v2176 = vld [vmem:[%s7 + $0x8c] sm:$0xff]
        %v2177 = vld [vmem:[%s7 + $0x94] sm:$0xff]
        %v2178 = vld [vmem:[%s7 + $0x9c] sm:$0xff]
        %v2179 = vld [vmem:[%s7 + $0xa4] sm:$0xf]
        %v2180 = vld [vmem:[%s7 + $0xa8] sm:$0xff]
        %v2181 = vld [vmem:[%s7 + $0xb0] sm:$0xff]
        %v2182 = vld [vmem:[%s7 + $0xb8] sm:$0xff]
        %v2183 = vld [vmem:[%s7 + $0xc0] sm:$0xf]
        %v2184 = vld [vmem:[%s7 + $0xc4] sm:$0xff]
        %v2185 = vld [vmem:[%s7 + $0xcc] sm:$0xff]
        %v2186 = vld [vmem:[%s7 + $0xd4] sm:$0xff]
        %v2187 = vld [vmem:[%s7 + $0xdc] sm:$0xf]
        %v2188 = vld [vmem:[%s7 + $0xe0] sm:$0xff]
        %v2189 = vld [vmem:[%s7 + $0xe8] sm:$0xff]
        %v2190 = vld [vmem:[%s7 + $0xf0] sm:$0xff]
        %v2191 = vld [vmem:[%s7 + $0xf8] sm:$0xf]
        %v2192 = vld [vmem:[%s7 + $0xfc] sm:$0xff]
        %v2193 = vld [vmem:[%s7 + $0x104] sm:$0xff]
        %v2194 = vld [vmem:[%s7 + $0x10c] sm:$0xff]
        %v2195 = vld [vmem:[%s7 + $0x114] sm:$0xf]
        %v2196 = vld [vmem:[%s7 + $0x118] sm:$0xff]
        %v2197 = vld [vmem:[%s7 + $0x120] sm:$0xff]
        %v2198 = vld [vmem:[%s7 + $0x128] sm:$0xff]
        %v2199 = vld [vmem:[%s7 + $0x130] sm:$0xf]
        %v2200 = vld [vmem:[%s7 + $0x134] sm:$0xff]
        %v2201 = vld [vmem:[%s7 + $0x13c] sm:$0xff]
        %v2202 = vld [vmem:[%s7 + $0x144] sm:$0xff]
        %v2203 = vld [vmem:[%s7 + $0x14c] sm:$0xf]
        %v2204 = vld [vmem:[%s7 + $0x150] sm:$0xff]
        %v2205 = vld [vmem:[%s7 + $0x158] sm:$0xff]
        %v2206 = vld [vmem:[%s7 + $0x160] sm:$0xff]
        %v2207 = vld [vmem:[%s7 + $0x168] sm:$0xf]
        %v2208 = vld [vmem:[%s7 + $0x16c] sm:$0xff]
        %v2209 = vld [vmem:[%s7 + $0x174] sm:$0xff]
        %v2210 = vld [vmem:[%s7 + $0x17c] sm:$0xff]
        %v2211 = vld [vmem:[%s7 + $0x184] sm:$0xf]
        %v2212 = vld [vmem:[%s7 + $0x188] sm:$0xff]
        %v2213 = vld [vmem:[%s7 + $0x190] sm:$0xff]
        %v2214 = vld [vmem:[%s7 + $0x198] sm:$0xff]
        %v2215 = vld [vmem:[%s7 + $0x1a0] sm:$0xf]
        %v2216 = vld [vmem:[%s7 + $0x1a4] sm:$0xff]
        %v2217 = vld [vmem:[%s7 + $0x1ac] sm:$0xff]
        %v2218 = vld [vmem:[%s7 + $0x1b4] sm:$0xff]
        %v2219 = vld [vmem:[%s7 + $0x1bc] sm:$0xf]
        %v2220 = vld [vmem:[%s7 + $0x1c0] sm:$0xff]
        %v2221 = vld [vmem:[%s7 + $0x1c8] sm:$0xff]
        %v2222 = vld [vmem:[%s7 + $0x1d0] sm:$0xff]
        %v2223 = vld [vmem:[%s7 + $0x1d8] sm:$0xf]
        %v2224 = vld [vmem:[%s7 + $0x1dc] sm:$0xff]
        %v2225 = vld [vmem:[%s7 + $0x1e4] sm:$0xff]
        %v2226 = vld [vmem:[%s7 + $0x1ec] sm:$0xff]
        %v2227 = vld [vmem:[%s7 + $0x1f4] sm:$0xf]
        %v2228 = vld [vmem:[%s7 + $0x1f8] sm:$0xff]
        %v2229 = vld [vmem:[%s7 + $0x200] sm:$0xff]
        %v2230 = vld [vmem:[%s7 + $0x208] sm:$0xff]
        %v2231 = vld [vmem:[%s7 + $0x210] sm:$0xf]
        %v2232 = vld [vmem:[%s7 + $0x214] sm:$0xff]
        %v2233 = vld [vmem:[%s7 + $0x21c] sm:$0xff]
        %v2234 = vld [vmem:[%s7 + $0x224] sm:$0xff]
        %v2235 = vld [vmem:[%s7 + $0x22c] sm:$0xf]
        %v2236 = vld [vmem:[%s7 + $0x230] sm:$0xff]
        %v2237 = vld [vmem:[%s7 + $0x238] sm:$0xff]
        %v2238 = vld [vmem:[%s7 + $0x240] sm:$0xff]
        %v2239 = vld [vmem:[%s7 + $0x248] sm:$0xf]
        %v2240 = vld [vmem:[%s7 + $0x24c] sm:$0xff]
        %v2241 = vld [vmem:[%s7 + $0x254] sm:$0xff]
        %v2242 = vld [vmem:[%s7 + $0x25c] sm:$0xff]
        %v2243 = vld [vmem:[%s7 + $0x264] sm:$0xf]
        %v2244 = vld [vmem:[%s7 + $0x268] sm:$0xff]
        %v2245 = vld [vmem:[%s7 + $0x270] sm:$0xff]
        %v2246 = vld [vmem:[%s7 + $0x278] sm:$0xff]
        %v2247 = vld [vmem:[%s7 + $0x280] sm:$0xf]
        %v2248 = vld [vmem:[%s7 + $0x284] sm:$0xff]
        %v2249 = vld [vmem:[%s7 + $0x28c] sm:$0xff]
        %v2250 = vld [vmem:[%s7 + $0x294] sm:$0xff]
        %v2251 = vld [vmem:[%s7 + $0x29c] sm:$0xf]
        %v2252 = vld [vmem:[%s7 + $0x2a0] sm:$0xff]
        %v2253 = vld [vmem:[%s7 + $0x2a8] sm:$0xff]
        %v2254 = vld [vmem:[%s7 + $0x2b0] sm:$0xff]
        %v2255 = vld [vmem:[%s7 + $0x2b8] sm:$0xf]
        %v2256 = vld [vmem:[%s7 + $0x2bc] sm:$0xff]
        %v2257 = vld [vmem:[%s7 + $0x2c4] sm:$0xff]
        %v2258 = vld [vmem:[%s7 + $0x2cc] sm:$0xff]
        %v2259 = vld [vmem:[%s7 + $0x2d4] sm:$0xf]
        %v2260 = vld [vmem:[%s7 + $0x2d8] sm:$0xff]
        %v2261 = vld [vmem:[%s7 + $0x2e0] sm:$0xff]
        %v2262 = vld [vmem:[%s7 + $0x2e8] sm:$0xff]
        %v2263 = vld [vmem:[%s7 + $0x2f0] sm:$0xf]
        %v2264 = vld [vmem:[%s7 + $0x2f4] sm:$0xff]
        %v2265 = vld [vmem:[%s7 + $0x2fc] sm:$0xff]
        %v2266 = vld [vmem:[%s7 + $0x304] sm:$0xff]
        %v2267 = vld [vmem:[%s7 + $0x30c] sm:$0xf]
        %v2268 = vld [vmem:[%s7 + $0x310] sm:$0xff]
        %v2269 = vld [vmem:[%s7 + $0x318] sm:$0xff]
        %v2270 = vld [vmem:[%s7 + $0x320] sm:$0xff]
        %v2271 = vld [vmem:[%s7 + $0x328] sm:$0xf]
        %v2272 = vld [vmem:[%s7 + $0x32c] sm:$0xff]
        %v2273 = vld [vmem:[%s7 + $0x334] sm:$0xff]
        %v2274 = vld [vmem:[%s7 + $0x33c] sm:$0xff]
        %v2275 = vld [vmem:[%s7 + $0x344] sm:$0xf]
        %v2276 = vld [vmem:[%s7 + $0x348] sm:$0xff]
        %v2277 = vld [vmem:[%s7 + $0x350] sm:$0xff]
        %v2278 = vld [vmem:[%s7 + $0x358] sm:$0xff]
        %v2279 = vld [vmem:[%s7 + $0x360] sm:$0xf]
        %v2280 = vld [vmem:[%s7 + $0x364] sm:$0xff]
        %v2281 = vld [vmem:[%s7 + $0x36c] sm:$0xff]
        %v2282 = vld [vmem:[%s7 + $0x374] sm:$0xff]
        %v2283 = vld [vmem:[%s7 + $0x37c] sm:$0xf]
        %v2284 = vld [vmem:[%s8] sm:$0xff]
        %v2286 = vlaneseq
        %v2287 = vshrl.u32 %v2286, 7
        %v2288 = vsub.s32 0, %v2287
        %v2289 = vrot.slane %v2284, %v2288
        %v2290 = vlaneseq
        %v2291 = vshrl.u32 %v2290, 7
        %v2292 = vsub.s32 1, %v2291
        %v2293 = vrot.slane %v2284, %v2292
        %v2294 = vlaneseq
        %v2295 = vshrl.u32 %v2294, 7
        %v2296 = vsub.s32 2, %v2295
        %v2297 = vrot.slane %v2284, %v2296
        %v2298 = vlaneseq
        %v2299 = vshrl.u32 %v2298, 7
        %v2300 = vsub.s32 3, %v2299
        %v2301 = vrot.slane %v2284, %v2300
        %v2302 = vlaneseq
        %v2303 = vshrl.u32 %v2302, 7
        %v2304 = vsub.s32 4, %v2303
        %v2305 = vrot.slane %v2284, %v2304
        %v2306 = vlaneseq
        %v2307 = vshrl.u32 %v2306, 7
        %v2308 = vsub.s32 5, %v2307
        %v2309 = vrot.slane %v2284, %v2308
        %v2310 = vlaneseq
        %v2311 = vshrl.u32 %v2310, 7
        %v2312 = vsub.s32 6, %v2311
        %v2313 = vrot.slane %v2284, %v2312
        %v2449 = vunpack.c.l.b16 %v2156
        %v2450 = vunpack.c.h.b16 %v2156
        %v2451 = vunpack.c.l.b16 %v2157
        %v2452 = vunpack.c.h.b16 %v2157
        %v2453 = vunpack.c.l.b16 %v2158
        %v2454 = vunpack.c.h.b16 %v2158
        %v2455 = vunpack.c.l.b16 %v2159
        %v2456 = vunpack.c.l.b16 %v2160
        %v2457 = vunpack.c.h.b16 %v2160
        %v2458 = vunpack.c.l.b16 %v2161
        %v2459 = vunpack.c.h.b16 %v2161
        %v2460 = vunpack.c.l.b16 %v2162
        %v2461 = vunpack.c.h.b16 %v2162
        %v2462 = vunpack.c.l.b16 %v2163
        %v2463 = vunpack.c.l.b16 %v2164
        %v2464 = vunpack.c.h.b16 %v2164
        %v2465 = vunpack.c.l.b16 %v2165
        %v2466 = vunpack.c.h.b16 %v2165
        %v2467 = vunpack.c.l.b16 %v2166
        %v2468 = vunpack.c.h.b16 %v2166
        %v2469 = vunpack.c.l.b16 %v2167
        %v2470 = vunpack.c.l.b16 %v2168
        %v2471 = vunpack.c.h.b16 %v2168
        %v2472 = vunpack.c.l.b16 %v2169
        %v2473 = vunpack.c.h.b16 %v2169
        %v2474 = vunpack.c.l.b16 %v2170
        %v2475 = vunpack.c.h.b16 %v2170
        %v2476 = vunpack.c.l.b16 %v2171
        %v2477 = vunpack.c.l.b16 %v2172
        %v2478 = vunpack.c.h.b16 %v2172
        %v2479 = vunpack.c.l.b16 %v2173
        %v2480 = vunpack.c.h.b16 %v2173
        %v2481 = vunpack.c.l.b16 %v2174
        %v2482 = vunpack.c.h.b16 %v2174
        %v2483 = vunpack.c.l.b16 %v2175
        %v2484 = vunpack.c.l.b16 %v2176
        %v2485 = vunpack.c.h.b16 %v2176
        %v2486 = vunpack.c.l.b16 %v2177
        %v2487 = vunpack.c.h.b16 %v2177
        %v2488 = vunpack.c.l.b16 %v2178
        %v2489 = vunpack.c.h.b16 %v2178
        %v2490 = vunpack.c.l.b16 %v2179
        %v2491 = vunpack.c.l.b16 %v2180
        %v2492 = vunpack.c.h.b16 %v2180
        %v2493 = vunpack.c.l.b16 %v2181
        %v2494 = vunpack.c.h.b16 %v2181
        %v2495 = vunpack.c.l.b16 %v2182
        %v2496 = vunpack.c.h.b16 %v2182
        %v2497 = vunpack.c.l.b16 %v2183
        %v2498 = vunpack.c.l.b16 %v2184
        %v2499 = vunpack.c.h.b16 %v2184
        %v2500 = vunpack.c.l.b16 %v2185
        %v2501 = vunpack.c.h.b16 %v2185
        %v2502 = vunpack.c.l.b16 %v2186
        %v2503 = vunpack.c.h.b16 %v2186
        %v2504 = vunpack.c.l.b16 %v2187
        %v2505 = vunpack.c.l.b16 %v2188
        %v2506 = vunpack.c.h.b16 %v2188
        %v2507 = vunpack.c.l.b16 %v2189
        %v2508 = vunpack.c.h.b16 %v2189
        %v2509 = vunpack.c.l.b16 %v2190
        %v2510 = vunpack.c.h.b16 %v2190
        %v2511 = vunpack.c.l.b16 %v2191
        %v2512 = vunpack.c.l.b16 %v2192
        %v2513 = vunpack.c.h.b16 %v2192
        %v2514 = vunpack.c.l.b16 %v2193
        %v2515 = vunpack.c.h.b16 %v2193
        %v2516 = vunpack.c.l.b16 %v2194
        %v2517 = vunpack.c.h.b16 %v2194
        %v2518 = vunpack.c.l.b16 %v2195
        %v2519 = vunpack.c.l.b16 %v2196
        %v2520 = vunpack.c.h.b16 %v2196
        %v2521 = vunpack.c.l.b16 %v2197
        %v2522 = vunpack.c.h.b16 %v2197
        %v2523 = vunpack.c.l.b16 %v2198
        %v2524 = vunpack.c.h.b16 %v2198
        %v2525 = vunpack.c.l.b16 %v2199
        %v2526 = vunpack.c.l.b16 %v2200
        %v2527 = vunpack.c.h.b16 %v2200
        %v2528 = vunpack.c.l.b16 %v2201
        %v2529 = vunpack.c.h.b16 %v2201
        %v2530 = vunpack.c.l.b16 %v2202
        %v2531 = vunpack.c.h.b16 %v2202
        %v2532 = vunpack.c.l.b16 %v2203
        %v2533 = vunpack.c.l.b16 %v2204
        %v2534 = vunpack.c.h.b16 %v2204
        %v2535 = vunpack.c.l.b16 %v2205
        %v2536 = vunpack.c.h.b16 %v2205
        %v2537 = vunpack.c.l.b16 %v2206
        %v2538 = vunpack.c.h.b16 %v2206
        %v2539 = vunpack.c.l.b16 %v2207
        %v2540 = vunpack.c.l.b16 %v2208
        %v2541 = vunpack.c.h.b16 %v2208
        %v2542 = vunpack.c.l.b16 %v2209
        %v2543 = vunpack.c.h.b16 %v2209
        %v2544 = vunpack.c.l.b16 %v2210
        %v2545 = vunpack.c.h.b16 %v2210
        %v2546 = vunpack.c.l.b16 %v2211
        %v2547 = vunpack.c.l.b16 %v2212
        %v2548 = vunpack.c.h.b16 %v2212
        %v2549 = vunpack.c.l.b16 %v2213
        %v2550 = vunpack.c.h.b16 %v2213
        %v2551 = vunpack.c.l.b16 %v2214
        %v2552 = vunpack.c.h.b16 %v2214
        %v2553 = vunpack.c.l.b16 %v2215
        %v2554 = vunpack.c.l.b16 %v2216
        %v2555 = vunpack.c.h.b16 %v2216
        %v2556 = vunpack.c.l.b16 %v2217
        %v2557 = vunpack.c.h.b16 %v2217
        %v2558 = vunpack.c.l.b16 %v2218
        %v2559 = vunpack.c.h.b16 %v2218
        %v2560 = vunpack.c.l.b16 %v2219
        %v2561 = vunpack.c.l.b16 %v2220
        %v2562 = vunpack.c.h.b16 %v2220
        %v2563 = vunpack.c.l.b16 %v2221
        %v2564 = vunpack.c.h.b16 %v2221
        %v2565 = vunpack.c.l.b16 %v2222
        %v2566 = vunpack.c.h.b16 %v2222
        %v2567 = vunpack.c.l.b16 %v2223
        %v2568 = vunpack.c.l.b16 %v2224
        %v2569 = vunpack.c.h.b16 %v2224
        %v2570 = vunpack.c.l.b16 %v2225
        %v2571 = vunpack.c.h.b16 %v2225
        %v2572 = vunpack.c.l.b16 %v2226
        %v2573 = vunpack.c.h.b16 %v2226
        %v2574 = vunpack.c.l.b16 %v2227
        %v2575 = vunpack.c.l.b16 %v2228
        %v2576 = vunpack.c.h.b16 %v2228
        %v2577 = vunpack.c.l.b16 %v2229
        %v2578 = vunpack.c.h.b16 %v2229
        %v2579 = vunpack.c.l.b16 %v2230
        %v2580 = vunpack.c.h.b16 %v2230
        %v2581 = vunpack.c.l.b16 %v2231
        %v2582 = vunpack.c.l.b16 %v2232
        %v2583 = vunpack.c.h.b16 %v2232
        %v2584 = vunpack.c.l.b16 %v2233
        %v2585 = vunpack.c.h.b16 %v2233
        %v2586 = vunpack.c.l.b16 %v2234
        %v2587 = vunpack.c.h.b16 %v2234
        %v2588 = vunpack.c.l.b16 %v2235
        %v2589 = vunpack.c.l.b16 %v2236
        %v2590 = vunpack.c.h.b16 %v2236
        %v2591 = vunpack.c.l.b16 %v2237
        %v2592 = vunpack.c.h.b16 %v2237
        %v2593 = vunpack.c.l.b16 %v2238
        %v2594 = vunpack.c.h.b16 %v2238
        %v2595 = vunpack.c.l.b16 %v2239
        %v2596 = vunpack.c.l.b16 %v2240
        %v2597 = vunpack.c.h.b16 %v2240
        %v2598 = vunpack.c.l.b16 %v2241
        %v2599 = vunpack.c.h.b16 %v2241
        %v2600 = vunpack.c.l.b16 %v2242
        %v2601 = vunpack.c.h.b16 %v2242
        %v2602 = vunpack.c.l.b16 %v2243
        %v2603 = vunpack.c.l.b16 %v2244
        %v2604 = vunpack.c.h.b16 %v2244
        %v2605 = vunpack.c.l.b16 %v2245
        %v2606 = vunpack.c.h.b16 %v2245
        %v2607 = vunpack.c.l.b16 %v2246
        %v2608 = vunpack.c.h.b16 %v2246
        %v2609 = vunpack.c.l.b16 %v2247
        %v2610 = vunpack.c.l.b16 %v2248
        %v2611 = vunpack.c.h.b16 %v2248
        %v2612 = vunpack.c.l.b16 %v2249
        %v2613 = vunpack.c.h.b16 %v2249
        %v2614 = vunpack.c.l.b16 %v2250
        %v2615 = vunpack.c.h.b16 %v2250
        %v2616 = vunpack.c.l.b16 %v2251
        %v2617 = vunpack.c.l.b16 %v2252
        %v2618 = vunpack.c.h.b16 %v2252
        %v2619 = vunpack.c.l.b16 %v2253
        %v2620 = vunpack.c.h.b16 %v2253
        %v2621 = vunpack.c.l.b16 %v2254
        %v2622 = vunpack.c.h.b16 %v2254
        %v2623 = vunpack.c.l.b16 %v2255
        %v2624 = vunpack.c.l.b16 %v2256
        %v2625 = vunpack.c.h.b16 %v2256
        %v2626 = vunpack.c.l.b16 %v2257
        %v2627 = vunpack.c.h.b16 %v2257
        %v2628 = vunpack.c.l.b16 %v2258
        %v2629 = vunpack.c.h.b16 %v2258
        %v2630 = vunpack.c.l.b16 %v2259
        %v2631 = vunpack.c.l.b16 %v2260
        %v2632 = vunpack.c.h.b16 %v2260
        %v2633 = vunpack.c.l.b16 %v2261
        %v2634 = vunpack.c.h.b16 %v2261
        %v2635 = vunpack.c.l.b16 %v2262
        %v2636 = vunpack.c.h.b16 %v2262
        %v2637 = vunpack.c.l.b16 %v2263
        %v2638 = vunpack.c.l.b16 %v2264
        %v2639 = vunpack.c.h.b16 %v2264
        %v2640 = vunpack.c.l.b16 %v2265
        %v2641 = vunpack.c.h.b16 %v2265
        %v2642 = vunpack.c.l.b16 %v2266
        %v2643 = vunpack.c.h.b16 %v2266
        %v2644 = vunpack.c.l.b16 %v2267
        %v2645 = vunpack.c.l.b16 %v2268
        %v2646 = vunpack.c.h.b16 %v2268
        %v2647 = vunpack.c.l.b16 %v2269
        %v2648 = vunpack.c.h.b16 %v2269
        %v2649 = vunpack.c.l.b16 %v2270
        %v2650 = vunpack.c.h.b16 %v2270
        %v2651 = vunpack.c.l.b16 %v2271
        %v2652 = vunpack.c.l.b16 %v2272
        %v2653 = vunpack.c.h.b16 %v2272
        %v2654 = vunpack.c.l.b16 %v2273
        %v2655 = vunpack.c.h.b16 %v2273
        %v2656 = vunpack.c.l.b16 %v2274
        %v2657 = vunpack.c.h.b16 %v2274
        %v2658 = vunpack.c.l.b16 %v2275
        %v2659 = vunpack.c.l.b16 %v2276
        %v2660 = vunpack.c.h.b16 %v2276
        %v2661 = vunpack.c.l.b16 %v2277
        %v2662 = vunpack.c.h.b16 %v2277
        %v2663 = vunpack.c.l.b16 %v2278
        %v2664 = vunpack.c.h.b16 %v2278
        %v2665 = vunpack.c.l.b16 %v2279
        %v2666 = vunpack.c.l.b16 %v2280
        %v2667 = vunpack.c.h.b16 %v2280
        %v2668 = vunpack.c.l.b16 %v2281
        %v2669 = vunpack.c.h.b16 %v2281
        %v2670 = vunpack.c.l.b16 %v2282
        %v2671 = vunpack.c.h.b16 %v2282
        %v2672 = vunpack.c.l.b16 %v2283
        %v2673 = vpack.c.b16 %v2456, %v2449
        %v2674 = vpack.c.b16 %v2457, %v2450
        %v2675 = vpack.c.b16 %v2458, %v2451
        %v2676 = vpack.c.b16 %v2459, %v2452
        %v2677 = vpack.c.b16 %v2460, %v2453
        %v2678 = vpack.c.b16 %v2461, %v2454
        %v2679 = vpack.c.b16 %v2462, %v2455
        %v2680 = vpack.c.b16 %v2470, %v2463
        %v2681 = vpack.c.b16 %v2471, %v2464
        %v2682 = vpack.c.b16 %v2472, %v2465
        %v2683 = vpack.c.b16 %v2473, %v2466
        %v2684 = vpack.c.b16 %v2474, %v2467
        %v2685 = vpack.c.b16 %v2475, %v2468
        %v2686 = vpack.c.b16 %v2476, %v2469
        %v2687 = vpack.c.b16 %v2484, %v2477
        %v2688 = vpack.c.b16 %v2485, %v2478
        %v2689 = vpack.c.b16 %v2486, %v2479
        %v2690 = vpack.c.b16 %v2487, %v2480
        %v2691 = vpack.c.b16 %v2488, %v2481
        %v2692 = vpack.c.b16 %v2489, %v2482
        %v2693 = vpack.c.b16 %v2490, %v2483
        %v2694 = vpack.c.b16 %v2498, %v2491
        %v2695 = vpack.c.b16 %v2499, %v2492
        %v2696 = vpack.c.b16 %v2500, %v2493
        %v2697 = vpack.c.b16 %v2501, %v2494
        %v2698 = vpack.c.b16 %v2502, %v2495
        %v2699 = vpack.c.b16 %v2503, %v2496
        %v2700 = vpack.c.b16 %v2504, %v2497
        %v2701 = vpack.c.b16 %v2512, %v2505
        %v2702 = vpack.c.b16 %v2513, %v2506
        %v2703 = vpack.c.b16 %v2514, %v2507
        %v2704 = vpack.c.b16 %v2515, %v2508
        %v2705 = vpack.c.b16 %v2516, %v2509
        %v2706 = vpack.c.b16 %v2517, %v2510
        %v2707 = vpack.c.b16 %v2518, %v2511
        %v2708 = vpack.c.b16 %v2526, %v2519
        %v2709 = vpack.c.b16 %v2527, %v2520
        %v2710 = vpack.c.b16 %v2528, %v2521
        %v2711 = vpack.c.b16 %v2529, %v2522
        %v2712 = vpack.c.b16 %v2530, %v2523
        %v2713 = vpack.c.b16 %v2531, %v2524
        %v2714 = vpack.c.b16 %v2532, %v2525
        %v2715 = vpack.c.b16 %v2540, %v2533
        %v2716 = vpack.c.b16 %v2541, %v2534
        %v2717 = vpack.c.b16 %v2542, %v2535
        %v2718 = vpack.c.b16 %v2543, %v2536
        %v2719 = vpack.c.b16 %v2544, %v2537
        %v2720 = vpack.c.b16 %v2545, %v2538
        %v2721 = vpack.c.b16 %v2546, %v2539
        %v2722 = vpack.c.b16 %v2554, %v2547
        %v2723 = vpack.c.b16 %v2555, %v2548
        %v2724 = vpack.c.b16 %v2556, %v2549
        %v2725 = vpack.c.b16 %v2557, %v2550
        %v2726 = vpack.c.b16 %v2558, %v2551
        %v2727 = vpack.c.b16 %v2559, %v2552
        %v2728 = vpack.c.b16 %v2560, %v2553
        %v2729 = vpack.c.b16 %v2568, %v2561
        %v2730 = vpack.c.b16 %v2569, %v2562
        %v2731 = vpack.c.b16 %v2570, %v2563
        %v2732 = vpack.c.b16 %v2571, %v2564
        %v2733 = vpack.c.b16 %v2572, %v2565
        %v2734 = vpack.c.b16 %v2573, %v2566
        %v2735 = vpack.c.b16 %v2574, %v2567
        %v2736 = vpack.c.b16 %v2582, %v2575
        %v2737 = vpack.c.b16 %v2583, %v2576
        %v2738 = vpack.c.b16 %v2584, %v2577
        %v2739 = vpack.c.b16 %v2585, %v2578
        %v2740 = vpack.c.b16 %v2586, %v2579
        %v2741 = vpack.c.b16 %v2587, %v2580
        %v2742 = vpack.c.b16 %v2588, %v2581
        %v2743 = vpack.c.b16 %v2596, %v2589
        %v2744 = vpack.c.b16 %v2597, %v2590
        %v2745 = vpack.c.b16 %v2598, %v2591
        %v2746 = vpack.c.b16 %v2599, %v2592
        %v2747 = vpack.c.b16 %v2600, %v2593
        %v2748 = vpack.c.b16 %v2601, %v2594
        %v2749 = vpack.c.b16 %v2602, %v2595
        %v2750 = vpack.c.b16 %v2610, %v2603
        %v2751 = vpack.c.b16 %v2611, %v2604
        %v2752 = vpack.c.b16 %v2612, %v2605
        %v2753 = vpack.c.b16 %v2613, %v2606
        %v2754 = vpack.c.b16 %v2614, %v2607
        %v2755 = vpack.c.b16 %v2615, %v2608
        %v2756 = vpack.c.b16 %v2616, %v2609
        %v2757 = vpack.c.b16 %v2624, %v2617
        %v2758 = vpack.c.b16 %v2625, %v2618
        %v2759 = vpack.c.b16 %v2626, %v2619
        %v2760 = vpack.c.b16 %v2627, %v2620
        %v2761 = vpack.c.b16 %v2628, %v2621
        %v2762 = vpack.c.b16 %v2629, %v2622
        %v2763 = vpack.c.b16 %v2630, %v2623
        %v2764 = vpack.c.b16 %v2638, %v2631
        %v2765 = vpack.c.b16 %v2639, %v2632
        %v2766 = vpack.c.b16 %v2640, %v2633
        %v2767 = vpack.c.b16 %v2641, %v2634
        %v2768 = vpack.c.b16 %v2642, %v2635
        %v2769 = vpack.c.b16 %v2643, %v2636
        %v2770 = vpack.c.b16 %v2644, %v2637
        %v2771 = vpack.c.b16 %v2652, %v2645
        %v2772 = vpack.c.b16 %v2653, %v2646
        %v2773 = vpack.c.b16 %v2654, %v2647
        %v2774 = vpack.c.b16 %v2655, %v2648
        %v2775 = vpack.c.b16 %v2656, %v2649
        %v2776 = vpack.c.b16 %v2657, %v2650
        %v2777 = vpack.c.b16 %v2658, %v2651
        %v2778 = vpack.c.b16 %v2666, %v2659
        %v2779 = vpack.c.b16 %v2667, %v2660
        %v2780 = vpack.c.b16 %v2668, %v2661
        %v2781 = vpack.c.b16 %v2669, %v2662
        %v2782 = vpack.c.b16 %v2670, %v2663
        %v2783 = vpack.c.b16 %v2671, %v2664
        %v2784 = vpack.c.b16 %v2672, %v2665
        %2897 = vmatprep.subr.bf16.mxu0 %v2723
        %2898 = vmatpush1.bf16.msra.mxu0 %v2722
        %2899 = vmatprep.subr.bf16.mxu0 %v2716
        %2900 = vmatpush1.bf16.msra.mxu0 %v2715
        %2901 = vmatprep.subr.bf16.mxu0 %v2709
        %2902 = vmatpush1.bf16.msra.mxu0 %v2708
        %2903 = vmatprep.subr.bf16.mxu0 %v2702
        %2904 = vmatpush1.bf16.msra.mxu0 %v2701
        %2905 = vmatprep.subr.bf16.mxu0 %v2695
        %2906 = vmatpush1.bf16.msra.mxu0 %v2694
        %2907 = vmatprep.subr.bf16.mxu0 %v2688
        %2908 = vmatpush1.bf16.msra.mxu0 %v2687
        %2909 = vmatprep.subr.bf16.mxu0 %v2681
        %2910 = vmatpush1.bf16.msra.mxu0 %v2680
        %2911 = vmatprep.subr.bf16.mxu0 %v2674
        %2912 = vmatpush1.bf16.msra.mxu0 %v2673
        %2913 = vmatprep.subr.bf16.mxu0 %v2779
        %2914 = vmatpush2.bf16.msra.mxu0 %v2778
        %2915 = vmatprep.subr.bf16.mxu0 %v2772
        %2916 = vmatpush2.bf16.msra.mxu0 %v2771
        %2917 = vmatprep.subr.bf16.mxu0 %v2765
        %2918 = vmatpush2.bf16.msra.mxu0 %v2764
        %2919 = vmatprep.subr.bf16.mxu0 %v2758
        %2920 = vmatpush2.bf16.msra.mxu0 %v2757
        %2921 = vmatprep.subr.bf16.mxu0 %v2751
        %2922 = vmatpush2.bf16.msra.mxu0 %v2750
        %2923 = vmatprep.subr.bf16.mxu0 %v2744
        %2924 = vmatpush2.bf16.msra.mxu0 %v2743
        %2925 = vmatprep.subr.bf16.mxu0 %v2737
        %2926 = vmatpush2.bf16.msra.mxu0 %v2736
        %2927 = vmatprep.subr.bf16.mxu0 %v2730
        %2928 = vmatpush2.bf16.msra.mxu0 %v2729
        %2929 = vmatprep.mubr.bf16.mxu0 %v2141
        %2930 = vmatmul.mubr.bf16.gmra.mxu0 %v2140
        %v2931 = vpop.f32.mrf.mxu0
        %v2932 = vadd.f32 %v2289, %v2931
        %v2933 = vpop.f32.mrf.mxu0
        %v2934 = vadd.f32 %v2293, %v2933
        %v2935 = vpop.f32.mrf.mxu0
        %v2936 = vadd.f32 %v2289, %v2935
        %v2937 = vpop.f32.mrf.mxu0
        %v2938 = vadd.f32 %v2293, %v2937
        %2939 = vmatprep.mubr.bf16.mxu0 %v2143
        %2940 = vmatmul.mubr.bf16.gmra.mxu0 %v2142
        %v2941 = vpop.f32.mrf.mxu0
        %v2942 = vadd.f32 %v2289, %v2941
        %v2943 = vpop.f32.mrf.mxu0
        %v2944 = vadd.f32 %v2293, %v2943
        %v2945 = vpop.f32.mrf.mxu0
        %v2946 = vadd.f32 %v2289, %v2945
        %v2947 = vpop.f32.mrf.mxu0
        %v2948 = vadd.f32 %v2293, %v2947
        %2949 = vmatprep.mubr.bf16.mxu0 %v2145
        %2950 = vmatmul.mubr.bf16.gmra.mxu0 %v2144
        %v2951 = vpop.f32.mrf.mxu0
        %v2952 = vadd.f32 %v2289, %v2951
        %v2953 = vpop.f32.mrf.mxu0
        %v2954 = vadd.f32 %v2293, %v2953
        %v2955 = vpop.f32.mrf.mxu0
        %v2956 = vadd.f32 %v2289, %v2955
        %v2957 = vpop.f32.mrf.mxu0
        %v2958 = vadd.f32 %v2293, %v2957
        %2959 = vmatprep.mubr.bf16.mxu0 %v2147
        %2960 = vmatmul.mubr.bf16.gmra.mxu0 %v2146
        %v2961 = vpop.f32.mrf.mxu0
        %v2962 = vadd.f32 %v2289, %v2961
        %v2963 = vpop.f32.mrf.mxu0
        %v2964 = vadd.f32 %v2293, %v2963
        %v2965 = vpop.f32.mrf.mxu0
        %v2966 = vadd.f32 %v2289, %v2965
        %v2967 = vpop.f32.mrf.mxu0
        %v2968 = vadd.f32 %v2293, %v2967
        %2969 = vmatprep.mubr.bf16.mxu0 %v2149
        %2970 = vmatmul.mubr.bf16.gmra.mxu0 %v2148
        %v2971 = vpop.f32.mrf.mxu0
        %v2972 = vadd.f32 %v2289, %v2971
        %v2973 = vpop.f32.mrf.mxu0
        %v2974 = vadd.f32 %v2293, %v2973
        %v2975 = vpop.f32.mrf.mxu0
        %v2976 = vadd.f32 %v2289, %v2975
        %v2977 = vpop.f32.mrf.mxu0
        %v2978 = vadd.f32 %v2293, %v2977
        %2979 = vmatprep.mubr.bf16.mxu0 %v2151
        %2980 = vmatmul.mubr.bf16.gmra.mxu0 %v2150
        %v2981 = vpop.f32.mrf.mxu0
        %v2982 = vadd.f32 %v2289, %v2981
        %v2983 = vpop.f32.mrf.mxu0
        %v2984 = vadd.f32 %v2293, %v2983
        %v2985 = vpop.f32.mrf.mxu0
        %v2986 = vadd.f32 %v2289, %v2985
        %v2987 = vpop.f32.mrf.mxu0
        %v2988 = vadd.f32 %v2293, %v2987
        %2989 = vmatprep.mubr.bf16.mxu0 %v2153
        %2990 = vmatmul.mubr.bf16.gmra.mxu0 %v2152
        %v2991 = vpop.f32.mrf.mxu0
        %v2992 = vadd.f32 %v2289, %v2991
        %v2993 = vpop.f32.mrf.mxu0
        %v2994 = vadd.f32 %v2293, %v2993
        %v2995 = vpop.f32.mrf.mxu0
        %v2996 = vadd.f32 %v2289, %v2995
        %v2997 = vpop.f32.mrf.mxu0
        %v2998 = vadd.f32 %v2293, %v2997
        %2999 = vmatprep.mubr.bf16.mxu0 %v2155
        %3000 = vmatmul.mubr.bf16.gmra.mxu0 %v2154
        %v3001 = vpop.f32.mrf.mxu0
        %v3002 = vadd.f32 %v2289, %v3001
        %v3003 = vpop.f32.mrf.mxu0
        %v3004 = vadd.f32 %v2293, %v3003
        %v3005 = vpop.f32.mrf.mxu0
        %v3006 = vadd.f32 %v2289, %v3005
        %v3007 = vpop.f32.mrf.mxu0
        %v3008 = vadd.f32 %v2293, %v3007
        %3009 = vdwg.mxu0
        %3010 = vmatprep.subr.bf16.mxu0 %v2725
        %3011 = vmatpush1.bf16.msra.mxu0 %v2724
        %3012 = vmatprep.subr.bf16.mxu0 %v2718
        %3013 = vmatpush1.bf16.msra.mxu0 %v2717
        %3014 = vmatprep.subr.bf16.mxu0 %v2711
        %3015 = vmatpush1.bf16.msra.mxu0 %v2710
        %3016 = vmatprep.subr.bf16.mxu0 %v2704
        %3017 = vmatpush1.bf16.msra.mxu0 %v2703
        %3018 = vmatprep.subr.bf16.mxu0 %v2697
        %3019 = vmatpush1.bf16.msra.mxu0 %v2696
        %3020 = vmatprep.subr.bf16.mxu0 %v2690
        %3021 = vmatpush1.bf16.msra.mxu0 %v2689
        %3022 = vmatprep.subr.bf16.mxu0 %v2683
        %3023 = vmatpush1.bf16.msra.mxu0 %v2682
        %3024 = vmatprep.subr.bf16.mxu0 %v2676
        %3025 = vmatpush1.bf16.msra.mxu0 %v2675
        %3026 = vmatprep.subr.bf16.mxu0 %v2781
        %3027 = vmatpush2.bf16.msra.mxu0 %v2780
        %3028 = vmatprep.subr.bf16.mxu0 %v2774
        %3029 = vmatpush2.bf16.msra.mxu0 %v2773
        %3030 = vmatprep.subr.bf16.mxu0 %v2767
        %3031 = vmatpush2.bf16.msra.mxu0 %v2766
        %3032 = vmatprep.subr.bf16.mxu0 %v2760
        %3033 = vmatpush2.bf16.msra.mxu0 %v2759
        %3034 = vmatprep.subr.bf16.mxu0 %v2753
        %3035 = vmatpush2.bf16.msra.mxu0 %v2752
        %3036 = vmatprep.subr.bf16.mxu0 %v2746
        %3037 = vmatpush2.bf16.msra.mxu0 %v2745
        %3038 = vmatprep.subr.bf16.mxu0 %v2739
        %3039 = vmatpush2.bf16.msra.mxu0 %v2738
        %3040 = vmatprep.subr.bf16.mxu0 %v2732
        %3041 = vmatpush2.bf16.msra.mxu0 %v2731
        %3042 = vmatprep.mubr.bf16.mxu0 %v2141
        %3043 = vmatmul.mubr.bf16.gmra.mxu0 %v2140
        %v3044 = vpop.f32.mrf.mxu0
        %v3045 = vadd.f32 %v2297, %v3044
        %v3046 = vpop.f32.mrf.mxu0
        %v3047 = vadd.f32 %v2301, %v3046
        %v3048 = vpop.f32.mrf.mxu0
        %v3049 = vadd.f32 %v2297, %v3048
        %v3050 = vpop.f32.mrf.mxu0
        %v3051 = vadd.f32 %v2301, %v3050
        %3052 = vmatprep.mubr.bf16.mxu0 %v2143
        %3053 = vmatmul.mubr.bf16.gmra.mxu0 %v2142
        %v3054 = vpop.f32.mrf.mxu0
        %v3055 = vadd.f32 %v2297, %v3054
        %v3056 = vpop.f32.mrf.mxu0
        %v3057 = vadd.f32 %v2301, %v3056
        %v3058 = vpop.f32.mrf.mxu0
        %v3059 = vadd.f32 %v2297, %v3058
        %v3060 = vpop.f32.mrf.mxu0
        %v3061 = vadd.f32 %v2301, %v3060
        %3062 = vmatprep.mubr.bf16.mxu0 %v2145
        %3063 = vmatmul.mubr.bf16.gmra.mxu0 %v2144
        %v3064 = vpop.f32.mrf.mxu0
        %v3065 = vadd.f32 %v2297, %v3064
        %v3066 = vpop.f32.mrf.mxu0
        %v3067 = vadd.f32 %v2301, %v3066
        %v3068 = vpop.f32.mrf.mxu0
        %v3069 = vadd.f32 %v2297, %v3068
        %v3070 = vpop.f32.mrf.mxu0
        %v3071 = vadd.f32 %v2301, %v3070
        %3072 = vmatprep.mubr.bf16.mxu0 %v2147
        %3073 = vmatmul.mubr.bf16.gmra.mxu0 %v2146
        %v3074 = vpop.f32.mrf.mxu0
        %v3075 = vadd.f32 %v2297, %v3074
        %v3076 = vpop.f32.mrf.mxu0
        %v3077 = vadd.f32 %v2301, %v3076
        %v3078 = vpop.f32.mrf.mxu0
        %v3079 = vadd.f32 %v2297, %v3078
        %v3080 = vpop.f32.mrf.mxu0
        %v3081 = vadd.f32 %v2301, %v3080
        %3082 = vmatprep.mubr.bf16.mxu0 %v2149
        %3083 = vmatmul.mubr.bf16.gmra.mxu0 %v2148
        %v3084 = vpop.f32.mrf.mxu0
        %v3085 = vadd.f32 %v2297, %v3084
        %v3086 = vpop.f32.mrf.mxu0
        %v3087 = vadd.f32 %v2301, %v3086
        %v3088 = vpop.f32.mrf.mxu0
        %v3089 = vadd.f32 %v2297, %v3088
        %v3090 = vpop.f32.mrf.mxu0
        %v3091 = vadd.f32 %v2301, %v3090
        %3092 = vmatprep.mubr.bf16.mxu0 %v2151
        %3093 = vmatmul.mubr.bf16.gmra.mxu0 %v2150
        %v3094 = vpop.f32.mrf.mxu0
        %v3095 = vadd.f32 %v2297, %v3094
        %v3096 = vpop.f32.mrf.mxu0
        %v3097 = vadd.f32 %v2301, %v3096
        %v3098 = vpop.f32.mrf.mxu0
        %v3099 = vadd.f32 %v2297, %v3098
        %v3100 = vpop.f32.mrf.mxu0
        %v3101 = vadd.f32 %v2301, %v3100
        %3102 = vmatprep.mubr.bf16.mxu0 %v2153
        %3103 = vmatmul.mubr.bf16.gmra.mxu0 %v2152
        %v3104 = vpop.f32.mrf.mxu0
        %v3105 = vadd.f32 %v2297, %v3104
        %v3106 = vpop.f32.mrf.mxu0
        %v3107 = vadd.f32 %v2301, %v3106
        %v3108 = vpop.f32.mrf.mxu0
        %v3109 = vadd.f32 %v2297, %v3108
        %v3110 = vpop.f32.mrf.mxu0
        %v3111 = vadd.f32 %v2301, %v3110
        %3112 = vmatprep.mubr.bf16.mxu0 %v2155
        %3113 = vmatmul.mubr.bf16.gmra.mxu0 %v2154
        %v3114 = vpop.f32.mrf.mxu0
        %v3115 = vadd.f32 %v2297, %v3114
        %v3116 = vpop.f32.mrf.mxu0
        %v3117 = vadd.f32 %v2301, %v3116
        %v3118 = vpop.f32.mrf.mxu0
        %v3119 = vadd.f32 %v2297, %v3118
        %v3120 = vpop.f32.mrf.mxu0
        %v3121 = vadd.f32 %v2301, %v3120
        %3122 = vdwg.mxu0
        %3123 = vmatprep.subr.bf16.mxu0 %v2727
        %3124 = vmatpush1.bf16.msra.mxu0 %v2726
        %3125 = vmatprep.subr.bf16.mxu0 %v2720
        %3126 = vmatpush1.bf16.msra.mxu0 %v2719
        %3127 = vmatprep.subr.bf16.mxu0 %v2713
        %3128 = vmatpush1.bf16.msra.mxu0 %v2712
        %3129 = vmatprep.subr.bf16.mxu0 %v2706
        %3130 = vmatpush1.bf16.msra.mxu0 %v2705
        %3131 = vmatprep.subr.bf16.mxu0 %v2699
        %3132 = vmatpush1.bf16.msra.mxu0 %v2698
        %3133 = vmatprep.subr.bf16.mxu0 %v2692
        %3134 = vmatpush1.bf16.msra.mxu0 %v2691
        %3135 = vmatprep.subr.bf16.mxu0 %v2685
        %3136 = vmatpush1.bf16.msra.mxu0 %v2684
        %3137 = vmatprep.subr.bf16.mxu0 %v2678
        %3138 = vmatpush1.bf16.msra.mxu0 %v2677
        %3139 = vmatprep.subr.bf16.mxu0 %v2783
        %3140 = vmatpush2.bf16.msra.mxu0 %v2782
        %3141 = vmatprep.subr.bf16.mxu0 %v2776
        %3142 = vmatpush2.bf16.msra.mxu0 %v2775
        %3143 = vmatprep.subr.bf16.mxu0 %v2769
        %3144 = vmatpush2.bf16.msra.mxu0 %v2768
        %3145 = vmatprep.subr.bf16.mxu0 %v2762
        %3146 = vmatpush2.bf16.msra.mxu0 %v2761
        %3147 = vmatprep.subr.bf16.mxu0 %v2755
        %3148 = vmatpush2.bf16.msra.mxu0 %v2754
        %3149 = vmatprep.subr.bf16.mxu0 %v2748
        %3150 = vmatpush2.bf16.msra.mxu0 %v2747
        %3151 = vmatprep.subr.bf16.mxu0 %v2741
        %3152 = vmatpush2.bf16.msra.mxu0 %v2740
        %3153 = vmatprep.subr.bf16.mxu0 %v2734
        %3154 = vmatpush2.bf16.msra.mxu0 %v2733
        %3155 = vmatprep.mubr.bf16.mxu0 %v2141
        %3156 = vmatmul.mubr.bf16.gmra.mxu0 %v2140
        %v3157 = vpop.f32.mrf.mxu0
        %v3158 = vadd.f32 %v2305, %v3157
        %v3159 = vpop.f32.mrf.mxu0
        %v3160 = vadd.f32 %v2309, %v3159
        %v3161 = vpop.f32.mrf.mxu0
        %v3162 = vadd.f32 %v2305, %v3161
        %v3163 = vpop.f32.mrf.mxu0
        %v3164 = vadd.f32 %v2309, %v3163
        %3165 = vmatprep.mubr.bf16.mxu0 %v2143
        %3166 = vmatmul.mubr.bf16.gmra.mxu0 %v2142
        %v3167 = vpop.f32.mrf.mxu0
        %v3168 = vadd.f32 %v2305, %v3167
        %v3169 = vpop.f32.mrf.mxu0
        %v3170 = vadd.f32 %v2309, %v3169
        %v3171 = vpop.f32.mrf.mxu0
        %v3172 = vadd.f32 %v2305, %v3171
        %v3173 = vpop.f32.mrf.mxu0
        %v3174 = vadd.f32 %v2309, %v3173
        %3175 = vmatprep.mubr.bf16.mxu0 %v2145
        %3176 = vmatmul.mubr.bf16.gmra.mxu0 %v2144
        %v3177 = vpop.f32.mrf.mxu0
        %v3178 = vadd.f32 %v2305, %v3177
        %v3179 = vpop.f32.mrf.mxu0
        %v3180 = vadd.f32 %v2309, %v3179
        %v3181 = vpop.f32.mrf.mxu0
        %v3182 = vadd.f32 %v2305, %v3181
        %v3183 = vpop.f32.mrf.mxu0
        %v3184 = vadd.f32 %v2309, %v3183
        %3185 = vmatprep.mubr.bf16.mxu0 %v2147
        %3186 = vmatmul.mubr.bf16.gmra.mxu0 %v2146
        %v3187 = vpop.f32.mrf.mxu0
        %v3188 = vadd.f32 %v2305, %v3187
        %v3189 = vpop.f32.mrf.mxu0
        %v3190 = vadd.f32 %v2309, %v3189
        %v3191 = vpop.f32.mrf.mxu0
        %v3192 = vadd.f32 %v2305, %v3191
        %v3193 = vpop.f32.mrf.mxu0
        %v3194 = vadd.f32 %v2309, %v3193
        %3195 = vmatprep.mubr.bf16.mxu0 %v2149
        %3196 = vmatmul.mubr.bf16.gmra.mxu0 %v2148
        %v3197 = vpop.f32.mrf.mxu0
        %v3198 = vadd.f32 %v2305, %v3197
        %v3199 = vpop.f32.mrf.mxu0
        %v3200 = vadd.f32 %v2309, %v3199
        %v3201 = vpop.f32.mrf.mxu0
        %v3202 = vadd.f32 %v2305, %v3201
        %v3203 = vpop.f32.mrf.mxu0
        %v3204 = vadd.f32 %v2309, %v3203
        %3205 = vmatprep.mubr.bf16.mxu0 %v2151
        %3206 = vmatmul.mubr.bf16.gmra.mxu0 %v2150
        %v3207 = vpop.f32.mrf.mxu0
        %v3208 = vadd.f32 %v2305, %v3207
        %v3209 = vpop.f32.mrf.mxu0
        %v3210 = vadd.f32 %v2309, %v3209
        %v3211 = vpop.f32.mrf.mxu0
        %v3212 = vadd.f32 %v2305, %v3211
        %v3213 = vpop.f32.mrf.mxu0
        %v3214 = vadd.f32 %v2309, %v3213
        %3215 = vmatprep.mubr.bf16.mxu0 %v2153
        %3216 = vmatmul.mubr.bf16.gmra.mxu0 %v2152
        %v3217 = vpop.f32.mrf.mxu0
        %v3218 = vadd.f32 %v2305, %v3217
        %v3219 = vpop.f32.mrf.mxu0
        %v3220 = vadd.f32 %v2309, %v3219
        %v3221 = vpop.f32.mrf.mxu0
        %v3222 = vadd.f32 %v2305, %v3221
        %v3223 = vpop.f32.mrf.mxu0
        %v3224 = vadd.f32 %v2309, %v3223
        %3225 = vmatprep.mubr.bf16.mxu0 %v2155
        %3226 = vmatmul.mubr.bf16.gmra.mxu0 %v2154
        %v3227 = vpop.f32.mrf.mxu0
        %v3228 = vadd.f32 %v2305, %v3227
        %v3229 = vpop.f32.mrf.mxu0
        %v3230 = vadd.f32 %v2309, %v3229
        %v3231 = vpop.f32.mrf.mxu0
        %v3232 = vadd.f32 %v2305, %v3231
        %v3233 = vpop.f32.mrf.mxu0
        %v3234 = vadd.f32 %v2309, %v3233
        %3235 = vdwg.mxu0
        %3236 = vmatprep.subr.bf16.mxu0 0
        %3237 = vmatpush1.bf16.msra.mxu0 %v2728
        %3238 = vmatprep.subr.bf16.mxu0 0
        %3239 = vmatpush1.bf16.msra.mxu0 %v2721
        %3240 = vmatprep.subr.bf16.mxu0 0
        %3241 = vmatpush1.bf16.msra.mxu0 %v2714
        %3242 = vmatprep.subr.bf16.mxu0 0
        %3243 = vmatpush1.bf16.msra.mxu0 %v2707
        %3244 = vmatprep.subr.bf16.mxu0 0
        %3245 = vmatpush1.bf16.msra.mxu0 %v2700
        %3246 = vmatprep.subr.bf16.mxu0 0
        %3247 = vmatpush1.bf16.msra.mxu0 %v2693
        %3248 = vmatprep.subr.bf16.mxu0 0
        %3249 = vmatpush1.bf16.msra.mxu0 %v2686
        %3250 = vmatprep.subr.bf16.mxu0 0
        %3251 = vmatpush1.bf16.msra.mxu0 %v2679
        %3252 = vmatprep.subr.bf16.mxu0 0
        %3253 = vmatpush2.bf16.msra.mxu0 %v2784
        %3254 = vmatprep.subr.bf16.mxu0 0
        %3255 = vmatpush2.bf16.msra.mxu0 %v2777
        %3256 = vmatprep.subr.bf16.mxu0 0
        %3257 = vmatpush2.bf16.msra.mxu0 %v2770
        %3258 = vmatprep.subr.bf16.mxu0 0
        %3259 = vmatpush2.bf16.msra.mxu0 %v2763
        %3260 = vmatprep.subr.bf16.mxu0 0
        %3261 = vmatpush2.bf16.msra.mxu0 %v2756
        %3262 = vmatprep.subr.bf16.mxu0 0
        %3263 = vmatpush2.bf16.msra.mxu0 %v2749
        %3264 = vmatprep.subr.bf16.mxu0 0
        %3265 = vmatpush2.bf16.msra.mxu0 %v2742
        %3266 = vmatprep.subr.bf16.mxu0 0
        %3267 = vmatpush2.bf16.msra.mxu0 %v2735
        %3268 = vmatprep.mubr.bf16.mxu0 %v2141
        %3269 = vmatmul.mubr.bf16.gmra.mxu0 %v2140
        %v3270 = vpop.f32.mrf.mxu0
        %v3271 = vadd.f32 %v2313, %v3270
        %v3272 = vpop.f32.mrf.mxu0
        %v3273 = vpop.f32.mrf.mxu0
        %v3274 = vadd.f32 %v2313, %v3273
        %v3275 = vpop.f32.mrf.mxu0
        %3276 = vmatprep.mubr.bf16.mxu0 %v2143
        %3277 = vmatmul.mubr.bf16.gmra.mxu0 %v2142
        %v3278 = vpop.f32.mrf.mxu0
        %v3279 = vadd.f32 %v2313, %v3278
        %v3280 = vpop.f32.mrf.mxu0
        %v3281 = vpop.f32.mrf.mxu0
        %v3282 = vadd.f32 %v2313, %v3281
        %v3283 = vpop.f32.mrf.mxu0
        %3284 = vmatprep.mubr.bf16.mxu0 %v2145
        %3285 = vmatmul.mubr.bf16.gmra.mxu0 %v2144
        %v3286 = vpop.f32.mrf.mxu0
        %v3287 = vadd.f32 %v2313, %v3286
        %v3288 = vpop.f32.mrf.mxu0
        %v3289 = vpop.f32.mrf.mxu0
        %v3290 = vadd.f32 %v2313, %v3289
        %v3291 = vpop.f32.mrf.mxu0
        %3292 = vmatprep.mubr.bf16.mxu0 %v2147
        %3293 = vmatmul.mubr.bf16.gmra.mxu0 %v2146
        %v3294 = vpop.f32.mrf.mxu0
        %v3295 = vadd.f32 %v2313, %v3294
        %v3296 = vpop.f32.mrf.mxu0
        %v3297 = vpop.f32.mrf.mxu0
        %v3298 = vadd.f32 %v2313, %v3297
        %v3299 = vpop.f32.mrf.mxu0
        %3300 = vmatprep.mubr.bf16.mxu0 %v2149
        %3301 = vmatmul.mubr.bf16.gmra.mxu0 %v2148
        %v3302 = vpop.f32.mrf.mxu0
        %v3303 = vadd.f32 %v2313, %v3302
        %v3304 = vpop.f32.mrf.mxu0
        %v3305 = vpop.f32.mrf.mxu0
        %v3306 = vadd.f32 %v2313, %v3305
        %v3307 = vpop.f32.mrf.mxu0
        %3308 = vmatprep.mubr.bf16.mxu0 %v2151
        %3309 = vmatmul.mubr.bf16.gmra.mxu0 %v2150
        %v3310 = vpop.f32.mrf.mxu0
        %v3311 = vadd.f32 %v2313, %v3310
        %v3312 = vpop.f32.mrf.mxu0
        %v3313 = vpop.f32.mrf.mxu0
        %v3314 = vadd.f32 %v2313, %v3313
        %v3315 = vpop.f32.mrf.mxu0
        %3316 = vmatprep.mubr.bf16.mxu0 %v2153
        %3317 = vmatmul.mubr.bf16.gmra.mxu0 %v2152
        %v3318 = vpop.f32.mrf.mxu0
        %v3319 = vadd.f32 %v2313, %v3318
        %v3320 = vpop.f32.mrf.mxu0
        %v3321 = vpop.f32.mrf.mxu0
        %v3322 = vadd.f32 %v2313, %v3321
        %v3323 = vpop.f32.mrf.mxu0
        %3324 = vmatprep.mubr.bf16.mxu0 %v2155
        %3325 = vmatmul.mubr.bf16.gmra.mxu0 %v2154
        %v3326 = vpop.f32.mrf.mxu0
        %v3327 = vadd.f32 %v2313, %v3326
        %v3328 = vpop.f32.mrf.mxu0
        %v3329 = vpop.f32.mrf.mxu0
        %v3330 = vadd.f32 %v2313, %v3329
        %v3331 = vpop.f32.mrf.mxu0
        %3332 = vdwg.mxu0
        %v3333 = vsub.f32 0.0, %v2932
        %v3334 = vsub.f32 0.0, %v2934
        %v3335 = vsub.f32 0.0, %v3045
        %v3336 = vsub.f32 0.0, %v3047
        %v3337 = vsub.f32 0.0, %v3158
        %v3338 = vsub.f32 0.0, %v3160
        %v3339 = vsub.f32 0.0, %v3271
        %v3340 = vsub.f32 0.0, %v2936
        %v3341 = vsub.f32 0.0, %v2938
        %v3342 = vsub.f32 0.0, %v3049
        %v3343 = vsub.f32 0.0, %v3051
        %v3344 = vsub.f32 0.0, %v3162
        %v3345 = vsub.f32 0.0, %v3164
        %v3346 = vsub.f32 0.0, %v3274
        %v3347 = vsub.f32 0.0, %v2942
        %v3348 = vsub.f32 0.0, %v2944
        %v3349 = vsub.f32 0.0, %v3055
        %v3350 = vsub.f32 0.0, %v3057
        %v3351 = vsub.f32 0.0, %v3168
        %v3352 = vsub.f32 0.0, %v3170
        %v3353 = vsub.f32 0.0, %v3279
        %v3354 = vsub.f32 0.0, %v2946
        %v3355 = vsub.f32 0.0, %v2948
        %v3356 = vsub.f32 0.0, %v3059
        %v3357 = vsub.f32 0.0, %v3061
        %v3358 = vsub.f32 0.0, %v3172
        %v3359 = vsub.f32 0.0, %v3174
        %v3360 = vsub.f32 0.0, %v3282
        %v3361 = vsub.f32 0.0, %v2952
        %v3362 = vsub.f32 0.0, %v2954
        %v3363 = vsub.f32 0.0, %v3065
        %v3364 = vsub.f32 0.0, %v3067
        %v3365 = vsub.f32 0.0, %v3178
        %v3366 = vsub.f32 0.0, %v3180
        %v3367 = vsub.f32 0.0, %v3287
        %v3368 = vsub.f32 0.0, %v2956
        %v3369 = vsub.f32 0.0, %v2958
        %v3370 = vsub.f32 0.0, %v3069
        %v3371 = vsub.f32 0.0, %v3071
        %v3372 = vsub.f32 0.0, %v3182
        %v3373 = vsub.f32 0.0, %v3184
        %v3374 = vsub.f32 0.0, %v3290
        %v3375 = vsub.f32 0.0, %v2962
        %v3376 = vsub.f32 0.0, %v2964
        %v3377 = vsub.f32 0.0, %v3075
        %v3378 = vsub.f32 0.0, %v3077
        %v3379 = vsub.f32 0.0, %v3188
        %v3380 = vsub.f32 0.0, %v3190
        %v3381 = vsub.f32 0.0, %v3295
        %v3382 = vsub.f32 0.0, %v2966
        %v3383 = vsub.f32 0.0, %v2968
        %v3384 = vsub.f32 0.0, %v3079
        %v3385 = vsub.f32 0.0, %v3081
        %v3386 = vsub.f32 0.0, %v3192
        %v3387 = vsub.f32 0.0, %v3194
        %v3388 = vsub.f32 0.0, %v3298
        %v3389 = vsub.f32 0.0, %v2972
        %v3390 = vsub.f32 0.0, %v2974
        %v3391 = vsub.f32 0.0, %v3085
        %v3392 = vsub.f32 0.0, %v3087
        %v3393 = vsub.f32 0.0, %v3198
        %v3394 = vsub.f32 0.0, %v3200
        %v3395 = vsub.f32 0.0, %v3303
        %v3396 = vsub.f32 0.0, %v2976
        %v3397 = vsub.f32 0.0, %v2978
        %v3398 = vsub.f32 0.0, %v3089
        %v3399 = vsub.f32 0.0, %v3091
        %v3400 = vsub.f32 0.0, %v3202
        %v3401 = vsub.f32 0.0, %v3204
        %v3402 = vsub.f32 0.0, %v3306
        %v3403 = vsub.f32 0.0, %v2982
        %v3404 = vsub.f32 0.0, %v2984
        %v3405 = vsub.f32 0.0, %v3095
        %v3406 = vsub.f32 0.0, %v3097
        %v3407 = vsub.f32 0.0, %v3208
        %v3408 = vsub.f32 0.0, %v3210
        %v3409 = vsub.f32 0.0, %v3311
        %v3410 = vsub.f32 0.0, %v2986
        %v3411 = vsub.f32 0.0, %v2988
        %v3412 = vsub.f32 0.0, %v3099
        %v3413 = vsub.f32 0.0, %v3101
        %v3414 = vsub.f32 0.0, %v3212
        %v3415 = vsub.f32 0.0, %v3214
        %v3416 = vsub.f32 0.0, %v3314
        %v3417 = vsub.f32 0.0, %v2992
        %v3418 = vsub.f32 0.0, %v2994
        %v3419 = vsub.f32 0.0, %v3105
        %v3420 = vsub.f32 0.0, %v3107
        %v3421 = vsub.f32 0.0, %v3218
        %v3422 = vsub.f32 0.0, %v3220
        %v3423 = vsub.f32 0.0, %v3319
        %v3424 = vsub.f32 0.0, %v2996
        %v3425 = vsub.f32 0.0, %v2998
        %v3426 = vsub.f32 0.0, %v3109
        %v3427 = vsub.f32 0.0, %v3111
        %v3428 = vsub.f32 0.0, %v3222
        %v3429 = vsub.f32 0.0, %v3224
        %v3430 = vsub.f32 0.0, %v3322
        %v3431 = vsub.f32 0.0, %v3002
        %v3432 = vsub.f32 0.0, %v3004
        %v3433 = vsub.f32 0.0, %v3115
        %v3434 = vsub.f32 0.0, %v3117
        %v3435 = vsub.f32 0.0, %v3228
        %v3436 = vsub.f32 0.0, %v3230
        %v3437 = vsub.f32 0.0, %v3327
        %v3438 = vsub.f32 0.0, %v3006
        %v3439 = vsub.f32 0.0, %v3008
        %v3440 = vsub.f32 0.0, %v3119
        %v3441 = vsub.f32 0.0, %v3121
        %v3442 = vsub.f32 0.0, %v3232
        %v3443 = vsub.f32 0.0, %v3234
        %v3444 = vsub.f32 0.0, %v3330
        %v3445 = vmul.f32 %v3333, 1.442695
        %v3446 = vpow.pop %v3445
        %v3447 = vmul.f32 %v3334, 1.442695
        %v3448 = vpow.pop %v3447
        %v3449 = vmul.f32 %v3335, 1.442695
        %v3450 = vpow.pop %v3449
        %v3451 = vmul.f32 %v3336, 1.442695
        %v3452 = vpow.pop %v3451
        %v3453 = vmul.f32 %v3337, 1.442695
        %v3454 = vpow.pop %v3453
        %v3455 = vmul.f32 %v3338, 1.442695
        %v3456 = vpow.pop %v3455
        %v3457 = vmul.f32 %v3339, 1.442695
        %v3458 = vpow.pop %v3457
        %v3459 = vmul.f32 %v3340, 1.442695
        %v3460 = vpow.pop %v3459
        %v3461 = vmul.f32 %v3341, 1.442695
        %v3462 = vpow.pop %v3461
        %v3463 = vmul.f32 %v3342, 1.442695
        %v3464 = vpow.pop %v3463
        %v3465 = vmul.f32 %v3343, 1.442695
        %v3466 = vpow.pop %v3465
        %v3467 = vmul.f32 %v3344, 1.442695
        %v3468 = vpow.pop %v3467
        %v3469 = vmul.f32 %v3345, 1.442695
        %v3470 = vpow.pop %v3469
        %v3471 = vmul.f32 %v3346, 1.442695
        %v3472 = vpow.pop %v3471
        %v3473 = vmul.f32 %v3347, 1.442695
        %v3474 = vpow.pop %v3473
        %v3475 = vmul.f32 %v3348, 1.442695
        %v3476 = vpow.pop %v3475
        %v3477 = vmul.f32 %v3349, 1.442695
        %v3478 = vpow.pop %v3477
        %v3479 = vmul.f32 %v3350, 1.442695
        %v3480 = vpow.pop %v3479
        %v3481 = vmul.f32 %v3351, 1.442695
        %v3482 = vpow.pop %v3481
        %v3483 = vmul.f32 %v3352, 1.442695
        %v3484 = vpow.pop %v3483
        %v3485 = vmul.f32 %v3353, 1.442695
        %v3486 = vpow.pop %v3485
        %v3487 = vmul.f32 %v3354, 1.442695
        %v3488 = vpow.pop %v3487
        %v3489 = vmul.f32 %v3355, 1.442695
        %v3490 = vpow.pop %v3489
        %v3491 = vmul.f32 %v3356, 1.442695
        %v3492 = vpow.pop %v3491
        %v3493 = vmul.f32 %v3357, 1.442695
        %v3494 = vpow.pop %v3493
        %v3495 = vmul.f32 %v3358, 1.442695
        %v3496 = vpow.pop %v3495
        %v3497 = vmul.f32 %v3359, 1.442695
        %v3498 = vpow.pop %v3497
        %v3499 = vmul.f32 %v3360, 1.442695
        %v3500 = vpow.pop %v3499
        %v3501 = vmul.f32 %v3361, 1.442695
        %v3502 = vpow.pop %v3501
        %v3503 = vmul.f32 %v3362, 1.442695
        %v3504 = vpow.pop %v3503
        %v3505 = vmul.f32 %v3363, 1.442695
        %v3506 = vpow.pop %v3505
        %v3507 = vmul.f32 %v3364, 1.442695
        %v3508 = vpow.pop %v3507
        %v3509 = vmul.f32 %v3365, 1.442695
        %v3510 = vpow.pop %v3509
        %v3511 = vmul.f32 %v3366, 1.442695
        %v3512 = vpow.pop %v3511
        %v3513 = vmul.f32 %v3367, 1.442695
        %v3514 = vpow.pop %v3513
        %v3515 = vmul.f32 %v3368, 1.442695
        %v3516 = vpow.pop %v3515
        %v3517 = vmul.f32 %v3369, 1.442695
        %v3518 = vpow.pop %v3517
        %v3519 = vmul.f32 %v3370, 1.442695
        %v3520 = vpow.pop %v3519
        %v3521 = vmul.f32 %v3371, 1.442695
        %v3522 = vpow.pop %v3521
        %v3523 = vmul.f32 %v3372, 1.442695
        %v3524 = vpow.pop %v3523
        %v3525 = vmul.f32 %v3373, 1.442695
        %v3526 = vpow.pop %v3525
        %v3527 = vmul.f32 %v3374, 1.442695
        %v3528 = vpow.pop %v3527
        %v3529 = vmul.f32 %v3375, 1.442695
        %v3530 = vpow.pop %v3529
        %v3531 = vmul.f32 %v3376, 1.442695
        %v3532 = vpow.pop %v3531
        %v3533 = vmul.f32 %v3377, 1.442695
        %v3534 = vpow.pop %v3533
        %v3535 = vmul.f32 %v3378, 1.442695
        %v3536 = vpow.pop %v3535
        %v3537 = vmul.f32 %v3379, 1.442695
        %v3538 = vpow.pop %v3537
        %v3539 = vmul.f32 %v3380, 1.442695
        %v3540 = vpow.pop %v3539
        %v3541 = vmul.f32 %v3381, 1.442695
        %v3542 = vpow.pop %v3541
        %v3543 = vmul.f32 %v3382, 1.442695
        %v3544 = vpow.pop %v3543
        %v3545 = vmul.f32 %v3383, 1.442695
        %v3546 = vpow.pop %v3545
        %v3547 = vmul.f32 %v3384, 1.442695
        %v3548 = vpow.pop %v3547
        %v3549 = vmul.f32 %v3385, 1.442695
        %v3550 = vpow.pop %v3549
        %v3551 = vmul.f32 %v3386, 1.442695
        %v3552 = vpow.pop %v3551
        %v3553 = vmul.f32 %v3387, 1.442695
        %v3554 = vpow.pop %v3553
        %v3555 = vmul.f32 %v3388, 1.442695
        %v3556 = vpow.pop %v3555
        %v3557 = vmul.f32 %v3389, 1.442695
        %v3558 = vpow.pop %v3557
        %v3559 = vmul.f32 %v3390, 1.442695
        %v3560 = vpow.pop %v3559
        %v3561 = vmul.f32 %v3391, 1.442695
        %v3562 = vpow.pop %v3561
        %v3563 = vmul.f32 %v3392, 1.442695
        %v3564 = vpow.pop %v3563
        %v3565 = vmul.f32 %v3393, 1.442695
        %v3566 = vpow.pop %v3565
        %v3567 = vmul.f32 %v3394, 1.442695
        %v3568 = vpow.pop %v3567
        %v3569 = vmul.f32 %v3395, 1.442695
        %v3570 = vpow.pop %v3569
        %v3571 = vmul.f32 %v3396, 1.442695
        %v3572 = vpow.pop %v3571
        %v3573 = vmul.f32 %v3397, 1.442695
        %v3574 = vpow.pop %v3573
        %v3575 = vmul.f32 %v3398, 1.442695
        %v3576 = vpow.pop %v3575
        %v3577 = vmul.f32 %v3399, 1.442695
        %v3578 = vpow.pop %v3577
        %v3579 = vmul.f32 %v3400, 1.442695
        %v3580 = vpow.pop %v3579
        %v3581 = vmul.f32 %v3401, 1.442695
        %v3582 = vpow.pop %v3581
        %v3583 = vmul.f32 %v3402, 1.442695
        %v3584 = vpow.pop %v3583
        %v3585 = vmul.f32 %v3403, 1.442695
        %v3586 = vpow.pop %v3585
        %v3587 = vmul.f32 %v3404, 1.442695
        %v3588 = vpow.pop %v3587
        %v3589 = vmul.f32 %v3405, 1.442695
        %v3590 = vpow.pop %v3589
        %v3591 = vmul.f32 %v3406, 1.442695
        %v3592 = vpow.pop %v3591
        %v3593 = vmul.f32 %v3407, 1.442695
        %v3594 = vpow.pop %v3593
        %v3595 = vmul.f32 %v3408, 1.442695
        %v3596 = vpow.pop %v3595
        %v3597 = vmul.f32 %v3409, 1.442695
        %v3598 = vpow.pop %v3597
        %v3599 = vmul.f32 %v3410, 1.442695
        %v3600 = vpow.pop %v3599
        %v3601 = vmul.f32 %v3411, 1.442695
        %v3602 = vpow.pop %v3601
        %v3603 = vmul.f32 %v3412, 1.442695
        %v3604 = vpow.pop %v3603
        %v3605 = vmul.f32 %v3413, 1.442695
        %v3606 = vpow.pop %v3605
        %v3607 = vmul.f32 %v3414, 1.442695
        %v3608 = vpow.pop %v3607
        %v3609 = vmul.f32 %v3415, 1.442695
        %v3610 = vpow.pop %v3609
        %v3611 = vmul.f32 %v3416, 1.442695
        %v3612 = vpow.pop %v3611
        %v3613 = vmul.f32 %v3417, 1.442695
        %v3614 = vpow.pop %v3613
        %v3615 = vmul.f32 %v3418, 1.442695
        %v3616 = vpow.pop %v3615
        %v3617 = vmul.f32 %v3419, 1.442695
        %v3618 = vpow.pop %v3617
        %v3619 = vmul.f32 %v3420, 1.442695
        %v3620 = vpow.pop %v3619
        %v3621 = vmul.f32 %v3421, 1.442695
        %v3622 = vpow.pop %v3621
        %v3623 = vmul.f32 %v3422, 1.442695
        %v3624 = vpow.pop %v3623
        %v3625 = vmul.f32 %v3423, 1.442695
        %v3626 = vpow.pop %v3625
        %v3627 = vmul.f32 %v3424, 1.442695
        %v3628 = vpow.pop %v3627
        %v3629 = vmul.f32 %v3425, 1.442695
        %v3630 = vpow.pop %v3629
        %v3631 = vmul.f32 %v3426, 1.442695
        %v3632 = vpow.pop %v3631
        %v3633 = vmul.f32 %v3427, 1.442695
        %v3634 = vpow.pop %v3633
        %v3635 = vmul.f32 %v3428, 1.442695
        %v3636 = vpow.pop %v3635
        %v3637 = vmul.f32 %v3429, 1.442695
        %v3638 = vpow.pop %v3637
        %v3639 = vmul.f32 %v3430, 1.442695
        %v3640 = vpow.pop %v3639
        %v3641 = vmul.f32 %v3431, 1.442695
        %v3642 = vpow.pop %v3641
        %v3643 = vmul.f32 %v3432, 1.442695
        %v3644 = vpow.pop %v3643
        %v3645 = vmul.f32 %v3433, 1.442695
        %v3646 = vpow.pop %v3645
        %v3647 = vmul.f32 %v3434, 1.442695
        %v3648 = vpow.pop %v3647
        %v3649 = vmul.f32 %v3435, 1.442695
        %v3650 = vpow.pop %v3649
        %v3651 = vmul.f32 %v3436, 1.442695
        %v3652 = vpow.pop %v3651
        %v3653 = vmul.f32 %v3437, 1.442695
        %v3654 = vpow.pop %v3653
        %v3655 = vmul.f32 %v3438, 1.442695
        %v3656 = vpow.pop %v3655
        %v3657 = vmul.f32 %v3439, 1.442695
        %v3658 = vpow.pop %v3657
        %v3659 = vmul.f32 %v3440, 1.442695
        %v3660 = vpow.pop %v3659
        %v3661 = vmul.f32 %v3441, 1.442695
        %v3662 = vpow.pop %v3661
        %v3663 = vmul.f32 %v3442, 1.442695
        %v3664 = vpow.pop %v3663
        %v3665 = vmul.f32 %v3443, 1.442695
        %v3666 = vpow.pop %v3665
        %v3667 = vmul.f32 %v3444, 1.442695
        %v3668 = vpow.pop %v3667
        %v3669 = vadd.f32 %v3446, 1.0
        %v3670 = vadd.f32 %v3448, 1.0
        %v3671 = vadd.f32 %v3450, 1.0
        %v3672 = vadd.f32 %v3452, 1.0
        %v3673 = vadd.f32 %v3454, 1.0
        %v3674 = vadd.f32 %v3456, 1.0
        %v3675 = vadd.f32 %v3458, 1.0
        %v3676 = vadd.f32 %v3460, 1.0
        %v3677 = vadd.f32 %v3462, 1.0
        %v3678 = vadd.f32 %v3464, 1.0
        %v3679 = vadd.f32 %v3466, 1.0
        %v3680 = vadd.f32 %v3468, 1.0
        %v3681 = vadd.f32 %v3470, 1.0
        %v3682 = vadd.f32 %v3472, 1.0
        %v3683 = vadd.f32 %v3474, 1.0
        %v3684 = vadd.f32 %v3476, 1.0
        %v3685 = vadd.f32 %v3478, 1.0
        %v3686 = vadd.f32 %v3480, 1.0
        %v3687 = vadd.f32 %v3482, 1.0
        %v3688 = vadd.f32 %v3484, 1.0
        %v3689 = vadd.f32 %v3486, 1.0
        %v3690 = vadd.f32 %v3488, 1.0
        %v3691 = vadd.f32 %v3490, 1.0
        %v3692 = vadd.f32 %v3492, 1.0
        %v3693 = vadd.f32 %v3494, 1.0
        %v3694 = vadd.f32 %v3496, 1.0
        %v3695 = vadd.f32 %v3498, 1.0
        %v3696 = vadd.f32 %v3500, 1.0
        %v3697 = vadd.f32 %v3502, 1.0
        %v3698 = vadd.f32 %v3504, 1.0
        %v3699 = vadd.f32 %v3506, 1.0
        %v3700 = vadd.f32 %v3508, 1.0
        %v3701 = vadd.f32 %v3510, 1.0
        %v3702 = vadd.f32 %v3512, 1.0
        %v3703 = vadd.f32 %v3514, 1.0
        %v3704 = vadd.f32 %v3516, 1.0
        %v3705 = vadd.f32 %v3518, 1.0
        %v3706 = vadd.f32 %v3520, 1.0
        %v3707 = vadd.f32 %v3522, 1.0
        %v3708 = vadd.f32 %v3524, 1.0
        %v3709 = vadd.f32 %v3526, 1.0
        %v3710 = vadd.f32 %v3528, 1.0
        %v3711 = vadd.f32 %v3530, 1.0
        %v3712 = vadd.f32 %v3532, 1.0
        %v3713 = vadd.f32 %v3534, 1.0
        %v3714 = vadd.f32 %v3536, 1.0
        %v3715 = vadd.f32 %v3538, 1.0
        %v3716 = vadd.f32 %v3540, 1.0
        %v3717 = vadd.f32 %v3542, 1.0
        %v3718 = vadd.f32 %v3544, 1.0
        %v3719 = vadd.f32 %v3546, 1.0
        %v3720 = vadd.f32 %v3548, 1.0
        %v3721 = vadd.f32 %v3550, 1.0
        %v3722 = vadd.f32 %v3552, 1.0
        %v3723 = vadd.f32 %v3554, 1.0
        %v3724 = vadd.f32 %v3556, 1.0
        %v3725 = vadd.f32 %v3558, 1.0
        %v3726 = vadd.f32 %v3560, 1.0
        %v3727 = vadd.f32 %v3562, 1.0
        %v3728 = vadd.f32 %v3564, 1.0
        %v3729 = vadd.f32 %v3566, 1.0
        %v3730 = vadd.f32 %v3568, 1.0
        %v3731 = vadd.f32 %v3570, 1.0
        %v3732 = vadd.f32 %v3572, 1.0
        %v3733 = vadd.f32 %v3574, 1.0
        %v3734 = vadd.f32 %v3576, 1.0
        %v3735 = vadd.f32 %v3578, 1.0
        %v3736 = vadd.f32 %v3580, 1.0
        %v3737 = vadd.f32 %v3582, 1.0
        %v3738 = vadd.f32 %v3584, 1.0
        %v3739 = vadd.f32 %v3586, 1.0
        %v3740 = vadd.f32 %v3588, 1.0
        %v3741 = vadd.f32 %v3590, 1.0
        %v3742 = vadd.f32 %v3592, 1.0
        %v3743 = vadd.f32 %v3594, 1.0
        %v3744 = vadd.f32 %v3596, 1.0
        %v3745 = vadd.f32 %v3598, 1.0
        %v3746 = vadd.f32 %v3600, 1.0
        %v3747 = vadd.f32 %v3602, 1.0
        %v3748 = vadd.f32 %v3604, 1.0
        %v3749 = vadd.f32 %v3606, 1.0
        %v3750 = vadd.f32 %v3608, 1.0
        %v3751 = vadd.f32 %v3610, 1.0
        %v3752 = vadd.f32 %v3612, 1.0
        %v3753 = vadd.f32 %v3614, 1.0
        %v3754 = vadd.f32 %v3616, 1.0
        %v3755 = vadd.f32 %v3618, 1.0
        %v3756 = vadd.f32 %v3620, 1.0
        %v3757 = vadd.f32 %v3622, 1.0
        %v3758 = vadd.f32 %v3624, 1.0
        %v3759 = vadd.f32 %v3626, 1.0
        %v3760 = vadd.f32 %v3628, 1.0
        %v3761 = vadd.f32 %v3630, 1.0
        %v3762 = vadd.f32 %v3632, 1.0
        %v3763 = vadd.f32 %v3634, 1.0
        %v3764 = vadd.f32 %v3636, 1.0
        %v3765 = vadd.f32 %v3638, 1.0
        %v3766 = vadd.f32 %v3640, 1.0
        %v3767 = vadd.f32 %v3642, 1.0
        %v3768 = vadd.f32 %v3644, 1.0
        %v3769 = vadd.f32 %v3646, 1.0
        %v3770 = vadd.f32 %v3648, 1.0
        %v3771 = vadd.f32 %v3650, 1.0
        %v3772 = vadd.f32 %v3652, 1.0
        %v3773 = vadd.f32 %v3654, 1.0
        %v3774 = vadd.f32 %v3656, 1.0
        %v3775 = vadd.f32 %v3658, 1.0
        %v3776 = vadd.f32 %v3660, 1.0
        %v3777 = vadd.f32 %v3662, 1.0
        %v3778 = vadd.f32 %v3664, 1.0
        %v3779 = vadd.f32 %v3666, 1.0
        %v3780 = vadd.f32 %v3668, 1.0
        %v3781 = vrcp.pop %v3669
        %v3782 = vrcp.pop %v3670
        %v3783 = vrcp.pop %v3671
        %v3784 = vrcp.pop %v3672
        %v3785 = vrcp.pop %v3673
        %v3786 = vrcp.pop %v3674
        %v3787 = vrcp.pop %v3675
        %v3788 = vrcp.pop %v3676
        %v3789 = vrcp.pop %v3677
        %v3790 = vrcp.pop %v3678
        %v3791 = vrcp.pop %v3679
        %v3792 = vrcp.pop %v3680
        %v3793 = vrcp.pop %v3681
        %v3794 = vrcp.pop %v3682
        %v3795 = vrcp.pop %v3683
        %v3796 = vrcp.pop %v3684
        %v3797 = vrcp.pop %v3685
        %v3798 = vrcp.pop %v3686
        %v3799 = vrcp.pop %v3687
        %v3800 = vrcp.pop %v3688
        %v3801 = vrcp.pop %v3689
        %v3802 = vrcp.pop %v3690
        %v3803 = vrcp.pop %v3691
        %v3804 = vrcp.pop %v3692
        %v3805 = vrcp.pop %v3693
        %v3806 = vrcp.pop %v3694
        %v3807 = vrcp.pop %v3695
        %v3808 = vrcp.pop %v3696
        %v3809 = vrcp.pop %v3697
        %v3810 = vrcp.pop %v3698
        %v3811 = vrcp.pop %v3699
        %v3812 = vrcp.pop %v3700
        %v3813 = vrcp.pop %v3701
        %v3814 = vrcp.pop %v3702
        %v3815 = vrcp.pop %v3703
        %v3816 = vrcp.pop %v3704
        %v3817 = vrcp.pop %v3705
        %v3818 = vrcp.pop %v3706
        %v3819 = vrcp.pop %v3707
        %v3820 = vrcp.pop %v3708
        %v3821 = vrcp.pop %v3709
        %v3822 = vrcp.pop %v3710
        %v3823 = vrcp.pop %v3711
        %v3824 = vrcp.pop %v3712
        %v3825 = vrcp.pop %v3713
        %v3826 = vrcp.pop %v3714
        %v3827 = vrcp.pop %v3715
        %v3828 = vrcp.pop %v3716
        %v3829 = vrcp.pop %v3717
        %v3830 = vrcp.pop %v3718
        %v3831 = vrcp.pop %v3719
        %v3832 = vrcp.pop %v3720
        %v3833 = vrcp.pop %v3721
        %v3834 = vrcp.pop %v3722
        %v3835 = vrcp.pop %v3723
        %v3836 = vrcp.pop %v3724
        %v3837 = vrcp.pop %v3725
        %v3838 = vrcp.pop %v3726
        %v3839 = vrcp.pop %v3727
        %v3840 = vrcp.pop %v3728
        %v3841 = vrcp.pop %v3729
        %v3842 = vrcp.pop %v3730
        %v3843 = vrcp.pop %v3731
        %v3844 = vrcp.pop %v3732
        %v3845 = vrcp.pop %v3733
        %v3846 = vrcp.pop %v3734
        %v3847 = vrcp.pop %v3735
        %v3848 = vrcp.pop %v3736
        %v3849 = vrcp.pop %v3737
        %v3850 = vrcp.pop %v3738
        %v3851 = vrcp.pop %v3739
        %v3852 = vrcp.pop %v3740
        %v3853 = vrcp.pop %v3741
        %v3854 = vrcp.pop %v3742
        %v3855 = vrcp.pop %v3743
        %v3856 = vrcp.pop %v3744
        %v3857 = vrcp.pop %v3745
        %v3858 = vrcp.pop %v3746
        %v3859 = vrcp.pop %v3747
        %v3860 = vrcp.pop %v3748
        %v3861 = vrcp.pop %v3749
        %v3862 = vrcp.pop %v3750
        %v3863 = vrcp.pop %v3751
        %v3864 = vrcp.pop %v3752
        %v3865 = vrcp.pop %v3753
        %v3866 = vrcp.pop %v3754
        %v3867 = vrcp.pop %v3755
        %v3868 = vrcp.pop %v3756
        %v3869 = vrcp.pop %v3757
        %v3870 = vrcp.pop %v3758
        %v3871 = vrcp.pop %v3759
        %v3872 = vrcp.pop %v3760
        %v3873 = vrcp.pop %v3761
        %v3874 = vrcp.pop %v3762
        %v3875 = vrcp.pop %v3763
        %v3876 = vrcp.pop %v3764
        %v3877 = vrcp.pop %v3765
        %v3878 = vrcp.pop %v3766
        %v3879 = vrcp.pop %v3767
        %v3880 = vrcp.pop %v3768
        %v3881 = vrcp.pop %v3769
        %v3882 = vrcp.pop %v3770
        %v3883 = vrcp.pop %v3771
        %v3884 = vrcp.pop %v3772
        %v3885 = vrcp.pop %v3773
        %v3886 = vrcp.pop %v3774
        %v3887 = vrcp.pop %v3775
        %v3888 = vrcp.pop %v3776
        %v3889 = vrcp.pop %v3777
        %v3890 = vrcp.pop %v3778
        %v3891 = vrcp.pop %v3779
        %v3892 = vrcp.pop %v3780
        %3893 = vst [vmem:[%s328] sm:$0xff] %v3781
        %3894 = vst [vmem:[%s328 + $0x8] sm:$0xff] %v3782
        %3895 = vst [vmem:[%s328 + $0x10] sm:$0xff] %v3783
        %3896 = vst [vmem:[%s328 + $0x18] sm:$0xff] %v3784
        %3897 = vst [vmem:[%s328 + $0x20] sm:$0xff] %v3785
        %3898 = vst [vmem:[%s328 + $0x28] sm:$0xff] %v3786
        %3899 = vst [vmem:[%s328 + $0x30] sm:$0xff] %v3787
        %3900 = vst [vmem:[%s328 + $0x38] sm:$0xff] %v3788
        %3901 = vst [vmem:[%s328 + $0x40] sm:$0xff] %v3789
        %3902 = vst [vmem:[%s328 + $0x48] sm:$0xff] %v3790
        %3903 = vst [vmem:[%s328 + $0x50] sm:$0xff] %v3791
        %3904 = vst [vmem:[%s328 + $0x58] sm:$0xff] %v3792
        %3905 = vst [vmem:[%s328 + $0x60] sm:$0xff] %v3793
        %3906 = vst [vmem:[%s328 + $0x68] sm:$0xff] %v3794
        %3907 = vst [vmem:[%s328 + $0x70] sm:$0xff] %v3795
        %3908 = vst [vmem:[%s328 + $0x78] sm:$0xff] %v3796
        %3909 = vst [vmem:[%s328 + $0x80] sm:$0xff] %v3797
        %3910 = vst [vmem:[%s328 + $0x88] sm:$0xff] %v3798
        %3911 = vst [vmem:[%s328 + $0x90] sm:$0xff] %v3799
        %3912 = vst [vmem:[%s328 + $0x98] sm:$0xff] %v3800
        %3913 = vst [vmem:[%s328 + $0xa0] sm:$0xff] %v3801
        %3914 = vst [vmem:[%s328 + $0xa8] sm:$0xff] %v3802
        %3915 = vst [vmem:[%s328 + $0xb0] sm:$0xff] %v3803
        %3916 = vst [vmem:[%s328 + $0xb8] sm:$0xff] %v3804
        %3917 = vst [vmem:[%s328 + $0xc0] sm:$0xff] %v3805
        %3918 = vst [vmem:[%s328 + $0xc8] sm:$0xff] %v3806
        %3919 = vst [vmem:[%s328 + $0xd0] sm:$0xff] %v3807
        %3920 = vst [vmem:[%s328 + $0xd8] sm:$0xff] %v3808
        %3921 = vst [vmem:[%s328 + $0xe0] sm:$0xff] %v3809
        %3922 = vst [vmem:[%s328 + $0xe8] sm:$0xff] %v3810
        %3923 = vst [vmem:[%s328 + $0xf0] sm:$0xff] %v3811
        %3924 = vst [vmem:[%s328 + $0xf8] sm:$0xff] %v3812
        %3925 = vst [vmem:[%s328 + $0x100] sm:$0xff] %v3813
        %3926 = vst [vmem:[%s328 + $0x108] sm:$0xff] %v3814
        %3927 = vst [vmem:[%s328 + $0x110] sm:$0xff] %v3815
        %3928 = vst [vmem:[%s328 + $0x118] sm:$0xff] %v3816
        %3929 = vst [vmem:[%s328 + $0x120] sm:$0xff] %v3817
        %3930 = vst [vmem:[%s328 + $0x128] sm:$0xff] %v3818
        %3931 = vst [vmem:[%s328 + $0x130] sm:$0xff] %v3819
        %3932 = vst [vmem:[%s328 + $0x138] sm:$0xff] %v3820
        %3933 = vst [vmem:[%s328 + $0x140] sm:$0xff] %v3821
        %3934 = vst [vmem:[%s328 + $0x148] sm:$0xff] %v3822
        %3935 = vst [vmem:[%s328 + $0x150] sm:$0xff] %v3823
        %3936 = vst [vmem:[%s328 + $0x158] sm:$0xff] %v3824
        %3937 = vst [vmem:[%s328 + $0x160] sm:$0xff] %v3825
        %3938 = vst [vmem:[%s328 + $0x168] sm:$0xff] %v3826
        %3939 = vst [vmem:[%s328 + $0x170] sm:$0xff] %v3827
        %3940 = vst [vmem:[%s328 + $0x178] sm:$0xff] %v3828
        %3941 = vst [vmem:[%s328 + $0x180] sm:$0xff] %v3829
        %3942 = vst [vmem:[%s328 + $0x188] sm:$0xff] %v3830
        %3943 = vst [vmem:[%s328 + $0x190] sm:$0xff] %v3831
        %3944 = vst [vmem:[%s328 + $0x198] sm:$0xff] %v3832
        %3945 = vst [vmem:[%s328 + $0x1a0] sm:$0xff] %v3833
        %3946 = vst [vmem:[%s328 + $0x1a8] sm:$0xff] %v3834
        %3947 = vst [vmem:[%s328 + $0x1b0] sm:$0xff] %v3835
        %3948 = vst [vmem:[%s328 + $0x1b8] sm:$0xff] %v3836
        %3949 = vst [vmem:[%s328 + $0x1c0] sm:$0xff] %v3837
        %3950 = vst [vmem:[%s328 + $0x1c8] sm:$0xff] %v3838
        %3951 = vst [vmem:[%s328 + $0x1d0] sm:$0xff] %v3839
        %3952 = vst [vmem:[%s328 + $0x1d8] sm:$0xff] %v3840
        %3953 = vst [vmem:[%s328 + $0x1e0] sm:$0xff] %v3841
        %3954 = vst [vmem:[%s328 + $0x1e8] sm:$0xff] %v3842
        %3955 = vst [vmem:[%s328 + $0x1f0] sm:$0xff] %v3843
        %3956 = vst [vmem:[%s328 + $0x1f8] sm:$0xff] %v3844
        %3957 = vst [vmem:[%s328 + $0x200] sm:$0xff] %v3845
        %3958 = vst [vmem:[%s328 + $0x208] sm:$0xff] %v3846
        %3959 = vst [vmem:[%s328 + $0x210] sm:$0xff] %v3847
        %3960 = vst [vmem:[%s328 + $0x218] sm:$0xff] %v3848
        %3961 = vst [vmem:[%s328 + $0x220] sm:$0xff] %v3849
        %3962 = vst [vmem:[%s328 + $0x228] sm:$0xff] %v3850
        %3963 = vst [vmem:[%s328 + $0x230] sm:$0xff] %v3851
        %3964 = vst [vmem:[%s328 + $0x238] sm:$0xff] %v3852
        %3965 = vst [vmem:[%s328 + $0x240] sm:$0xff] %v3853
        %3966 = vst [vmem:[%s328 + $0x248] sm:$0xff] %v3854
        %3967 = vst [vmem:[%s328 + $0x250] sm:$0xff] %v3855
        %3968 = vst [vmem:[%s328 + $0x258] sm:$0xff] %v3856
        %3969 = vst [vmem:[%s328 + $0x260] sm:$0xff] %v3857
        %3970 = vst [vmem:[%s328 + $0x268] sm:$0xff] %v3858
        %3971 = vst [vmem:[%s328 + $0x270] sm:$0xff] %v3859
        %3972 = vst [vmem:[%s328 + $0x278] sm:$0xff] %v3860
        %3973 = vst [vmem:[%s328 + $0x280] sm:$0xff] %v3861
        %3974 = vst [vmem:[%s328 + $0x288] sm:$0xff] %v3862
        %3975 = vst [vmem:[%s328 + $0x290] sm:$0xff] %v3863
        %3976 = vst [vmem:[%s328 + $0x298] sm:$0xff] %v3864
        %3977 = vst [vmem:[%s328 + $0x2a0] sm:$0xff] %v3865
        %3978 = vst [vmem:[%s328 + $0x2a8] sm:$0xff] %v3866
        %3979 = vst [vmem:[%s328 + $0x2b0] sm:$0xff] %v3867
        %3980 = vst [vmem:[%s328 + $0x2b8] sm:$0xff] %v3868
        %3981 = vst [vmem:[%s328 + $0x2c0] sm:$0xff] %v3869
        %3982 = vst [vmem:[%s328 + $0x2c8] sm:$0xff] %v3870
        %3983 = vst [vmem:[%s328 + $0x2d0] sm:$0xff] %v3871
        %3984 = vst [vmem:[%s328 + $0x2d8] sm:$0xff] %v3872
        %3985 = vst [vmem:[%s328 + $0x2e0] sm:$0xff] %v3873
        %3986 = vst [vmem:[%s328 + $0x2e8] sm:$0xff] %v3874
        %3987 = vst [vmem:[%s328 + $0x2f0] sm:$0xff] %v3875
        %3988 = vst [vmem:[%s328 + $0x2f8] sm:$0xff] %v3876
        %3989 = vst [vmem:[%s328 + $0x300] sm:$0xff] %v3877
        %3990 = vst [vmem:[%s328 + $0x308] sm:$0xff] %v3878
        %3991 = vst [vmem:[%s328 + $0x310] sm:$0xff] %v3879
        %3992 = vst [vmem:[%s328 + $0x318] sm:$0xff] %v3880
        %3993 = vst [vmem:[%s328 + $0x320] sm:$0xff] %v3881
        %3994 = vst [vmem:[%s328 + $0x328] sm:$0xff] %v3882
        %3995 = vst [vmem:[%s328 + $0x330] sm:$0xff] %v3883
        %3996 = vst [vmem:[%s328 + $0x338] sm:$0xff] %v3884
        %3997 = vst [vmem:[%s328 + $0x340] sm:$0xff] %v3885
        %3998 = vst [vmem:[%s328 + $0x348] sm:$0xff] %v3886
        %3999 = vst [vmem:[%s328 + $0x350] sm:$0xff] %v3887
        %4000 = vst [vmem:[%s328 + $0x358] sm:$0xff] %v3888
        %4001 = vst [vmem:[%s328 + $0x360] sm:$0xff] %v3889
        %4002 = vst [vmem:[%s328 + $0x368] sm:$0xff] %v3890
        %4003 = vst [vmem:[%s328 + $0x370] sm:$0xff] %v3891
        %4004 = vst [vmem:[%s328 + $0x378] sm:$0xff] %v3892
        %s4005 = sand.u32 %s225, 1
        %s4006 = scalar_lea.sflag [#allocation3], %s4005
        %s4007 = sand.u32 %s225, 1
        %s4008 = smul.addr %s4007, 896
        %s4009 = scalar_lea.vmem [#allocation2], %s4008
        // Predicated region
        $region57: #{tpu_custom_call.1} parent=55 // pred_check
          %p4010 = pneg %p235
        $region58: #{tpu_custom_call.1} parent=55 // pred_check_branch
          %4012 = sbr.rel (%p4010) target = $region60
        $region59: #{tpu_custom_call.1} parent=55 // pred_region
          %s4013 = smul.u32 16, %s23
          %s4015 = ssub.s32 14336, 14336
          %4016 = vsyncadd %s4006, %s4015
          %s4017 = smul.addr %s4013, 7
          %s4018 = smul.addr %s4017, 128
          %s4019 = scalar_lea.hbm %s9, %s4018
          %s4020 = sshll.u32 %s4009, 4
          %s4021 = int_to_ptr.vmem [resolvable:$true] %s4020
          %4026 = dma.vmem_to_hbm [thread:$0]  %s4021, 14336, %s4019, %s4006, 896, 896, 56
        $region60: #{tpu_custom_call.1} parent=55 // pred_fallthru
          _
      $region56: #{tpu_custom_call.1} parent=5 // pred_fallthru
        _
      %p4027 = scmp.le.s32.totalorder 2, %s18
      // Predicated region
      $region61: #{tpu_custom_call.1} parent=5 // pred_check
        %p4028 = pneg %p4027
      $region62: #{tpu_custom_call.1} parent=5 // pred_check_branch
        %4030 = sbr.rel (%p4028) target = $region64
      $region63: #{tpu_custom_call.1} parent=5 // pred_region
        %s4031 = ssub.s32 %s18, 2
        // Predicated region
        $region65: #{tpu_custom_call.1} parent=63 // pred_check
          %p4032 = pneg %p241
        $region66: #{tpu_custom_call.1} parent=63 // pred_check_branch
          %4034 = sbr.rel (%p4032) target = $region68
        $region67: #{tpu_custom_call.1} parent=63 // pred_region
          %s4035 = sand.u32 %s226, 1
          %s4036 = scalar_lea.sflag [#allocation3], %s4035
          %s4037 = sand.u32 %s226, 1
          %s4038 = smul.addr %s4037, 896
          %s4039 = scalar_lea.vmem [#allocation2], %s4038
          %4040 = dma.done %s4036, 14336
        $region68: #{tpu_custom_call.1} parent=63 // pred_fallthru
          _
      $region64: #{tpu_custom_call.1} parent=5 // pred_fallthru
        _
    $region6: #{tpu_custom_call.1} parent=1 // loop_footer
      %s22 = sadd.s32 1, %s18
    $region7: #{tpu_custom_call.1} parent=1 // loop_footer_branch
      %17 = sbr.rel target = $region3
    $region8: #{tpu_custom_call.1} parent=1 // loop_exit
      _
    %4041 = vsyncpa [#allocation3], 1
    %s4042 = scalar_lea.sflag [#allocation3], 1
    %4043 = vsyncpa %s4042, 1

</llo_original>
